<compile_context>
chip_gen: v6e
topology: v6e:2x2x1
jax: 0.10.0
libtpu: 0.0.40
codegen_flags: <defaults>
</compile_context>

<pallas_src>
import jax
import jax.numpy as jnp
import numpy as np
from jax.experimental import pallas as pl
from jax.experimental.pallas import tpu as pltpu


def _make_distortion_kernel(symmetric_d: bool, n_tiles: int):
    """Build the kernel body; `symmetric_d` / `n_tiles` are static."""

    def kernel(rown_ref, coln_ref, xrow_ref, xcol_ref, d_ref, out_ref):
        i = pl.program_id(0)          # row-tile index   ("parallel")
        k = pl.program_id(1)          # inner / col-tile index ("arbitrary")
        tm, tn = d_ref.shape

        # Output block is resident across the whole k sweep for this row tile:
        # accumulate directly into it (no scratch, no finalize copy).
        @pl.when(k == 0)
        def _init():
            out_ref[...] = jnp.zeros_like(out_ref)

        def _sublane_tree_sum(val):
            # Aligned static (8, tn) slices + tree add: pure VALU adds, no
            # relayout risk from a materialized reshape.
            parts = [val[8 * s:8 * (s + 1), :] for s in range(tm // 8)]
            while len(parts) > 1:
                nxt = [parts[p] + parts[p + 1] for p in range(0, len(parts) - 1, 2)]
                if len(parts) % 2:
                    nxt.append(parts[-1])
                parts = nxt
            return parts[0]

        def _compute():
            x = xrow_ref[...]                                   # (tm, E)
            y = xcol_ref[...]                                   # (tn, E)
            # Transpose-free contraction on the last dims; HIGHEST precision
            # keeps the f32 MXU passes accurate (E is small -> MXU has slack).
            xy = jax.lax.dot_general(
                x, y,
                dimension_numbers=(((1,), (1,)), ((), ())),
                preferred_element_type=jnp.float32,
                precision=jax.lax.Precision.HIGHEST)            # (tm, tn)

            # Hoisted squared norms: (tm,1) + (1,tn) broadcast.
            sq = jnp.maximum(rown_ref[...] + coln_ref[...] - 2.0 * xy, 0.0)
            dist = jnp.sqrt(sq)
            d_blk = d_ref[...].astype(jnp.float32)              # (tm, tn)

            # Diagonal tile detection. Valid because tm == tn (asserted in the
            # wrapper), so local diag == global diag on tile (i, i).
            is_diag_tile = (k == 0) if symmetric_d else (i == k)

            @pl.when(is_diag_tile)
            def _diag_tile():
                r = jax.lax.broadcasted_iota(jnp.int32, (tm, tn), 0)
                c = jax.lax.broadcasted_iota(jnp.int32, (tm, tn), 1)
                on_diag = r == c
                # Self-distance is exactly zero in the reference; enforce it to
                # avoid sqrt-of-roundoff noise on the diagonal.
                dist0 = jnp.where(on_diag, 0.0, dist)
                denom = d_blk + on_diag.astype(jnp.float32)
                val = jnp.abs(dist0 - d_blk) * pl.reciprocal(denom, approx=False)
                out_ref[...] += _sublane_tree_sum(val)

            @pl.when(jnp.logical_not(is_diag_tile))
            def _off_diag_tile():
                # No identity work needed off the diagonal.
                val = jnp.abs(dist - d_blk) * pl.reciprocal(d_blk, approx=False)
                part = _sublane_tree_sum(val)
                if symmetric_d:
                    part = 2.0 * part      # account for the mirrored (j, i) tile
                out_ref[...] += part

        if symmetric_d:
            # Only upper-triangular tile pairs do work; the clamped index_map
            # keeps the same blocks loaded for skipped steps (no extra DMA).
            pl.when(i + k < n_tiles)(_compute)
        else:
            _compute()

    return kernel


def distortion(mapping, D, *, tile=None, symmetric_d=True):
    """mapping: (N, E) array; D: (N, N) metric cost matrix. Returns scalar distortion.

    symmetric_d=True exploits D's symmetry (it is a metric) and only computes
    upper-triangular tiles; pass False for exact handling of asymmetric D.
    """
    N, E = mapping.shape
    assert D.shape == (N, N)

    # Tile choice: 256 fills the v6e/v7x 256-wide MXU and amortizes the
    # ~0.35us-per-grid-step overhead; 512 for large N (VMEM stays ~12 MiB,
    # well under v7x's 64 MiB). Fall back to one full block for irregular N.
    if tile is None:
        if N >= 2048 and N % 512 == 0:
            tile = 512
        elif N % 256 == 0:
            tile = 256
        elif N % 128 == 0:
            tile = 128
        else:
            tile = N
    assert N % tile == 0, "N must be divisible by the tile size"
    assert tile % 8 == 0, "tile must be a multiple of 8 (sublane)"
    tm = tn = tile
    n_tiles = N // tile

    mapping_f32 = mapping.astype(jnp.float32)
    D = jnp.asarray(D, jnp.float32)
    sq_norms = jnp.sum(mapping_f32 * mapping_f32, axis=-1)   # hoisted, computed once
    row_norms = sq_norms.reshape(N, 1)                       # sublane-oriented
    col_norms = sq_norms.reshape(1, N)                       # lane-oriented

    if symmetric_d:
        def col_idx(i, k):
            # Clamp: steps past the triangle re-use the previous block (no DMA)
            # and are compute-gated inside the kernel.
            return jnp.minimum(i + k, n_tiles - 1)
    else:
        def col_idx(i, k):
            return k

    kernel = _make_distortion_kernel(symmetric_d, n_tiles)

    # Advisory cost estimate for XLA's scheduler around the custom call.
    n_computed = (n_tiles * (n_tiles + 1)) // 2 if symmetric_d else n_tiles * n_tiles
    flops = n_computed * (2 * tm * tn * E + 10 * tm * tn)
    transcendentals = n_computed * 2 * tm * tn                  # sqrt + reciprocal
    bytes_accessed = 4 * (n_computed * tm * tn                  # D tiles
                          + (1 + n_tiles) * N * E               # mapping streams
                          + 8 * n_tiles * tn + 2 * N)           # partials + norms

    # Raise the scoped VMEM limit for large tiles (v5e defaults to 16 MiB);
    # keep it <= 64 MiB so the config also fits v7x's smaller physical VMEM.
    vmem_limit = (32 if tile <= 256 else 64) * 1024 * 1024

    partials = pl.pallas_call(
        kernel,
        out_shape=jax.ShapeDtypeStruct((8 * n_tiles, tn), jnp.float32),
        grid_spec=pltpu.PrefetchScalarGridSpec(
            num_scalar_prefetch=0,
            grid=(n_tiles, n_tiles),
            in_specs=[
                pl.BlockSpec((tm, 1), lambda i, k: (i, 0)),              # row sq-norms
                pl.BlockSpec((1, tn), lambda i, k: (0, col_idx(i, k))),  # col sq-norms
                pl.BlockSpec((tm, E), lambda i, k: (i, 0)),              # row block of mapping
                pl.BlockSpec((tn, E), lambda i, k: (col_idx(i, k), 0)),  # col block of mapping
                pl.BlockSpec((tm, tn), lambda i, k: (i, col_idx(i, k))), # block of D
            ],
            out_specs=pl.BlockSpec((8, tn), lambda i, k: (i, 0)),        # per-row-tile partials
        ),
        compiler_params=pltpu.CompilerParams(
            dimension_semantics=("parallel", "arbitrary"),
            vmem_limit_bytes=vmem_limit),
        cost_estimate=pl.CostEstimate(
            flops=flops,
            transcendentals=transcendentals,
            bytes_accessed=bytes_accessed),
    )(row_norms, col_norms, mapping_f32, mapping_f32, D)

    return jnp.sum(partials) / jnp.float32(N * N - N)


if __name__ == "__main__":
    key = jax.random.PRNGKey(0)
    k1, k2 = jax.random.split(key)

    # Small but tiling-exercising shapes: 512 points in 32 dims -> 2x2 tile grid
    # with 256x256 tiles (diag tile, off-diag x2 tile, and one skipped tile).
    N, E = 512, 32
    mapping = jax.random.normal(k1, (N, E), dtype=jnp.float32)

    # Deterministic synthetic finite-metric cost matrix D (symmetric, zero diag):
    # pairwise Euclidean distances of another deterministic point cloud.
    pts = jax.random.normal(k2, (N, 8), dtype=jnp.float32)
    pdiff = pts[:, None, :] - pts[None, :, :]
    D = jnp.sqrt(jnp.sum(pdiff * pdiff, axis=-1))

    out_sym = jax.block_until_ready(distortion(mapping, D))                        # triangular
    out_full = jax.block_until_ready(distortion(mapping, D, symmetric_d=False))    # full grid

    # Float64 ground truth on host (same f32 inputs, exact arithmetic).
    m64 = np.asarray(mapping, dtype=np.float64)
    D64 = np.asarray(D, dtype=np.float64)
    d64 = np.sqrt(((m64[:, None, :] - m64[None, :, :]) ** 2).sum(-1))
    d64 = np.abs(d64 - D64) / (D64 + np.eye(N, dtype=np.float64))
    ref = d64.sum() / (N * N - N)

    np.testing.assert_allclose(np.asarray(out_sym), ref, rtol=5e-5, atol=1e-6)
    np.testing.assert_allclose(np.asarray(out_full), ref, rtol=5e-5, atol=1e-6)
    print("KERNEL_OK")
</pallas_src>

<mosaic_0001>
module attributes {stable_mosaic.version = 11 : i64} {
  func.func @kernel(%arg0: i32, %arg1: i32, %arg2: memref<256x1xf32, #tpu.memory_space<vmem>>, %arg3: memref<1x256xf32, #tpu.memory_space<vmem>>, %arg4: memref<256x32xf32, #tpu.memory_space<vmem>>, %arg5: memref<256x32xf32, #tpu.memory_space<vmem>>, %arg6: memref<256x256xf32, #tpu.memory_space<vmem>>, %arg7: memref<8x256xf32, #tpu.memory_space<vmem>>) attributes {dimension_semantics = [#tpu.dimension_semantics<parallel>, #tpu.dimension_semantics<arbitrary>], iteration_bounds = array<i64: 2, 2>, scalar_prefetch = 0 : i64, scratch_operands = 0 : i64, tpu.core_type = #tpu.core_type<tc>, window_params = [{transform_indices = @transform_0, window_bounds = array<i64: 256, 1>}, {transform_indices = @transform_1, window_bounds = array<i64: 1, 256>}, {transform_indices = @transform_2, window_bounds = array<i64: 256, 32>}, {transform_indices = @transform_3, window_bounds = array<i64: 256, 32>}, {transform_indices = @transform_4, window_bounds = array<i64: 256, 256>}, {transform_indices = @transform_5, window_bounds = array<i64: 8, 256>}]} {
    %c0_i32 = arith.constant 0 : i32
    %0 = arith.cmpi eq, %arg1, %c0_i32 : i32
    %1 = arith.extui %0 : i1 to i32
    %c0_i32_0 = arith.constant 0 : i32
    %2 = arith.cmpi ne, %1, %c0_i32_0 : i32
    scf.if %2 {
      %cst = arith.constant 0.000000e+00 : f32
      %7 = vector.broadcast %cst : f32 to vector<8x256xf32>
      %c0 = arith.constant 0 : index
      %c0_2 = arith.constant 0 : index
      %8 = vector.load %arg7[%c0, %c0_2] : memref<8x256xf32, #tpu.memory_space<vmem>>, vector<8x256xf32>
      tpu.vector_store %arg7[%c0, %c0_2], %7 {strides = array<i32>} : memref<8x256xf32, #tpu.memory_space<vmem>>, vector<8x256xf32>,
    } else {
    }
    %3 = arith.addi %arg0, %arg1 : i32
    %c2_i32 = arith.constant 2 : i32
    %4 = arith.cmpi slt, %3, %c2_i32 : i32
    %5 = arith.extui %4 : i1 to i32
    %c0_i32_1 = arith.constant 0 : i32
    %6 = arith.cmpi ne, %5, %c0_i32_1 : i32
    scf.if %6 {
      %c0 = arith.constant 0 : index
      %c0_2 = arith.constant 0 : index
      %7 = vector.load %arg4[%c0, %c0_2] : memref<256x32xf32, #tpu.memory_space<vmem>>, vector<256x32xf32>
      %c0_3 = arith.constant 0 : index
      %c0_4 = arith.constant 0 : index
      %8 = vector.load %arg5[%c0_3, %c0_4] : memref<256x32xf32, #tpu.memory_space<vmem>>, vector<256x32xf32>
      %cst = arith.constant dense<0.000000e+00> : vector<256x256xf32>
      %9 = tpu.matmul %7, %8, %cst {dimension_numbers = #tpu.dot_dimension_numbers<[1], [1], [0], [0], [0, 0, 1, 0], [], []>, precision = #tpu.contract_precision<fp32>} : vector<256x32xf32>, vector<256x32xf32>, vector<256x256xf32> -> vector<256x256xf32>
      %c0_5 = arith.constant 0 : index
      %c0_6 = arith.constant 0 : index
      %10 = vector.load %arg2[%c0_5, %c0_6] : memref<256x1xf32, #tpu.memory_space<vmem>>, vector<256x1xf32>
      %c0_7 = arith.constant 0 : index
      %c0_8 = arith.constant 0 : index
      %11 = vector.load %arg3[%c0_7, %c0_8] : memref<1x256xf32, #tpu.memory_space<vmem>>, vector<1x256xf32>
      %12 = vector.broadcast %10 : vector<256x1xf32> to vector<256x256xf32>
      %13 = vector.broadcast %11 : vector<1x256xf32> to vector<256x256xf32>
      %14 = arith.addf %12, %13 : vector<256x256xf32>
      %cst_9 = arith.constant 2.000000e+00 : f32
      %15 = vector.broadcast %cst_9 : f32 to vector<256x256xf32>
      %16 = arith.mulf %15, %9 : vector<256x256xf32>
      %17 = arith.subf %14, %16 : vector<256x256xf32>
      %cst_10 = arith.constant 0.000000e+00 : f32
      %18 = vector.broadcast %cst_10 : f32 to vector<256x256xf32>
      %19 = arith.maximumf %17, %18 : vector<256x256xf32>
      %20 = math.sqrt %19 : vector<256x256xf32>
      %c0_11 = arith.constant 0 : index
      %c0_12 = arith.constant 0 : index
      %21 = vector.load %arg6[%c0_11, %c0_12] : memref<256x256xf32, #tpu.memory_space<vmem>>, vector<256x256xf32>
      %c0_i32_13 = arith.constant 0 : i32
      %22 = arith.cmpi eq, %arg1, %c0_i32_13 : i32
      %23 = arith.extui %22 : i1 to i32
      %c0_i32_14 = arith.constant 0 : i32
      %24 = arith.cmpi ne, %23, %c0_i32_14 : i32
      scf.if %24 {
        %28 = tpu.iota {dimensions = array<i32: 0>} : vector<256x256xi32>
        %29 = tpu.iota {dimensions = array<i32: 1>} : vector<256x256xi32>
        %30 = arith.cmpi eq, %28, %29 : vector<256x256xi32>
        %cst_16 = arith.constant 0.000000e+00 : f32
        %31 = vector.broadcast %cst_16 : f32 to vector<256x256xf32>
        %32 = arith.select %30, %31, %20 : vector<256x256xi1>, vector<256x256xf32>
        %33 = arith.extui %30 : vector<256x256xi1> to vector<256x256xi32>
        %34 = arith.sitofp %33 : vector<256x256xi32> to vector<256x256xf32>
        %35 = arith.addf %21, %34 : vector<256x256xf32>
        %36 = arith.subf %32, %21 : vector<256x256xf32>
        %37 = math.absf %36 : vector<256x256xf32>
        %38 = tpu.reciprocal %35 : vector<256x256xf32> -> vector<256x256xf32>
        %39 = arith.mulf %37, %38 : vector<256x256xf32>
        %c0_17 = arith.constant 0 : index
        %c0_18 = arith.constant 0 : index
        %40 = vector.load %arg7[%c0_17, %c0_18] : memref<8x256xf32, #tpu.memory_space<vmem>>, vector<8x256xf32>
        %41 = vector.extract_strided_slice %39 {offsets = [0, 0], sizes = [8, 256], strides = [1, 1]} : vector<256x256xf32> to vector<8x256xf32>
        %42 = vector.extract_strided_slice %39 {offsets = [8, 0], sizes = [8, 256], strides = [1, 1]} : vector<256x256xf32> to vector<8x256xf32>
        %43 = vector.extract_strided_slice %39 {offsets = [16, 0], sizes = [8, 256], strides = [1, 1]} : vector<256x256xf32> to vector<8x256xf32>
        %44 = vector.extract_strided_slice %39 {offsets = [24, 0], sizes = [8, 256], strides = [1, 1]} : vector<256x256xf32> to vector<8x256xf32>
        %45 = vector.extract_strided_slice %39 {offsets = [32, 0], sizes = [8, 256], strides = [1, 1]} : vector<256x256xf32> to vector<8x256xf32>
        %46 = vector.extract_strided_slice %39 {offsets = [40, 0], sizes = [8, 256], strides = [1, 1]} : vector<256x256xf32> to vector<8x256xf32>
        %47 = vector.extract_strided_slice %39 {offsets = [48, 0], sizes = [8, 256], strides = [1, 1]} : vector<256x256xf32> to vector<8x256xf32>
        %48 = vector.extract_strided_slice %39 {offsets = [56, 0], sizes = [8, 256], strides = [1, 1]} : vector<256x256xf32> to vector<8x256xf32>
        %49 = vector.extract_strided_slice %39 {offsets = [64, 0], sizes = [8, 256], strides = [1, 1]} : vector<256x256xf32> to vector<8x256xf32>
        %50 = vector.extract_strided_slice %39 {offsets = [72, 0], sizes = [8, 256], strides = [1, 1]} : vector<256x256xf32> to vector<8x256xf32>
        %51 = vector.extract_strided_slice %39 {offsets = [80, 0], sizes = [8, 256], strides = [1, 1]} : vector<256x256xf32> to vector<8x256xf32>
        %52 = vector.extract_strided_slice %39 {offsets = [88, 0], sizes = [8, 256], strides = [1, 1]} : vector<256x256xf32> to vector<8x256xf32>
        %53 = vector.extract_strided_slice %39 {offsets = [96, 0], sizes = [8, 256], strides = [1, 1]} : vector<256x256xf32> to vector<8x256xf32>
        %54 = vector.extract_strided_slice %39 {offsets = [104, 0], sizes = [8, 256], strides = [1, 1]} : vector<256x256xf32> to vector<8x256xf32>
        %55 = vector.extract_strided_slice %39 {offsets = [112, 0], sizes = [8, 256], strides = [1, 1]} : vector<256x256xf32> to vector<8x256xf32>
        %56 = vector.extract_strided_slice %39 {offsets = [120, 0], sizes = [8, 256], strides = [1, 1]} : vector<256x256xf32> to vector<8x256xf32>
        %57 = vector.extract_strided_slice %39 {offsets = [128, 0], sizes = [8, 256], strides = [1, 1]} : vector<256x256xf32> to vector<8x256xf32>
        %58 = vector.extract_strided_slice %39 {offsets = [136, 0], sizes = [8, 256], strides = [1, 1]} : vector<256x256xf32> to vector<8x256xf32>
        %59 = vector.extract_strided_slice %39 {offsets = [144, 0], sizes = [8, 256], strides = [1, 1]} : vector<256x256xf32> to vector<8x256xf32>
        %60 = vector.extract_strided_slice %39 {offsets = [152, 0], sizes = [8, 256], strides = [1, 1]} : vector<256x256xf32> to vector<8x256xf32>
        %61 = vector.extract_strided_slice %39 {offsets = [160, 0], sizes = [8, 256], strides = [1, 1]} : vector<256x256xf32> to vector<8x256xf32>
        %62 = vector.extract_strided_slice %39 {offsets = [168, 0], sizes = [8, 256], strides = [1, 1]} : vector<256x256xf32> to vector<8x256xf32>
        %63 = vector.extract_strided_slice %39 {offsets = [176, 0], sizes = [8, 256], strides = [1, 1]} : vector<256x256xf32> to vector<8x256xf32>
        %64 = vector.extract_strided_slice %39 {offsets = [184, 0], sizes = [8, 256], strides = [1, 1]} : vector<256x256xf32> to vector<8x256xf32>
        %65 = vector.extract_strided_slice %39 {offsets = [192, 0], sizes = [8, 256], strides = [1, 1]} : vector<256x256xf32> to vector<8x256xf32>
        %66 = vector.extract_strided_slice %39 {offsets = [200, 0], sizes = [8, 256], strides = [1, 1]} : vector<256x256xf32> to vector<8x256xf32>
        %67 = vector.extract_strided_slice %39 {offsets = [208, 0], sizes = [8, 256], strides = [1, 1]} : vector<256x256xf32> to vector<8x256xf32>
        %68 = vector.extract_strided_slice %39 {offsets = [216, 0], sizes = [8, 256], strides = [1, 1]} : vector<256x256xf32> to vector<8x256xf32>
        %69 = vector.extract_strided_slice %39 {offsets = [224, 0], sizes = [8, 256], strides = [1, 1]} : vector<256x256xf32> to vector<8x256xf32>
        %70 = vector.extract_strided_slice %39 {offsets = [232, 0], sizes = [8, 256], strides = [1, 1]} : vector<256x256xf32> to vector<8x256xf32>
        %71 = vector.extract_strided_slice %39 {offsets = [240, 0], sizes = [8, 256], strides = [1, 1]} : vector<256x256xf32> to vector<8x256xf32>
        %72 = vector.extract_strided_slice %39 {offsets = [248, 0], sizes = [8, 256], strides = [1, 1]} : vector<256x256xf32> to vector<8x256xf32>
        %73 = arith.addf %41, %42 : vector<8x256xf32>
        %74 = arith.addf %43, %44 : vector<8x256xf32>
        %75 = arith.addf %45, %46 : vector<8x256xf32>
        %76 = arith.addf %47, %48 : vector<8x256xf32>
        %77 = arith.addf %49, %50 : vector<8x256xf32>
        %78 = arith.addf %51, %52 : vector<8x256xf32>
        %79 = arith.addf %53, %54 : vector<8x256xf32>
        %80 = arith.addf %55, %56 : vector<8x256xf32>
        %81 = arith.addf %57, %58 : vector<8x256xf32>
        %82 = arith.addf %59, %60 : vector<8x256xf32>
        %83 = arith.addf %61, %62 : vector<8x256xf32>
        %84 = arith.addf %63, %64 : vector<8x256xf32>
        %85 = arith.addf %65, %66 : vector<8x256xf32>
        %86 = arith.addf %67, %68 : vector<8x256xf32>
        %87 = arith.addf %69, %70 : vector<8x256xf32>
        %88 = arith.addf %71, %72 : vector<8x256xf32>
        %89 = arith.addf %73, %74 : vector<8x256xf32>
        %90 = arith.addf %75, %76 : vector<8x256xf32>
        %91 = arith.addf %77, %78 : vector<8x256xf32>
        %92 = arith.addf %79, %80 : vector<8x256xf32>
        %93 = arith.addf %81, %82 : vector<8x256xf32>
        %94 = arith.addf %83, %84 : vector<8x256xf32>
        %95 = arith.addf %85, %86 : vector<8x256xf32>
        %96 = arith.addf %87, %88 : vector<8x256xf32>
        %97 = arith.addf %89, %90 : vector<8x256xf32>
        %98 = arith.addf %91, %92 : vector<8x256xf32>
        %99 = arith.addf %93, %94 : vector<8x256xf32>
        %100 = arith.addf %95, %96 : vector<8x256xf32>
        %101 = arith.addf %97, %98 : vector<8x256xf32>
        %102 = arith.addf %99, %100 : vector<8x256xf32>
        %103 = arith.addf %101, %102 : vector<8x256xf32>
        %104 = arith.addf %40, %103 : vector<8x256xf32>
        %c0_19 = arith.constant 0 : index
        %c0_20 = arith.constant 0 : index
        %105 = vector.load %arg7[%c0_19, %c0_20] : memref<8x256xf32, #tpu.memory_space<vmem>>, vector<8x256xf32>
        tpu.vector_store %arg7[%c0_19, %c0_20], %104 {strides = array<i32>} : memref<8x256xf32, #tpu.memory_space<vmem>>, vector<8x256xf32>,
      } else {
      }
      %true = arith.constant true
      %25 = arith.xori %22, %true : i1
      %26 = arith.extui %25 : i1 to i32
      %c0_i32_15 = arith.constant 0 : i32
      %27 = arith.cmpi ne, %26, %c0_i32_15 : i32
      scf.if %27 {
        %28 = arith.subf %20, %21 : vector<256x256xf32>
        %29 = math.absf %28 : vector<256x256xf32>
        %30 = tpu.reciprocal %21 : vector<256x256xf32> -> vector<256x256xf32>
        %31 = arith.mulf %29, %30 : vector<256x256xf32>
        %32 = vector.extract_strided_slice %31 {offsets = [0, 0], sizes = [8, 256], strides = [1, 1]} : vector<256x256xf32> to vector<8x256xf32>
        %33 = vector.extract_strided_slice %31 {offsets = [8, 0], sizes = [8, 256], strides = [1, 1]} : vector<256x256xf32> to vector<8x256xf32>
        %34 = vector.extract_strided_slice %31 {offsets = [16, 0], sizes = [8, 256], strides = [1, 1]} : vector<256x256xf32> to vector<8x256xf32>
        %35 = vector.extract_strided_slice %31 {offsets = [24, 0], sizes = [8, 256], strides = [1, 1]} : vector<256x256xf32> to vector<8x256xf32>
        %36 = vector.extract_strided_slice %31 {offsets = [32, 0], sizes = [8, 256], strides = [1, 1]} : vector<256x256xf32> to vector<8x256xf32>
        %37 = vector.extract_strided_slice %31 {offsets = [40, 0], sizes = [8, 256], strides = [1, 1]} : vector<256x256xf32> to vector<8x256xf32>
        %38 = vector.extract_strided_slice %31 {offsets = [48, 0], sizes = [8, 256], strides = [1, 1]} : vector<256x256xf32> to vector<8x256xf32>
        %39 = vector.extract_strided_slice %31 {offsets = [56, 0], sizes = [8, 256], strides = [1, 1]} : vector<256x256xf32> to vector<8x256xf32>
        %40 = vector.extract_strided_slice %31 {offsets = [64, 0], sizes = [8, 256], strides = [1, 1]} : vector<256x256xf32> to vector<8x256xf32>
        %41 = vector.extract_strided_slice %31 {offsets = [72, 0], sizes = [8, 256], strides = [1, 1]} : vector<256x256xf32> to vector<8x256xf32>
        %42 = vector.extract_strided_slice %31 {offsets = [80, 0], sizes = [8, 256], strides = [1, 1]} : vector<256x256xf32> to vector<8x256xf32>
        %43 = vector.extract_strided_slice %31 {offsets = [88, 0], sizes = [8, 256], strides = [1, 1]} : vector<256x256xf32> to vector<8x256xf32>
        %44 = vector.extract_strided_slice %31 {offsets = [96, 0], sizes = [8, 256], strides = [1, 1]} : vector<256x256xf32> to vector<8x256xf32>
        %45 = vector.extract_strided_slice %31 {offsets = [104, 0], sizes = [8, 256], strides = [1, 1]} : vector<256x256xf32> to vector<8x256xf32>
        %46 = vector.extract_strided_slice %31 {offsets = [112, 0], sizes = [8, 256], strides = [1, 1]} : vector<256x256xf32> to vector<8x256xf32>
        %47 = vector.extract_strided_slice %31 {offsets = [120, 0], sizes = [8, 256], strides = [1, 1]} : vector<256x256xf32> to vector<8x256xf32>
        %48 = vector.extract_strided_slice %31 {offsets = [128, 0], sizes = [8, 256], strides = [1, 1]} : vector<256x256xf32> to vector<8x256xf32>
        %49 = vector.extract_strided_slice %31 {offsets = [136, 0], sizes = [8, 256], strides = [1, 1]} : vector<256x256xf32> to vector<8x256xf32>
        %50 = vector.extract_strided_slice %31 {offsets = [144, 0], sizes = [8, 256], strides = [1, 1]} : vector<256x256xf32> to vector<8x256xf32>
        %51 = vector.extract_strided_slice %31 {offsets = [152, 0], sizes = [8, 256], strides = [1, 1]} : vector<256x256xf32> to vector<8x256xf32>
        %52 = vector.extract_strided_slice %31 {offsets = [160, 0], sizes = [8, 256], strides = [1, 1]} : vector<256x256xf32> to vector<8x256xf32>
        %53 = vector.extract_strided_slice %31 {offsets = [168, 0], sizes = [8, 256], strides = [1, 1]} : vector<256x256xf32> to vector<8x256xf32>
        %54 = vector.extract_strided_slice %31 {offsets = [176, 0], sizes = [8, 256], strides = [1, 1]} : vector<256x256xf32> to vector<8x256xf32>
        %55 = vector.extract_strided_slice %31 {offsets = [184, 0], sizes = [8, 256], strides = [1, 1]} : vector<256x256xf32> to vector<8x256xf32>
        %56 = vector.extract_strided_slice %31 {offsets = [192, 0], sizes = [8, 256], strides = [1, 1]} : vector<256x256xf32> to vector<8x256xf32>
        %57 = vector.extract_strided_slice %31 {offsets = [200, 0], sizes = [8, 256], strides = [1, 1]} : vector<256x256xf32> to vector<8x256xf32>
        %58 = vector.extract_strided_slice %31 {offsets = [208, 0], sizes = [8, 256], strides = [1, 1]} : vector<256x256xf32> to vector<8x256xf32>
        %59 = vector.extract_strided_slice %31 {offsets = [216, 0], sizes = [8, 256], strides = [1, 1]} : vector<256x256xf32> to vector<8x256xf32>
        %60 = vector.extract_strided_slice %31 {offsets = [224, 0], sizes = [8, 256], strides = [1, 1]} : vector<256x256xf32> to vector<8x256xf32>
        %61 = vector.extract_strided_slice %31 {offsets = [232, 0], sizes = [8, 256], strides = [1, 1]} : vector<256x256xf32> to vector<8x256xf32>
        %62 = vector.extract_strided_slice %31 {offsets = [240, 0], sizes = [8, 256], strides = [1, 1]} : vector<256x256xf32> to vector<8x256xf32>
        %63 = vector.extract_strided_slice %31 {offsets = [248, 0], sizes = [8, 256], strides = [1, 1]} : vector<256x256xf32> to vector<8x256xf32>
        %64 = arith.addf %32, %33 : vector<8x256xf32>
        %65 = arith.addf %34, %35 : vector<8x256xf32>
        %66 = arith.addf %36, %37 : vector<8x256xf32>
        %67 = arith.addf %38, %39 : vector<8x256xf32>
        %68 = arith.addf %40, %41 : vector<8x256xf32>
        %69 = arith.addf %42, %43 : vector<8x256xf32>
        %70 = arith.addf %44, %45 : vector<8x256xf32>
        %71 = arith.addf %46, %47 : vector<8x256xf32>
        %72 = arith.addf %48, %49 : vector<8x256xf32>
        %73 = arith.addf %50, %51 : vector<8x256xf32>
        %74 = arith.addf %52, %53 : vector<8x256xf32>
        %75 = arith.addf %54, %55 : vector<8x256xf32>
        %76 = arith.addf %56, %57 : vector<8x256xf32>
        %77 = arith.addf %58, %59 : vector<8x256xf32>
        %78 = arith.addf %60, %61 : vector<8x256xf32>
        %79 = arith.addf %62, %63 : vector<8x256xf32>
        %80 = arith.addf %64, %65 : vector<8x256xf32>
        %81 = arith.addf %66, %67 : vector<8x256xf32>
        %82 = arith.addf %68, %69 : vector<8x256xf32>
        %83 = arith.addf %70, %71 : vector<8x256xf32>
        %84 = arith.addf %72, %73 : vector<8x256xf32>
        %85 = arith.addf %74, %75 : vector<8x256xf32>
        %86 = arith.addf %76, %77 : vector<8x256xf32>
        %87 = arith.addf %78, %79 : vector<8x256xf32>
        %88 = arith.addf %80, %81 : vector<8x256xf32>
        %89 = arith.addf %82, %83 : vector<8x256xf32>
        %90 = arith.addf %84, %85 : vector<8x256xf32>
        %91 = arith.addf %86, %87 : vector<8x256xf32>
        %92 = arith.addf %88, %89 : vector<8x256xf32>
        %93 = arith.addf %90, %91 : vector<8x256xf32>
        %94 = arith.addf %92, %93 : vector<8x256xf32>
        %cst_16 = arith.constant 2.000000e+00 : f32
        %95 = vector.broadcast %cst_16 : f32 to vector<8x256xf32>
        %96 = arith.mulf %95, %94 : vector<8x256xf32>
        %c0_17 = arith.constant 0 : index
        %c0_18 = arith.constant 0 : index
        %97 = vector.load %arg7[%c0_17, %c0_18] : memref<8x256xf32, #tpu.memory_space<vmem>>, vector<8x256xf32>
        %98 = arith.addf %97, %96 : vector<8x256xf32>
        %c0_19 = arith.constant 0 : index
        %c0_20 = arith.constant 0 : index
        %99 = vector.load %arg7[%c0_19, %c0_20] : memref<8x256xf32, #tpu.memory_space<vmem>>, vector<8x256xf32>
        tpu.vector_store %arg7[%c0_19, %c0_20], %98 {strides = array<i32>} : memref<8x256xf32, #tpu.memory_space<vmem>>, vector<8x256xf32>,
      } else {
      }
    } else {
    }
    return
  }
  func.func @transform_0(%arg0: i32, %arg1: i32) -> (i32, i32) {
    %c0_i32 = arith.constant 0 : i32
    %c0_i32_0 = arith.constant 0 : i32
    return %arg0, %c0_i32 : i32, i32
  }
  func.func @transform_1(%arg0: i32, %arg1: i32) -> (i32, i32) {
    %0 = arith.addi %arg0, %arg1 : i32
    %c1_i32 = arith.constant 1 : i32
    %1 = arith.minsi %0, %c1_i32 : i32
    %c0_i32 = arith.constant 0 : i32
    %c0_i32_0 = arith.constant 0 : i32
    return %c0_i32, %1 : i32, i32
  }
  func.func @transform_2(%arg0: i32, %arg1: i32) -> (i32, i32) {
    %c0_i32 = arith.constant 0 : i32
    %c0_i32_0 = arith.constant 0 : i32
    return %arg0, %c0_i32 : i32, i32
  }
  func.func @transform_3(%arg0: i32, %arg1: i32) -> (i32, i32) {
    %0 = arith.addi %arg0, %arg1 : i32
    %c1_i32 = arith.constant 1 : i32
    %1 = arith.minsi %0, %c1_i32 : i32
    %c0_i32 = arith.constant 0 : i32
    %c0_i32_0 = arith.constant 0 : i32
    return %1, %c0_i32 : i32, i32
  }
  func.func @transform_4(%arg0: i32, %arg1: i32) -> (i32, i32) {
    %0 = arith.addi %arg0, %arg1 : i32
    %c1_i32 = arith.constant 1 : i32
    %1 = arith.minsi %0, %c1_i32 : i32
    %c0_i32 = arith.constant 0 : i32
    return %arg0, %1 : i32, i32
  }
  func.func @transform_5(%arg0: i32, %arg1: i32) -> (i32, i32) {
    %c0_i32 = arith.constant 0 : i32
    %c0_i32_0 = arith.constant 0 : i32
    return %arg0, %c0_i32 : i32, i32
  }
}

</mosaic_0001>

<llo_original>
// kernel: tpu_custom_call.1
$region0: #{tpu_custom_call.1}
  #allocation0 [shape = 'u32[]', space=smem, size = 0x4, offset = 0x4, fixed_abs, tag = 'smem constant byte address 0x4 - core index']
  #allocation1 [shape = 'u32[144,128]{1,0:T(1,128)}', space=vmem, size = 0x12000, scoped, tag = 'internal scratch']
  %s0 = inlined_call_operand.vmem [shape: f32[512,1], index: 0, kind: input, shape index: {}]
  %s1 = inlined_call_operand.vmem [shape: f32[1,512], index: 1, kind: input, shape index: {}]
  %s2 = inlined_call_operand.vmem [shape: f32[512,32], index: 2, kind: input, shape index: {}]
  %s3 = inlined_call_operand.vmem [shape: f32[512,32], index: 3, kind: input, shape index: {}]
  %s4 = inlined_call_operand.hbm [shape: f32[512,512], index: 4, kind: input, shape index: {}]
  %s5 = inlined_call_operand.hbm [shape: f32[16,256], index: 5, kind: output, shape index: {}]
  %s6 = sld [smem:[#allocation0]]
  $region73: #{tpu_custom_call.1} parent=0
    _
  %s8 = ssub.s32 1, %s6
  %s9 = scalar_select 0, %s8, %s6
  $region1: #{tpu_custom_call.1} parent=0
    #allocation2 [shape = 'u8[524288]{0}', space=vmem, size = 0x80000, scoped, tag = 'input window, operand 4']
    #allocation3 [shape = 's32[2]{0}', space=sflag, size = 0x8, scoped, tag = 'scoped memory for tpu_custom_call.1']
    #allocation4 [shape = 's32[2]{0}', space=sflag, size = 0x8, scoped, tag = 'scoped memory for tpu_custom_call.1']
    #allocation5 [shape = 'u8[16384]{0}', space=vmem, size = 0x4000, scoped, tag = 'output window, operand 0']
    %10 = vsyncpa [#allocation3], 0
    %s11 = scalar_lea.sflag [#allocation3], 1
    %12 = vsyncpa %s11, 0
    %13 = vsyncpa [#allocation4], 0
    %s14 = scalar_lea.sflag [#allocation4], 1
    %15 = vsyncpa %s14, 0
    loop: start=0, step=1, limit=6
    $region2: #{tpu_custom_call.1} parent=1 // loop_pre_header
      _
    $region3: #{tpu_custom_call.1} parent=1 // loop_header
      %s17 = sphi 0, %s21
      %p18 = scmp.ge.s32.totalorder %s17, 6
      %s24 = sphi 0, %s36
      %s25 = sphi 0, %s32
      %s26 = sphi 0, %s24
      %s27 = sphi 0, %s25
      %s28 = sphi 0, %s26
      %s29 = sphi 0, %s27
      %s39 = sphi 0, %s41
      %s42 = sphi 0, %s39
      %s43 = sphi 0, %s42
      %s59 = sphi 0, %s43
      %s71 = sphi 0, %s73
      %s74 = sphi 0, %s71
      %s75 = sphi 0, %s74
      %s91 = sphi 0, %s75
      %s97 = sphi 0, %s99
      %s100 = sphi 0, %s97
      %s101 = sphi 0, %s100
      %s117 = sphi 0, %s101
      %s129 = sphi 0, %s131
      %s132 = sphi 0, %s129
      %s133 = sphi 0, %s132
      %s149 = sphi 0, %s133
      %s163 = sphi 0, %s165
      %s166 = sphi 0, %s163
      %s167 = sphi 0, %s166
      %s183 = sphi 0, %s167
      %s189 = sphi 0, %s191
      %s192 = sphi 0, %s189
      %s193 = sphi 0, %s192
      %s209 = sphi 0, %s193
    $region4: #{tpu_custom_call.1} parent=1 // loop_header_branch
      %20 = sbr.rel (%p18) target = $region8
    $region5: #{tpu_custom_call.1} parent=1 // loop_body
      %s22 = ssub.s32 %s17, 1
      %s23 = ssub.s32 %s17, 2
      %s30 = sadd.s32 1, %s25
      %p31 = scmp.ge.s32.totalorder %s30, 2
      %s32 = scalar_select %p31, 0, %s30
      %s33 = sadd.s32 1, %s24
      %s34 = scalar_select %p31, %s33, %s24
      %p35 = scmp.ge.s32.totalorder %s34, 2
      %s36 = scalar_select %p35, 0, %s34
      %s37 = ssub.s32 %s24, %s36
      %p38 = scmp.eq.s32.totalorder %s37, 0
      %s40 = sadd.s32 %s39, 1
      %s41 = scalar_select %p38, %s39, %s40
      %p44 = pneg %p38
      %p45 = scmp.eq.s32.totalorder %s17, 3
      %p46 = por %p44, %p45
      %p47 = scmp.ne.s32.totalorder %s39, %s42
      %p48 = scmp.eq.s32.totalorder %s17, 0
      %p49 = por %p47, %p48
      %p50 = scmp.ne.s32.totalorder %s39, %s42
      %p51 = scmp.eq.s32.totalorder %s22, 3
      %p52 = por %p50, %p51
      %p53 = scmp.ne.s32.totalorder %s42, %s43
      %p54 = scmp.eq.s32.totalorder %s22, 0
      %p55 = por %p53, %p54
      %p56 = scmp.ne.s32.totalorder %s42, %s43
      %p57 = scmp.eq.s32.totalorder %s23, 3
      %p58 = por %p56, %p57
      %p60 = scmp.ne.s32.totalorder %s43, %s59
      %p61 = scmp.eq.s32.totalorder %s23, 0
      %p62 = por %p60, %p61
      %s63 = sadd.s32 %s24, %s25
      %p64 = scmp.lt.s32.totalorder %s63, 1
      %s65 = scalar_select %p64, %s63, 1
      %s66 = sadd.s32 %s36, %s32
      %p67 = scmp.lt.s32.totalorder %s66, 1
      %s68 = scalar_select %p67, %s66, 1
      %s69 = ssub.s32 %s65, %s68
      %p70 = scmp.eq.s32.totalorder %s69, 0
      %s72 = sadd.s32 %s71, 1
      %s73 = scalar_select %p70, %s71, %s72
      %p76 = pneg %p70
      %p77 = scmp.eq.s32.totalorder %s17, 3
      %p78 = por %p76, %p77
      %p79 = scmp.ne.s32.totalorder %s71, %s74
      %p80 = scmp.eq.s32.totalorder %s17, 0
      %p81 = por %p79, %p80
      %p82 = scmp.ne.s32.totalorder %s71, %s74
      %p83 = scmp.eq.s32.totalorder %s22, 3
      %p84 = por %p82, %p83
      %p85 = scmp.ne.s32.totalorder %s74, %s75
      %p86 = scmp.eq.s32.totalorder %s22, 0
      %p87 = por %p85, %p86
      %p88 = scmp.ne.s32.totalorder %s74, %s75
      %p89 = scmp.eq.s32.totalorder %s23, 3
      %p90 = por %p88, %p89
      %p92 = scmp.ne.s32.totalorder %s75, %s91
      %p93 = scmp.eq.s32.totalorder %s23, 0
      %p94 = por %p92, %p93
      %s95 = ssub.s32 %s24, %s36
      %p96 = scmp.eq.s32.totalorder %s95, 0
      %s98 = sadd.s32 %s97, 1
      %s99 = scalar_select %p96, %s97, %s98
      %p102 = pneg %p96
      %p103 = scmp.eq.s32.totalorder %s17, 3
      %p104 = por %p102, %p103
      %p105 = scmp.ne.s32.totalorder %s97, %s100
      %p106 = scmp.eq.s32.totalorder %s17, 0
      %p107 = por %p105, %p106
      %p108 = scmp.ne.s32.totalorder %s97, %s100
      %p109 = scmp.eq.s32.totalorder %s22, 3
      %p110 = por %p108, %p109
      %p111 = scmp.ne.s32.totalorder %s100, %s101
      %p112 = scmp.eq.s32.totalorder %s22, 0
      %p113 = por %p111, %p112
      %p114 = scmp.ne.s32.totalorder %s100, %s101
      %p115 = scmp.eq.s32.totalorder %s23, 3
      %p116 = por %p114, %p115
      %p118 = scmp.ne.s32.totalorder %s101, %s117
      %p119 = scmp.eq.s32.totalorder %s23, 0
      %p120 = por %p118, %p119
      %s121 = sadd.s32 %s24, %s25
      %p122 = scmp.lt.s32.totalorder %s121, 1
      %s123 = scalar_select %p122, %s121, 1
      %s124 = sadd.s32 %s36, %s32
      %p125 = scmp.lt.s32.totalorder %s124, 1
      %s126 = scalar_select %p125, %s124, 1
      %s127 = ssub.s32 %s123, %s126
      %p128 = scmp.eq.s32.totalorder %s127, 0
      %s130 = sadd.s32 %s129, 1
      %s131 = scalar_select %p128, %s129, %s130
      %p134 = pneg %p128
      %p135 = scmp.eq.s32.totalorder %s17, 3
      %p136 = por %p134, %p135
      %p137 = scmp.ne.s32.totalorder %s129, %s132
      %p138 = scmp.eq.s32.totalorder %s17, 0
      %p139 = por %p137, %p138
      %p140 = scmp.ne.s32.totalorder %s129, %s132
      %p141 = scmp.eq.s32.totalorder %s22, 3
      %p142 = por %p140, %p141
      %p143 = scmp.ne.s32.totalorder %s132, %s133
      %p144 = scmp.eq.s32.totalorder %s22, 0
      %p145 = por %p143, %p144
      %p146 = scmp.ne.s32.totalorder %s132, %s133
      %p147 = scmp.eq.s32.totalorder %s23, 3
      %p148 = por %p146, %p147
      %p150 = scmp.ne.s32.totalorder %s133, %s149
      %p151 = scmp.eq.s32.totalorder %s23, 0
      %p152 = por %p150, %p151
      %s153 = sadd.s32 %s24, %s25
      %p154 = scmp.lt.s32.totalorder %s153, 1
      %s155 = scalar_select %p154, %s153, 1
      %s156 = sadd.s32 %s36, %s32
      %p157 = scmp.lt.s32.totalorder %s156, 1
      %s158 = scalar_select %p157, %s156, 1
      %s159 = ssub.s32 %s24, %s36
      %s160 = ssub.s32 %s155, %s158
      %s161 = sor.u32 %s159, %s160
      %p162 = scmp.eq.s32.totalorder %s161, 0
      %s164 = sadd.s32 %s163, 1
      %s165 = scalar_select %p162, %s163, %s164
      %p168 = pneg %p162
      %p169 = scmp.eq.s32.totalorder %s17, 3
      %p170 = por %p168, %p169
      %p171 = scmp.ne.s32.totalorder %s163, %s166
      %p172 = scmp.eq.s32.totalorder %s17, 0
      %p173 = por %p171, %p172
      %p174 = scmp.ne.s32.totalorder %s163, %s166
      %p175 = scmp.eq.s32.totalorder %s22, 3
      %p176 = por %p174, %p175
      %p177 = scmp.ne.s32.totalorder %s166, %s167
      %p178 = scmp.eq.s32.totalorder %s22, 0
      %p179 = por %p177, %p178
      %p180 = scmp.ne.s32.totalorder %s166, %s167
      %p181 = scmp.eq.s32.totalorder %s23, 3
      %p182 = por %p180, %p181
      %p184 = scmp.ne.s32.totalorder %s167, %s183
      %p185 = scmp.eq.s32.totalorder %s23, 0
      %p186 = por %p184, %p185
      %s187 = ssub.s32 %s24, %s36
      %p188 = scmp.eq.s32.totalorder %s187, 0
      %s190 = sadd.s32 %s189, 1
      %s191 = scalar_select %p188, %s189, %s190
      %p194 = pneg %p188
      %p195 = scmp.eq.s32.totalorder %s17, 3
      %p196 = por %p194, %p195
      %p197 = scmp.ne.s32.totalorder %s189, %s192
      %p198 = scmp.eq.s32.totalorder %s17, 0
      %p199 = por %p197, %p198
      %p200 = scmp.ne.s32.totalorder %s189, %s192
      %p201 = scmp.eq.s32.totalorder %s22, 3
      %p202 = por %p200, %p201
      %p203 = scmp.ne.s32.totalorder %s192, %s193
      %p204 = scmp.eq.s32.totalorder %s22, 0
      %p205 = por %p203, %p204
      %p206 = scmp.ne.s32.totalorder %s192, %s193
      %p207 = scmp.eq.s32.totalorder %s23, 3
      %p208 = por %p206, %p207
      %p210 = scmp.ne.s32.totalorder %s193, %s209
      %p211 = scmp.eq.s32.totalorder %s23, 0
      %p212 = por %p210, %p211
      %p213 = scmp.le.s32.totalorder 1, %s17
      %p214 = scmp.lt.s32.totalorder %s17, 5
      %p215 = pnand %p213, %p214
      %p216 = pneg %p215
      // Predicated region
      $region9: #{tpu_custom_call.1} parent=5 // pred_check
        _
      $region10: #{tpu_custom_call.1} parent=5 // pred_check_branch
        %218 = sbr.rel (%p215) target = $region12
      $region11: #{tpu_custom_call.1} parent=5 // pred_region
        %s219 = ssub.s32 %s17, 1
      $region12: #{tpu_custom_call.1} parent=5 // pred_fallthru
        _
      %p220 = scmp.lt.s32.totalorder %s17, 4
      // Predicated region
      $region13: #{tpu_custom_call.1} parent=5 // pred_check
        %p221 = pneg %p220
      $region14: #{tpu_custom_call.1} parent=5 // pred_check_branch
        %223 = sbr.rel (%p221) target = $region16
      $region15: #{tpu_custom_call.1} parent=5 // pred_region
        // Predicated region
        $region17: #{tpu_custom_call.1} parent=15 // pred_check
          %p224 = pneg %p49
        $region18: #{tpu_custom_call.1} parent=15 // pred_check_branch
          %226 = sbr.rel (%p224) target = $region20
        $region19: #{tpu_custom_call.1} parent=15 // pred_region
          %s227 = smul.u32 32, %s24
          %p228 = scmp.lt.s32.totalorder %s227, 63
          %s229 = scalar_select %p228, %s227, 63
          %s230 = smul.addr %s229, 8
          %s231 = scalar_lea.vmem %s0, %s230
          %s232 = smul.u32 32, %s24
        $region20: #{tpu_custom_call.1} parent=15 // pred_fallthru
          _
        // Predicated region
        $region21: #{tpu_custom_call.1} parent=15 // pred_check
          %p233 = pneg %p81
        $region22: #{tpu_custom_call.1} parent=15 // pred_check_branch
          %235 = sbr.rel (%p233) target = $region24
        $region23: #{tpu_custom_call.1} parent=15 // pred_region
          %s236 = sadd.s32 %s24, %s25
          %p237 = scmp.lt.s32.totalorder %s236, 1
          %s238 = scalar_select %p237, %s236, 1
          %s239 = smul.u32 2, %s238
          %p240 = scmp.lt.s32.totalorder %s239, 3
          %s241 = scalar_select %p240, %s239, 3
          %s242 = scalar_lea.vmem %s1, %s241
          %s243 = sadd.s32 %s24, %s25
          %p244 = scmp.lt.s32.totalorder %s243, 1
          %s245 = scalar_select %p244, %s243, 1
          %s246 = smul.u32 2, %s245
        $region24: #{tpu_custom_call.1} parent=15 // pred_fallthru
          _
        // Predicated region
        $region25: #{tpu_custom_call.1} parent=15 // pred_check
          %p247 = pneg %p107
        $region26: #{tpu_custom_call.1} parent=15 // pred_check_branch
          %249 = sbr.rel (%p247) target = $region28
        $region27: #{tpu_custom_call.1} parent=15 // pred_region
          %s250 = smul.u32 32, %s24
          %p251 = scmp.lt.s32.totalorder %s250, 63
          %s252 = scalar_select %p251, %s250, 63
          %s253 = smul.addr %s252, 8
          %s254 = scalar_lea.vmem %s2, %s253
          %s255 = smul.u32 32, %s24
        $region28: #{tpu_custom_call.1} parent=15 // pred_fallthru
          _
        // Predicated region
        $region29: #{tpu_custom_call.1} parent=15 // pred_check
          %p256 = pneg %p139
        $region30: #{tpu_custom_call.1} parent=15 // pred_check_branch
          %258 = sbr.rel (%p256) target = $region32
        $region31: #{tpu_custom_call.1} parent=15 // pred_region
          %s259 = sadd.s32 %s24, %s25
          %p260 = scmp.lt.s32.totalorder %s259, 1
          %s261 = scalar_select %p260, %s259, 1
          %s262 = smul.u32 32, %s261
          %p263 = scmp.lt.s32.totalorder %s262, 63
          %s264 = scalar_select %p263, %s262, 63
          %s265 = smul.addr %s264, 8
          %s266 = scalar_lea.vmem %s3, %s265
          %s267 = sadd.s32 %s24, %s25
          %p268 = scmp.lt.s32.totalorder %s267, 1
          %s269 = scalar_select %p268, %s267, 1
          %s270 = smul.u32 32, %s269
        $region32: #{tpu_custom_call.1} parent=15 // pred_fallthru
          _
        // Predicated region
        $region33: #{tpu_custom_call.1} parent=15 // pred_check
          %p271 = pneg %p173
        $region34: #{tpu_custom_call.1} parent=15 // pred_check_branch
          %273 = sbr.rel (%p271) target = $region36
        $region35: #{tpu_custom_call.1} parent=15 // pred_region
          %s274 = sand.u32 %s163, 1
          %s275 = scalar_lea.sflag [#allocation3], %s274
          %s276 = sand.u32 %s163, 1
          %s277 = smul.addr %s276, 512
          %s278 = scalar_lea.vmem [#allocation2], %s277
          %s279 = sadd.s32 %s24, %s25
          %p280 = scmp.lt.s32.totalorder %s279, 1
          %s281 = scalar_select %p280, %s279, 1
          %s282 = smul.u32 32, %s24
          %s283 = smul.u32 2, %s281
          %s285 = ssub.s32 8192, 8192
          %286 = vsyncadd %s275, %s285
          %s287 = smul.addr %s282, 4
          %s288 = sadd.s32 %s283, %s287
          %s289 = smul.addr %s288, 128
          %s290 = scalar_lea.hbm %s4, %s289
          %s291 = sshll.u32 %s278, 4
          %s292 = int_to_ptr.vmem [resolvable:$true] %s291
          %297 = dma.hbm_to_vmem [thread:$0]  %s290, 8192, %s292, %s275, 512, 256, 16
        $region36: #{tpu_custom_call.1} parent=15 // pred_fallthru
          _
      $region16: #{tpu_custom_call.1} parent=5 // pred_fallthru
        _
      %p298 = scmp.le.s32.totalorder 1, %s17
      %p299 = scmp.lt.s32.totalorder %s17, 5
      %p300 = pnand %p298, %p299
      %p301 = pneg %p300
      // Predicated region
      $region37: #{tpu_custom_call.1} parent=5 // pred_check
        _
      $region38: #{tpu_custom_call.1} parent=5 // pred_check_branch
        %303 = sbr.rel (%p300) target = $region40
      $region39: #{tpu_custom_call.1} parent=5 // pred_region
        %s304 = ssub.s32 %s17, 1
        %s305 = sand.u32 %s166, 1
        %s306 = scalar_lea.sflag [#allocation3], %s305
        %s307 = sand.u32 %s166, 1
        %s308 = smul.addr %s307, 512
        %s309 = scalar_lea.vmem [#allocation2], %s308
        // Predicated region
        $region41: #{tpu_custom_call.1} parent=39 // pred_check
          %p310 = pneg %p179
        $region42: #{tpu_custom_call.1} parent=39 // pred_check_branch
          %312 = sbr.rel (%p310) target = $region44
        $region43: #{tpu_custom_call.1} parent=39 // pred_region
          %313 = dma.done %s306, 8192
        $region44: #{tpu_custom_call.1} parent=39 // pred_fallthru
          _
        %s314 = smul.u32 32, %s26
        %p315 = scmp.lt.s32.totalorder %s314, 63
        %s316 = scalar_select %p315, %s314, 63
        %s317 = smul.addr %s316, 8
        %s318 = scalar_lea.vmem %s0, %s317
        %p319 = pneg %p55
        %p320 = pneg %p52
        %s321 = sadd.s32 %s26, %s27
        %p322 = scmp.lt.s32.totalorder %s321, 1
        %s323 = scalar_select %p322, %s321, 1
        %s324 = smul.u32 2, %s323
        %p325 = scmp.lt.s32.totalorder %s324, 3
        %s326 = scalar_select %p325, %s324, 3
        %s327 = scalar_lea.vmem %s1, %s326
        %p328 = pneg %p87
        %p329 = pneg %p84
        %s330 = smul.u32 32, %s26
        %p331 = scmp.lt.s32.totalorder %s330, 63
        %s332 = scalar_select %p331, %s330, 63
        %s333 = smul.addr %s332, 8
        %s334 = scalar_lea.vmem %s2, %s333
        %p335 = pneg %p113
        %p336 = pneg %p110
        %s337 = sadd.s32 %s26, %s27
        %p338 = scmp.lt.s32.totalorder %s337, 1
        %s339 = scalar_select %p338, %s337, 1
        %s340 = smul.u32 32, %s339
        %p341 = scmp.lt.s32.totalorder %s340, 63
        %s342 = scalar_select %p341, %s340, 63
        %s343 = smul.addr %s342, 8
        %s344 = scalar_lea.vmem %s3, %s343
        %p345 = pneg %p145
        %p346 = pneg %p142
        %s347 = sand.u32 %s166, 1
        %s348 = scalar_lea.sflag [#allocation3], %s347
        %s349 = sand.u32 %s166, 1
        %s350 = smul.addr %s349, 512
        %s351 = scalar_lea.vmem [#allocation2], %s350
        %p352 = pneg %p179
        %p353 = pneg %p176
        %p354 = pneg %p205
        %p355 = pneg %p202
        %s356 = sand.u32 %s192, 1
        %s357 = scalar_lea.sflag [#allocation4], %s356
        %s358 = sand.u32 %s192, 1
        %s359 = smul.addr %s358, 16
        %s360 = scalar_lea.vmem [#allocation5], %s359
        %s361 = smul.u32 32, %s26
        %p362 = scmp.lt.s32.totalorder %s361, 63
        %s363 = scalar_select %p362, %s361, 63
        %s364 = smul.addr %s363, 8
        %s365 = scalar_lea.vmem %s0, %s364
        %s366 = smul.u32 32, %s26
        %s367 = sadd.s32 %s26, %s27
        %p368 = scmp.lt.s32.totalorder %s367, 1
        %s369 = scalar_select %p368, %s367, 1
        %s370 = smul.u32 2, %s369
        %p371 = scmp.lt.s32.totalorder %s370, 3
        %s372 = scalar_select %p371, %s370, 3
        %s373 = scalar_lea.vmem %s1, %s372
        %s374 = sadd.s32 %s26, %s27
        %p375 = scmp.lt.s32.totalorder %s374, 1
        %s376 = scalar_select %p375, %s374, 1
        %s377 = smul.u32 2, %s376
        %s378 = smul.u32 32, %s26
        %p379 = scmp.lt.s32.totalorder %s378, 63
        %s380 = scalar_select %p379, %s378, 63
        %s381 = smul.addr %s380, 8
        %s382 = scalar_lea.vmem %s2, %s381
        %s383 = smul.u32 32, %s26
        %s384 = sadd.s32 %s26, %s27
        %p385 = scmp.lt.s32.totalorder %s384, 1
        %s386 = scalar_select %p385, %s384, 1
        %s387 = smul.u32 32, %s386
        %p388 = scmp.lt.s32.totalorder %s387, 63
        %s389 = scalar_select %p388, %s387, 63
        %s390 = smul.addr %s389, 8
        %s391 = scalar_lea.vmem %s3, %s390
        %s392 = sadd.s32 %s26, %s27
        %p393 = scmp.lt.s32.totalorder %s392, 1
        %s394 = scalar_select %p393, %s392, 1
        %s395 = smul.u32 32, %s394
        %s396 = sadd.s32 %s26, %s27
        %p397 = scmp.lt.s32.totalorder %s396, 1
        %s398 = scalar_select %p397, %s396, 1
        %s399 = smul.u32 32, %s26
        %s400 = smul.u32 2, %s398
        %p401 = scmp.eq.s32.totalorder %s27, 0
        // Predicated region
        $region45: #{tpu_custom_call.1} parent=39 // pred_check
          %p402 = pneg %p401
        $region46: #{tpu_custom_call.1} parent=39 // pred_check_branch
          %404 = sbr.rel (%p402) target = $region48
        $region47: #{tpu_custom_call.1} parent=39 // pred_region
          %405 = vst [vmem:[%s360] sm:$0xff] 0.0
          %406 = vst [vmem:[%s360 + $0x8] sm:$0xff] 0.0
        $region48: #{tpu_custom_call.1} parent=39 // pred_fallthru
          _
        %s407 = sadd.s32 %s26, %s27
        %p408 = scmp.lt.s32.totalorder %s407, 2
        // Predicated region
        $region49: #{tpu_custom_call.1} parent=39 // pred_check
          %p409 = pneg %p408
        $region50: #{tpu_custom_call.1} parent=39 // pred_check_branch
          %411 = sbr.rel (%p409) target = $region52
        $region51: #{tpu_custom_call.1} parent=39 // pred_region
          %v412 = vld [vmem:[%s382] sm:$0xff]
          %v413 = vld [vmem:[%s382 + $0x8] sm:$0xff]
          %v414 = vld [vmem:[%s382 + $0x10] sm:$0xff]
          %v415 = vld [vmem:[%s382 + $0x18] sm:$0xff]
          %v416 = vld [vmem:[%s382 + $0x20] sm:$0xff]
          %v417 = vld [vmem:[%s382 + $0x28] sm:$0xff]
          %v418 = vld [vmem:[%s382 + $0x30] sm:$0xff]
          %v419 = vld [vmem:[%s382 + $0x38] sm:$0xff]
          %v420 = vld [vmem:[%s382 + $0x40] sm:$0xff]
          %v421 = vld [vmem:[%s382 + $0x48] sm:$0xff]
          %v422 = vld [vmem:[%s382 + $0x50] sm:$0xff]
          %v423 = vld [vmem:[%s382 + $0x58] sm:$0xff]
          %v424 = vld [vmem:[%s382 + $0x60] sm:$0xff]
          %v425 = vld [vmem:[%s382 + $0x68] sm:$0xff]
          %v426 = vld [vmem:[%s382 + $0x70] sm:$0xff]
          %v427 = vld [vmem:[%s382 + $0x78] sm:$0xff]
          %v428 = vld [vmem:[%s382 + $0x80] sm:$0xff]
          %v429 = vld [vmem:[%s382 + $0x88] sm:$0xff]
          %v430 = vld [vmem:[%s382 + $0x90] sm:$0xff]
          %v431 = vld [vmem:[%s382 + $0x98] sm:$0xff]
          %v432 = vld [vmem:[%s382 + $0xa0] sm:$0xff]
          %v433 = vld [vmem:[%s382 + $0xa8] sm:$0xff]
          %v434 = vld [vmem:[%s382 + $0xb0] sm:$0xff]
          %v435 = vld [vmem:[%s382 + $0xb8] sm:$0xff]
          %v436 = vld [vmem:[%s382 + $0xc0] sm:$0xff]
          %v437 = vld [vmem:[%s382 + $0xc8] sm:$0xff]
          %v438 = vld [vmem:[%s382 + $0xd0] sm:$0xff]
          %v439 = vld [vmem:[%s382 + $0xd8] sm:$0xff]
          %v440 = vld [vmem:[%s382 + $0xe0] sm:$0xff]
          %v441 = vld [vmem:[%s382 + $0xe8] sm:$0xff]
          %v442 = vld [vmem:[%s382 + $0xf0] sm:$0xff]
          %v443 = vld [vmem:[%s382 + $0xf8] sm:$0xff]
          %v444 = vld [vmem:[%s391] sm:$0xff]
          %v445 = vld [vmem:[%s391 + $0x8] sm:$0xff]
          %v446 = vld [vmem:[%s391 + $0x10] sm:$0xff]
          %v447 = vld [vmem:[%s391 + $0x18] sm:$0xff]
          %v448 = vld [vmem:[%s391 + $0x20] sm:$0xff]
          %v449 = vld [vmem:[%s391 + $0x28] sm:$0xff]
          %v450 = vld [vmem:[%s391 + $0x30] sm:$0xff]
          %v451 = vld [vmem:[%s391 + $0x38] sm:$0xff]
          %v452 = vld [vmem:[%s391 + $0x40] sm:$0xff]
          %v453 = vld [vmem:[%s391 + $0x48] sm:$0xff]
          %v454 = vld [vmem:[%s391 + $0x50] sm:$0xff]
          %v455 = vld [vmem:[%s391 + $0x58] sm:$0xff]
          %v456 = vld [vmem:[%s391 + $0x60] sm:$0xff]
          %v457 = vld [vmem:[%s391 + $0x68] sm:$0xff]
          %v458 = vld [vmem:[%s391 + $0x70] sm:$0xff]
          %v459 = vld [vmem:[%s391 + $0x78] sm:$0xff]
          %v460 = vld [vmem:[%s391 + $0x80] sm:$0xff]
          %v461 = vld [vmem:[%s391 + $0x88] sm:$0xff]
          %v462 = vld [vmem:[%s391 + $0x90] sm:$0xff]
          %v463 = vld [vmem:[%s391 + $0x98] sm:$0xff]
          %v464 = vld [vmem:[%s391 + $0xa0] sm:$0xff]
          %v465 = vld [vmem:[%s391 + $0xa8] sm:$0xff]
          %v466 = vld [vmem:[%s391 + $0xb0] sm:$0xff]
          %v467 = vld [vmem:[%s391 + $0xb8] sm:$0xff]
          %v468 = vld [vmem:[%s391 + $0xc0] sm:$0xff]
          %v469 = vld [vmem:[%s391 + $0xc8] sm:$0xff]
          %v470 = vld [vmem:[%s391 + $0xd0] sm:$0xff]
          %v471 = vld [vmem:[%s391 + $0xd8] sm:$0xff]
          %v472 = vld [vmem:[%s391 + $0xe0] sm:$0xff]
          %v473 = vld [vmem:[%s391 + $0xe8] sm:$0xff]
          %v474 = vld [vmem:[%s391 + $0xf0] sm:$0xff]
          %v475 = vld [vmem:[%s391 + $0xf8] sm:$0xff]
          %vm476 = vcmask 261120
          %v478 = vsel %vm476, %v412, 0
          %v481 = vsel %vm476, %v413, 0
          %v484 = vsel %vm476, %v414, 0
          %v487 = vsel %vm476, %v415, 0
          %v490 = vsel %vm476, %v416, 0
          %v493 = vsel %vm476, %v417, 0
          %v496 = vsel %vm476, %v418, 0
          %v499 = vsel %vm476, %v419, 0
          %v502 = vsel %vm476, %v420, 0
          %v505 = vsel %vm476, %v421, 0
          %v508 = vsel %vm476, %v422, 0
          %v511 = vsel %vm476, %v423, 0
          %v514 = vsel %vm476, %v424, 0
          %v517 = vsel %vm476, %v425, 0
          %v520 = vsel %vm476, %v426, 0
          %v523 = vsel %vm476, %v427, 0
          %v526 = vsel %vm476, %v428, 0
          %v529 = vsel %vm476, %v429, 0
          %v532 = vsel %vm476, %v430, 0
          %v535 = vsel %vm476, %v431, 0
          %v538 = vsel %vm476, %v432, 0
          %v541 = vsel %vm476, %v433, 0
          %v544 = vsel %vm476, %v434, 0
          %v547 = vsel %vm476, %v435, 0
          %v550 = vsel %vm476, %v436, 0
          %v553 = vsel %vm476, %v437, 0
          %v556 = vsel %vm476, %v438, 0
          %v559 = vsel %vm476, %v439, 0
          %v562 = vsel %vm476, %v440, 0
          %v565 = vsel %vm476, %v441, 0
          %v568 = vsel %vm476, %v442, 0
          %v571 = vsel %vm476, %v443, 0
          %v574 = vsel %vm476, %v444, 0
          %v577 = vsel %vm476, %v445, 0
          %v580 = vsel %vm476, %v446, 0
          %v583 = vsel %vm476, %v447, 0
          %v586 = vsel %vm476, %v448, 0
          %v589 = vsel %vm476, %v449, 0
          %v592 = vsel %vm476, %v450, 0
          %v595 = vsel %vm476, %v451, 0
          %v598 = vsel %vm476, %v452, 0
          %v601 = vsel %vm476, %v453, 0
          %v604 = vsel %vm476, %v454, 0
          %v607 = vsel %vm476, %v455, 0
          %v610 = vsel %vm476, %v456, 0
          %v613 = vsel %vm476, %v457, 0
          %v616 = vsel %vm476, %v458, 0
          %v619 = vsel %vm476, %v459, 0
          %v622 = vsel %vm476, %v460, 0
          %v625 = vsel %vm476, %v461, 0
          %v628 = vsel %vm476, %v462, 0
          %v631 = vsel %vm476, %v463, 0
          %v634 = vsel %vm476, %v464, 0
          %v637 = vsel %vm476, %v465, 0
          %v640 = vsel %vm476, %v466, 0
          %v643 = vsel %vm476, %v467, 0
          %v646 = vsel %vm476, %v468, 0
          %v649 = vsel %vm476, %v469, 0
          %v652 = vsel %vm476, %v470, 0
          %v655 = vsel %vm476, %v471, 0
          %v658 = vsel %vm476, %v472, 0
          %v661 = vsel %vm476, %v473, 0
          %v664 = vsel %vm476, %v474, 0
          %v667 = vsel %vm476, %v475, 0
          %669 = vmatprep.subr.mxu0 0.0
          %v670 = vand.u32 %v619, 4294901760
          %671 = vmatpush1.xpose.msra.mxu0 %v670
          %672 = vmatprep.subr.mxu0 0.0
          %v673 = vand.u32 %v616, 4294901760
          %674 = vmatpush1.xpose.msra.mxu0 %v673
          %675 = vmatprep.subr.mxu0 0.0
          %v676 = vand.u32 %v613, 4294901760
          %677 = vmatpush1.xpose.msra.mxu0 %v676
          %678 = vmatprep.subr.mxu0 0.0
          %v679 = vand.u32 %v610, 4294901760
          %680 = vmatpush1.xpose.msra.mxu0 %v679
          %681 = vmatprep.subr.mxu0 0.0
          %v682 = vand.u32 %v607, 4294901760
          %683 = vmatpush1.xpose.msra.mxu0 %v682
          %684 = vmatprep.subr.mxu0 0.0
          %v685 = vand.u32 %v604, 4294901760
          %686 = vmatpush1.xpose.msra.mxu0 %v685
          %687 = vmatprep.subr.mxu0 0.0
          %v688 = vand.u32 %v601, 4294901760
          %689 = vmatpush1.xpose.msra.mxu0 %v688
          %690 = vmatprep.subr.mxu0 0.0
          %v691 = vand.u32 %v598, 4294901760
          %692 = vmatpush1.xpose.msra.mxu0 %v691
          %693 = vmatprep.subr.mxu0 0.0
          %v694 = vand.u32 %v595, 4294901760
          %695 = vmatpush1.xpose.msra.mxu0 %v694
          %696 = vmatprep.subr.mxu0 0.0
          %v697 = vand.u32 %v592, 4294901760
          %698 = vmatpush1.xpose.msra.mxu0 %v697
          %699 = vmatprep.subr.mxu0 0.0
          %v700 = vand.u32 %v589, 4294901760
          %701 = vmatpush1.xpose.msra.mxu0 %v700
          %702 = vmatprep.subr.mxu0 0.0
          %v703 = vand.u32 %v586, 4294901760
          %704 = vmatpush1.xpose.msra.mxu0 %v703
          %705 = vmatprep.subr.mxu0 0.0
          %v706 = vand.u32 %v583, 4294901760
          %707 = vmatpush1.xpose.msra.mxu0 %v706
          %708 = vmatprep.subr.mxu0 0.0
          %v709 = vand.u32 %v580, 4294901760
          %710 = vmatpush1.xpose.msra.mxu0 %v709
          %711 = vmatprep.subr.mxu0 0.0
          %v712 = vand.u32 %v577, 4294901760
          %713 = vmatpush1.xpose.msra.mxu0 %v712
          %714 = vmatprep.subr.mxu0 0.0
          %v715 = vand.u32 %v574, 4294901760
          %716 = vmatpush1.xpose.msra.mxu0 %v715
          %717 = vmatprep.subr.mxu0 0.0
          %v718 = vand.u32 %v667, 4294901760
          %719 = vmatpush2.xpose.msra.mxu0 %v718
          %720 = vmatprep.subr.mxu0 0.0
          %v721 = vand.u32 %v664, 4294901760
          %722 = vmatpush2.xpose.msra.mxu0 %v721
          %723 = vmatprep.subr.mxu0 0.0
          %v724 = vand.u32 %v661, 4294901760
          %725 = vmatpush2.xpose.msra.mxu0 %v724
          %726 = vmatprep.subr.mxu0 0.0
          %v727 = vand.u32 %v658, 4294901760
          %728 = vmatpush2.xpose.msra.mxu0 %v727
          %729 = vmatprep.subr.mxu0 0.0
          %v730 = vand.u32 %v655, 4294901760
          %731 = vmatpush2.xpose.msra.mxu0 %v730
          %732 = vmatprep.subr.mxu0 0.0
          %v733 = vand.u32 %v652, 4294901760
          %734 = vmatpush2.xpose.msra.mxu0 %v733
          %735 = vmatprep.subr.mxu0 0.0
          %v736 = vand.u32 %v649, 4294901760
          %737 = vmatpush2.xpose.msra.mxu0 %v736
          %738 = vmatprep.subr.mxu0 0.0
          %v739 = vand.u32 %v646, 4294901760
          %740 = vmatpush2.xpose.msra.mxu0 %v739
          %741 = vmatprep.subr.mxu0 0.0
          %v742 = vand.u32 %v643, 4294901760
          %743 = vmatpush2.xpose.msra.mxu0 %v742
          %744 = vmatprep.subr.mxu0 0.0
          %v745 = vand.u32 %v640, 4294901760
          %746 = vmatpush2.xpose.msra.mxu0 %v745
          %747 = vmatprep.subr.mxu0 0.0
          %v748 = vand.u32 %v637, 4294901760
          %749 = vmatpush2.xpose.msra.mxu0 %v748
          %750 = vmatprep.subr.mxu0 0.0
          %v751 = vand.u32 %v634, 4294901760
          %752 = vmatpush2.xpose.msra.mxu0 %v751
          %753 = vmatprep.subr.mxu0 0.0
          %v754 = vand.u32 %v631, 4294901760
          %755 = vmatpush2.xpose.msra.mxu0 %v754
          %756 = vmatprep.subr.mxu0 0.0
          %v757 = vand.u32 %v628, 4294901760
          %758 = vmatpush2.xpose.msra.mxu0 %v757
          %759 = vmatprep.subr.mxu0 0.0
          %v760 = vand.u32 %v625, 4294901760
          %761 = vmatpush2.xpose.msra.mxu0 %v760
          %762 = vmatprep.subr.mxu0 0.0
          %v763 = vand.u32 %v622, 4294901760
          %764 = vmatpush2.xpose.msra.mxu0 %v763
          %765 = vmatprep.mubr.f32.mxu0 0.0
          %v766 = vand.u32 %v478, 4294901760
          %v767 = vsub.f32 %v478, %v766
          %v768 = vand.u32 %v767, 4294901760
          %v769 = vsub.f32 %v767, %v768
          %v770 = vand.u32 %v769, 4294901760
          %771 = vmatmul.mubr.f32.gmra.mxu0 %v770
          %v772 = vpop.f32.mrf.mxu0
          %v773 = vadd.f32 0.0, %v772
          %v774 = vpop.f32.mrf.mxu0
          %v775 = vadd.f32 0.0, %v774
          %776 = vmatprep.mubr.f32.mxu0 0.0
          %v777 = vand.u32 %v481, 4294901760
          %v778 = vsub.f32 %v481, %v777
          %v779 = vand.u32 %v778, 4294901760
          %v780 = vsub.f32 %v778, %v779
          %v781 = vand.u32 %v780, 4294901760
          %782 = vmatmul.mubr.f32.gmra.mxu0 %v781
          %v783 = vpop.f32.mrf.mxu0
          %v784 = vadd.f32 0.0, %v783
          %v785 = vpop.f32.mrf.mxu0
          %v786 = vadd.f32 0.0, %v785
          %787 = vmatprep.mubr.f32.mxu0 0.0
          %v788 = vand.u32 %v484, 4294901760
          %v789 = vsub.f32 %v484, %v788
          %v790 = vand.u32 %v789, 4294901760
          %v791 = vsub.f32 %v789, %v790
          %v792 = vand.u32 %v791, 4294901760
          %793 = vmatmul.mubr.f32.gmra.mxu0 %v792
          %v794 = vpop.f32.mrf.mxu0
          %v795 = vadd.f32 0.0, %v794
          %v796 = vpop.f32.mrf.mxu0
          %v797 = vadd.f32 0.0, %v796
          %798 = vmatprep.mubr.f32.mxu0 0.0
          %v799 = vand.u32 %v487, 4294901760
          %v800 = vsub.f32 %v487, %v799
          %v801 = vand.u32 %v800, 4294901760
          %v802 = vsub.f32 %v800, %v801
          %v803 = vand.u32 %v802, 4294901760
          %804 = vmatmul.mubr.f32.gmra.mxu0 %v803
          %v805 = vpop.f32.mrf.mxu0
          %v806 = vadd.f32 0.0, %v805
          %v807 = vpop.f32.mrf.mxu0
          %v808 = vadd.f32 0.0, %v807
          %809 = vmatprep.mubr.f32.mxu0 0.0
          %v810 = vand.u32 %v490, 4294901760
          %v811 = vsub.f32 %v490, %v810
          %v812 = vand.u32 %v811, 4294901760
          %v813 = vsub.f32 %v811, %v812
          %v814 = vand.u32 %v813, 4294901760
          %815 = vmatmul.mubr.f32.gmra.mxu0 %v814
          %v816 = vpop.f32.mrf.mxu0
          %v817 = vadd.f32 0.0, %v816
          %v818 = vpop.f32.mrf.mxu0
          %v819 = vadd.f32 0.0, %v818
          %820 = vmatprep.mubr.f32.mxu0 0.0
          %v821 = vand.u32 %v493, 4294901760
          %v822 = vsub.f32 %v493, %v821
          %v823 = vand.u32 %v822, 4294901760
          %v824 = vsub.f32 %v822, %v823
          %v825 = vand.u32 %v824, 4294901760
          %826 = vmatmul.mubr.f32.gmra.mxu0 %v825
          %v827 = vpop.f32.mrf.mxu0
          %v828 = vadd.f32 0.0, %v827
          %v829 = vpop.f32.mrf.mxu0
          %v830 = vadd.f32 0.0, %v829
          %831 = vmatprep.mubr.f32.mxu0 0.0
          %v832 = vand.u32 %v496, 4294901760
          %v833 = vsub.f32 %v496, %v832
          %v834 = vand.u32 %v833, 4294901760
          %v835 = vsub.f32 %v833, %v834
          %v836 = vand.u32 %v835, 4294901760
          %837 = vmatmul.mubr.f32.gmra.mxu0 %v836
          %v838 = vpop.f32.mrf.mxu0
          %v839 = vadd.f32 0.0, %v838
          %v840 = vpop.f32.mrf.mxu0
          %v841 = vadd.f32 0.0, %v840
          %842 = vmatprep.mubr.f32.mxu0 0.0
          %v843 = vand.u32 %v499, 4294901760
          %v844 = vsub.f32 %v499, %v843
          %v845 = vand.u32 %v844, 4294901760
          %v846 = vsub.f32 %v844, %v845
          %v847 = vand.u32 %v846, 4294901760
          %848 = vmatmul.mubr.f32.gmra.mxu0 %v847
          %v849 = vpop.f32.mrf.mxu0
          %v850 = vadd.f32 0.0, %v849
          %v851 = vpop.f32.mrf.mxu0
          %v852 = vadd.f32 0.0, %v851
          %853 = vmatprep.mubr.f32.mxu0 0.0
          %v854 = vand.u32 %v502, 4294901760
          %v855 = vsub.f32 %v502, %v854
          %v856 = vand.u32 %v855, 4294901760
          %v857 = vsub.f32 %v855, %v856
          %v858 = vand.u32 %v857, 4294901760
          %859 = vmatmul.mubr.f32.gmra.mxu0 %v858
          %v860 = vpop.f32.mrf.mxu0
          %v861 = vadd.f32 0.0, %v860
          %v862 = vpop.f32.mrf.mxu0
          %v863 = vadd.f32 0.0, %v862
          %864 = vmatprep.mubr.f32.mxu0 0.0
          %v865 = vand.u32 %v505, 4294901760
          %v866 = vsub.f32 %v505, %v865
          %v867 = vand.u32 %v866, 4294901760
          %v868 = vsub.f32 %v866, %v867
          %v869 = vand.u32 %v868, 4294901760
          %870 = vmatmul.mubr.f32.gmra.mxu0 %v869
          %v871 = vpop.f32.mrf.mxu0
          %v872 = vadd.f32 0.0, %v871
          %v873 = vpop.f32.mrf.mxu0
          %v874 = vadd.f32 0.0, %v873
          %875 = vmatprep.mubr.f32.mxu0 0.0
          %v876 = vand.u32 %v508, 4294901760
          %v877 = vsub.f32 %v508, %v876
          %v878 = vand.u32 %v877, 4294901760
          %v879 = vsub.f32 %v877, %v878
          %v880 = vand.u32 %v879, 4294901760
          %881 = vmatmul.mubr.f32.gmra.mxu0 %v880
          %v882 = vpop.f32.mrf.mxu0
          %v883 = vadd.f32 0.0, %v882
          %v884 = vpop.f32.mrf.mxu0
          %v885 = vadd.f32 0.0, %v884
          %886 = vmatprep.mubr.f32.mxu0 0.0
          %v887 = vand.u32 %v511, 4294901760
          %v888 = vsub.f32 %v511, %v887
          %v889 = vand.u32 %v888, 4294901760
          %v890 = vsub.f32 %v888, %v889
          %v891 = vand.u32 %v890, 4294901760
          %892 = vmatmul.mubr.f32.gmra.mxu0 %v891
          %v893 = vpop.f32.mrf.mxu0
          %v894 = vadd.f32 0.0, %v893
          %v895 = vpop.f32.mrf.mxu0
          %v896 = vadd.f32 0.0, %v895
          %897 = vmatprep.mubr.f32.mxu0 0.0
          %v898 = vand.u32 %v514, 4294901760
          %v899 = vsub.f32 %v514, %v898
          %v900 = vand.u32 %v899, 4294901760
          %v901 = vsub.f32 %v899, %v900
          %v902 = vand.u32 %v901, 4294901760
          %903 = vmatmul.mubr.f32.gmra.mxu0 %v902
          %v904 = vpop.f32.mrf.mxu0
          %v905 = vadd.f32 0.0, %v904
          %v906 = vpop.f32.mrf.mxu0
          %v907 = vadd.f32 0.0, %v906
          %908 = vmatprep.mubr.f32.mxu0 0.0
          %v909 = vand.u32 %v517, 4294901760
          %v910 = vsub.f32 %v517, %v909
          %v911 = vand.u32 %v910, 4294901760
          %v912 = vsub.f32 %v910, %v911
          %v913 = vand.u32 %v912, 4294901760
          %914 = vmatmul.mubr.f32.gmra.mxu0 %v913
          %v915 = vpop.f32.mrf.mxu0
          %v916 = vadd.f32 0.0, %v915
          %v917 = vpop.f32.mrf.mxu0
          %v918 = vadd.f32 0.0, %v917
          %919 = vmatprep.mubr.f32.mxu0 0.0
          %v920 = vand.u32 %v520, 4294901760
          %v921 = vsub.f32 %v520, %v920
          %v922 = vand.u32 %v921, 4294901760
          %v923 = vsub.f32 %v921, %v922
          %v924 = vand.u32 %v923, 4294901760
          %925 = vmatmul.mubr.f32.gmra.mxu0 %v924
          %v926 = vpop.f32.mrf.mxu0
          %v927 = vadd.f32 0.0, %v926
          %v928 = vpop.f32.mrf.mxu0
          %v929 = vadd.f32 0.0, %v928
          %930 = vmatprep.mubr.f32.mxu0 0.0
          %v931 = vand.u32 %v523, 4294901760
          %v932 = vsub.f32 %v523, %v931
          %v933 = vand.u32 %v932, 4294901760
          %v934 = vsub.f32 %v932, %v933
          %v935 = vand.u32 %v934, 4294901760
          %936 = vmatmul.mubr.f32.gmra.mxu0 %v935
          %v937 = vpop.f32.mrf.mxu0
          %v938 = vadd.f32 0.0, %v937
          %v939 = vpop.f32.mrf.mxu0
          %v940 = vadd.f32 0.0, %v939
          %941 = vmatprep.mubr.f32.mxu0 0.0
          %v942 = vand.u32 %v526, 4294901760
          %v943 = vsub.f32 %v526, %v942
          %v944 = vand.u32 %v943, 4294901760
          %v945 = vsub.f32 %v943, %v944
          %v946 = vand.u32 %v945, 4294901760
          %947 = vmatmul.mubr.f32.gmra.mxu0 %v946
          %v948 = vpop.f32.mrf.mxu0
          %v949 = vadd.f32 0.0, %v948
          %v950 = vpop.f32.mrf.mxu0
          %v951 = vadd.f32 0.0, %v950
          %952 = vmatprep.mubr.f32.mxu0 0.0
          %v953 = vand.u32 %v529, 4294901760
          %v954 = vsub.f32 %v529, %v953
          %v955 = vand.u32 %v954, 4294901760
          %v956 = vsub.f32 %v954, %v955
          %v957 = vand.u32 %v956, 4294901760
          %958 = vmatmul.mubr.f32.gmra.mxu0 %v957
          %v959 = vpop.f32.mrf.mxu0
          %v960 = vadd.f32 0.0, %v959
          %v961 = vpop.f32.mrf.mxu0
          %v962 = vadd.f32 0.0, %v961
          %963 = vmatprep.mubr.f32.mxu0 0.0
          %v964 = vand.u32 %v532, 4294901760
          %v965 = vsub.f32 %v532, %v964
          %v966 = vand.u32 %v965, 4294901760
          %v967 = vsub.f32 %v965, %v966
          %v968 = vand.u32 %v967, 4294901760
          %969 = vmatmul.mubr.f32.gmra.mxu0 %v968
          %v970 = vpop.f32.mrf.mxu0
          %v971 = vadd.f32 0.0, %v970
          %v972 = vpop.f32.mrf.mxu0
          %v973 = vadd.f32 0.0, %v972
          %974 = vmatprep.mubr.f32.mxu0 0.0
          %v975 = vand.u32 %v535, 4294901760
          %v976 = vsub.f32 %v535, %v975
          %v977 = vand.u32 %v976, 4294901760
          %v978 = vsub.f32 %v976, %v977
          %v979 = vand.u32 %v978, 4294901760
          %980 = vmatmul.mubr.f32.gmra.mxu0 %v979
          %v981 = vpop.f32.mrf.mxu0
          %v982 = vadd.f32 0.0, %v981
          %v983 = vpop.f32.mrf.mxu0
          %v984 = vadd.f32 0.0, %v983
          %985 = vmatprep.mubr.f32.mxu0 0.0
          %v986 = vand.u32 %v538, 4294901760
          %v987 = vsub.f32 %v538, %v986
          %v988 = vand.u32 %v987, 4294901760
          %v989 = vsub.f32 %v987, %v988
          %v990 = vand.u32 %v989, 4294901760
          %991 = vmatmul.mubr.f32.gmra.mxu0 %v990
          %v992 = vpop.f32.mrf.mxu0
          %v993 = vadd.f32 0.0, %v992
          %v994 = vpop.f32.mrf.mxu0
          %v995 = vadd.f32 0.0, %v994
          %996 = vmatprep.mubr.f32.mxu0 0.0
          %v997 = vand.u32 %v541, 4294901760
          %v998 = vsub.f32 %v541, %v997
          %v999 = vand.u32 %v998, 4294901760
          %v1000 = vsub.f32 %v998, %v999
          %v1001 = vand.u32 %v1000, 4294901760
          %1002 = vmatmul.mubr.f32.gmra.mxu0 %v1001
          %v1003 = vpop.f32.mrf.mxu0
          %v1004 = vadd.f32 0.0, %v1003
          %v1005 = vpop.f32.mrf.mxu0
          %v1006 = vadd.f32 0.0, %v1005
          %1007 = vmatprep.mubr.f32.mxu0 0.0
          %v1008 = vand.u32 %v544, 4294901760
          %v1009 = vsub.f32 %v544, %v1008
          %v1010 = vand.u32 %v1009, 4294901760
          %v1011 = vsub.f32 %v1009, %v1010
          %v1012 = vand.u32 %v1011, 4294901760
          %1013 = vmatmul.mubr.f32.gmra.mxu0 %v1012
          %v1014 = vpop.f32.mrf.mxu0
          %v1015 = vadd.f32 0.0, %v1014
          %v1016 = vpop.f32.mrf.mxu0
          %v1017 = vadd.f32 0.0, %v1016
          %1018 = vmatprep.mubr.f32.mxu0 0.0
          %v1019 = vand.u32 %v547, 4294901760
          %v1020 = vsub.f32 %v547, %v1019
          %v1021 = vand.u32 %v1020, 4294901760
          %v1022 = vsub.f32 %v1020, %v1021
          %v1023 = vand.u32 %v1022, 4294901760
          %1024 = vmatmul.mubr.f32.gmra.mxu0 %v1023
          %v1025 = vpop.f32.mrf.mxu0
          %v1026 = vadd.f32 0.0, %v1025
          %v1027 = vpop.f32.mrf.mxu0
          %v1028 = vadd.f32 0.0, %v1027
          %1029 = vmatprep.mubr.f32.mxu0 0.0
          %v1030 = vand.u32 %v550, 4294901760
          %v1031 = vsub.f32 %v550, %v1030
          %v1032 = vand.u32 %v1031, 4294901760
          %v1033 = vsub.f32 %v1031, %v1032
          %v1034 = vand.u32 %v1033, 4294901760
          %1035 = vmatmul.mubr.f32.gmra.mxu0 %v1034
          %v1036 = vpop.f32.mrf.mxu0
          %v1037 = vadd.f32 0.0, %v1036
          %v1038 = vpop.f32.mrf.mxu0
          %v1039 = vadd.f32 0.0, %v1038
          %1040 = vmatprep.mubr.f32.mxu0 0.0
          %v1041 = vand.u32 %v553, 4294901760
          %v1042 = vsub.f32 %v553, %v1041
          %v1043 = vand.u32 %v1042, 4294901760
          %v1044 = vsub.f32 %v1042, %v1043
          %v1045 = vand.u32 %v1044, 4294901760
          %1046 = vmatmul.mubr.f32.gmra.mxu0 %v1045
          %v1047 = vpop.f32.mrf.mxu0
          %v1048 = vadd.f32 0.0, %v1047
          %v1049 = vpop.f32.mrf.mxu0
          %v1050 = vadd.f32 0.0, %v1049
          %1051 = vmatprep.mubr.f32.mxu0 0.0
          %v1052 = vand.u32 %v556, 4294901760
          %v1053 = vsub.f32 %v556, %v1052
          %v1054 = vand.u32 %v1053, 4294901760
          %v1055 = vsub.f32 %v1053, %v1054
          %v1056 = vand.u32 %v1055, 4294901760
          %1057 = vmatmul.mubr.f32.gmra.mxu0 %v1056
          %v1058 = vpop.f32.mrf.mxu0
          %v1059 = vadd.f32 0.0, %v1058
          %v1060 = vpop.f32.mrf.mxu0
          %v1061 = vadd.f32 0.0, %v1060
          %1062 = vmatprep.mubr.f32.mxu0 0.0
          %v1063 = vand.u32 %v559, 4294901760
          %v1064 = vsub.f32 %v559, %v1063
          %v1065 = vand.u32 %v1064, 4294901760
          %v1066 = vsub.f32 %v1064, %v1065
          %v1067 = vand.u32 %v1066, 4294901760
          %1068 = vmatmul.mubr.f32.gmra.mxu0 %v1067
          %v1069 = vpop.f32.mrf.mxu0
          %v1070 = vadd.f32 0.0, %v1069
          %v1071 = vpop.f32.mrf.mxu0
          %v1072 = vadd.f32 0.0, %v1071
          %1073 = vmatprep.mubr.f32.mxu0 0.0
          %v1074 = vand.u32 %v562, 4294901760
          %v1075 = vsub.f32 %v562, %v1074
          %v1076 = vand.u32 %v1075, 4294901760
          %v1077 = vsub.f32 %v1075, %v1076
          %v1078 = vand.u32 %v1077, 4294901760
          %1079 = vmatmul.mubr.f32.gmra.mxu0 %v1078
          %v1080 = vpop.f32.mrf.mxu0
          %v1081 = vadd.f32 0.0, %v1080
          %v1082 = vpop.f32.mrf.mxu0
          %v1083 = vadd.f32 0.0, %v1082
          %1084 = vmatprep.mubr.f32.mxu0 0.0
          %v1085 = vand.u32 %v565, 4294901760
          %v1086 = vsub.f32 %v565, %v1085
          %v1087 = vand.u32 %v1086, 4294901760
          %v1088 = vsub.f32 %v1086, %v1087
          %v1089 = vand.u32 %v1088, 4294901760
          %1090 = vmatmul.mubr.f32.gmra.mxu0 %v1089
          %v1091 = vpop.f32.mrf.mxu0
          %v1092 = vadd.f32 0.0, %v1091
          %v1093 = vpop.f32.mrf.mxu0
          %v1094 = vadd.f32 0.0, %v1093
          %1095 = vmatprep.mubr.f32.mxu0 0.0
          %v1096 = vand.u32 %v568, 4294901760
          %v1097 = vsub.f32 %v568, %v1096
          %v1098 = vand.u32 %v1097, 4294901760
          %v1099 = vsub.f32 %v1097, %v1098
          %v1100 = vand.u32 %v1099, 4294901760
          %1101 = vmatmul.mubr.f32.gmra.mxu0 %v1100
          %v1102 = vpop.f32.mrf.mxu0
          %v1103 = vadd.f32 0.0, %v1102
          %v1104 = vpop.f32.mrf.mxu0
          %v1105 = vadd.f32 0.0, %v1104
          %1106 = vmatprep.mubr.f32.mxu0 0.0
          %v1107 = vand.u32 %v571, 4294901760
          %v1108 = vsub.f32 %v571, %v1107
          %v1109 = vand.u32 %v1108, 4294901760
          %v1110 = vsub.f32 %v1108, %v1109
          %v1111 = vand.u32 %v1110, 4294901760
          %1112 = vmatmul.mubr.f32.gmra.mxu0 %v1111
          %v1113 = vpop.f32.mrf.mxu0
          %v1114 = vadd.f32 0.0, %v1113
          %v1115 = vpop.f32.mrf.mxu0
          %v1116 = vadd.f32 0.0, %v1115
          %1117 = vdwg.mxu0
          %1118 = vmatprep.subr.mxu0 0.0
          %v1119 = vand.u32 %v619, 4294901760
          %v1120 = vsub.f32 %v619, %v1119
          %v1121 = vand.u32 %v1120, 4294901760
          %v1122 = vsub.f32 %v1120, %v1121
          %v1123 = vand.u32 %v1122, 4294901760
          %1124 = vmatpush1.xpose.msra.mxu0 %v1123
          %1125 = vmatprep.subr.mxu0 0.0
          %v1126 = vand.u32 %v616, 4294901760
          %v1127 = vsub.f32 %v616, %v1126
          %v1128 = vand.u32 %v1127, 4294901760
          %v1129 = vsub.f32 %v1127, %v1128
          %v1130 = vand.u32 %v1129, 4294901760
          %1131 = vmatpush1.xpose.msra.mxu0 %v1130
          %1132 = vmatprep.subr.mxu0 0.0
          %v1133 = vand.u32 %v613, 4294901760
          %v1134 = vsub.f32 %v613, %v1133
          %v1135 = vand.u32 %v1134, 4294901760
          %v1136 = vsub.f32 %v1134, %v1135
          %v1137 = vand.u32 %v1136, 4294901760
          %1138 = vmatpush1.xpose.msra.mxu0 %v1137
          %1139 = vmatprep.subr.mxu0 0.0
          %v1140 = vand.u32 %v610, 4294901760
          %v1141 = vsub.f32 %v610, %v1140
          %v1142 = vand.u32 %v1141, 4294901760
          %v1143 = vsub.f32 %v1141, %v1142
          %v1144 = vand.u32 %v1143, 4294901760
          %1145 = vmatpush1.xpose.msra.mxu0 %v1144
          %1146 = vmatprep.subr.mxu0 0.0
          %v1147 = vand.u32 %v607, 4294901760
          %v1148 = vsub.f32 %v607, %v1147
          %v1149 = vand.u32 %v1148, 4294901760
          %v1150 = vsub.f32 %v1148, %v1149
          %v1151 = vand.u32 %v1150, 4294901760
          %1152 = vmatpush1.xpose.msra.mxu0 %v1151
          %1153 = vmatprep.subr.mxu0 0.0
          %v1154 = vand.u32 %v604, 4294901760
          %v1155 = vsub.f32 %v604, %v1154
          %v1156 = vand.u32 %v1155, 4294901760
          %v1157 = vsub.f32 %v1155, %v1156
          %v1158 = vand.u32 %v1157, 4294901760
          %1159 = vmatpush1.xpose.msra.mxu0 %v1158
          %1160 = vmatprep.subr.mxu0 0.0
          %v1161 = vand.u32 %v601, 4294901760
          %v1162 = vsub.f32 %v601, %v1161
          %v1163 = vand.u32 %v1162, 4294901760
          %v1164 = vsub.f32 %v1162, %v1163
          %v1165 = vand.u32 %v1164, 4294901760
          %1166 = vmatpush1.xpose.msra.mxu0 %v1165
          %1167 = vmatprep.subr.mxu0 0.0
          %v1168 = vand.u32 %v598, 4294901760
          %v1169 = vsub.f32 %v598, %v1168
          %v1170 = vand.u32 %v1169, 4294901760
          %v1171 = vsub.f32 %v1169, %v1170
          %v1172 = vand.u32 %v1171, 4294901760
          %1173 = vmatpush1.xpose.msra.mxu0 %v1172
          %1174 = vmatprep.subr.mxu0 0.0
          %v1175 = vand.u32 %v595, 4294901760
          %v1176 = vsub.f32 %v595, %v1175
          %v1177 = vand.u32 %v1176, 4294901760
          %v1178 = vsub.f32 %v1176, %v1177
          %v1179 = vand.u32 %v1178, 4294901760
          %1180 = vmatpush1.xpose.msra.mxu0 %v1179
          %1181 = vmatprep.subr.mxu0 0.0
          %v1182 = vand.u32 %v592, 4294901760
          %v1183 = vsub.f32 %v592, %v1182
          %v1184 = vand.u32 %v1183, 4294901760
          %v1185 = vsub.f32 %v1183, %v1184
          %v1186 = vand.u32 %v1185, 4294901760
          %1187 = vmatpush1.xpose.msra.mxu0 %v1186
          %1188 = vmatprep.subr.mxu0 0.0
          %v1189 = vand.u32 %v589, 4294901760
          %v1190 = vsub.f32 %v589, %v1189
          %v1191 = vand.u32 %v1190, 4294901760
          %v1192 = vsub.f32 %v1190, %v1191
          %v1193 = vand.u32 %v1192, 4294901760
          %1194 = vmatpush1.xpose.msra.mxu0 %v1193
          %1195 = vmatprep.subr.mxu0 0.0
          %v1196 = vand.u32 %v586, 4294901760
          %v1197 = vsub.f32 %v586, %v1196
          %v1198 = vand.u32 %v1197, 4294901760
          %v1199 = vsub.f32 %v1197, %v1198
          %v1200 = vand.u32 %v1199, 4294901760
          %1201 = vmatpush1.xpose.msra.mxu0 %v1200
          %1202 = vmatprep.subr.mxu0 0.0
          %v1203 = vand.u32 %v583, 4294901760
          %v1204 = vsub.f32 %v583, %v1203
          %v1205 = vand.u32 %v1204, 4294901760
          %v1206 = vsub.f32 %v1204, %v1205
          %v1207 = vand.u32 %v1206, 4294901760
          %1208 = vmatpush1.xpose.msra.mxu0 %v1207
          %1209 = vmatprep.subr.mxu0 0.0
          %v1210 = vand.u32 %v580, 4294901760
          %v1211 = vsub.f32 %v580, %v1210
          %v1212 = vand.u32 %v1211, 4294901760
          %v1213 = vsub.f32 %v1211, %v1212
          %v1214 = vand.u32 %v1213, 4294901760
          %1215 = vmatpush1.xpose.msra.mxu0 %v1214
          %1216 = vmatprep.subr.mxu0 0.0
          %v1217 = vand.u32 %v577, 4294901760
          %v1218 = vsub.f32 %v577, %v1217
          %v1219 = vand.u32 %v1218, 4294901760
          %v1220 = vsub.f32 %v1218, %v1219
          %v1221 = vand.u32 %v1220, 4294901760
          %1222 = vmatpush1.xpose.msra.mxu0 %v1221
          %1223 = vmatprep.subr.mxu0 0.0
          %v1224 = vand.u32 %v574, 4294901760
          %v1225 = vsub.f32 %v574, %v1224
          %v1226 = vand.u32 %v1225, 4294901760
          %v1227 = vsub.f32 %v1225, %v1226
          %v1228 = vand.u32 %v1227, 4294901760
          %1229 = vmatpush1.xpose.msra.mxu0 %v1228
          %1230 = vmatprep.subr.mxu0 0.0
          %v1231 = vand.u32 %v667, 4294901760
          %v1232 = vsub.f32 %v667, %v1231
          %v1233 = vand.u32 %v1232, 4294901760
          %v1234 = vsub.f32 %v1232, %v1233
          %v1235 = vand.u32 %v1234, 4294901760
          %1236 = vmatpush2.xpose.msra.mxu0 %v1235
          %1237 = vmatprep.subr.mxu0 0.0
          %v1238 = vand.u32 %v664, 4294901760
          %v1239 = vsub.f32 %v664, %v1238
          %v1240 = vand.u32 %v1239, 4294901760
          %v1241 = vsub.f32 %v1239, %v1240
          %v1242 = vand.u32 %v1241, 4294901760
          %1243 = vmatpush2.xpose.msra.mxu0 %v1242
          %1244 = vmatprep.subr.mxu0 0.0
          %v1245 = vand.u32 %v661, 4294901760
          %v1246 = vsub.f32 %v661, %v1245
          %v1247 = vand.u32 %v1246, 4294901760
          %v1248 = vsub.f32 %v1246, %v1247
          %v1249 = vand.u32 %v1248, 4294901760
          %1250 = vmatpush2.xpose.msra.mxu0 %v1249
          %1251 = vmatprep.subr.mxu0 0.0
          %v1252 = vand.u32 %v658, 4294901760
          %v1253 = vsub.f32 %v658, %v1252
          %v1254 = vand.u32 %v1253, 4294901760
          %v1255 = vsub.f32 %v1253, %v1254
          %v1256 = vand.u32 %v1255, 4294901760
          %1257 = vmatpush2.xpose.msra.mxu0 %v1256
          %1258 = vmatprep.subr.mxu0 0.0
          %v1259 = vand.u32 %v655, 4294901760
          %v1260 = vsub.f32 %v655, %v1259
          %v1261 = vand.u32 %v1260, 4294901760
          %v1262 = vsub.f32 %v1260, %v1261
          %v1263 = vand.u32 %v1262, 4294901760
          %1264 = vmatpush2.xpose.msra.mxu0 %v1263
          %1265 = vmatprep.subr.mxu0 0.0
          %v1266 = vand.u32 %v652, 4294901760
          %v1267 = vsub.f32 %v652, %v1266
          %v1268 = vand.u32 %v1267, 4294901760
          %v1269 = vsub.f32 %v1267, %v1268
          %v1270 = vand.u32 %v1269, 4294901760
          %1271 = vmatpush2.xpose.msra.mxu0 %v1270
          %1272 = vmatprep.subr.mxu0 0.0
          %v1273 = vand.u32 %v649, 4294901760
          %v1274 = vsub.f32 %v649, %v1273
          %v1275 = vand.u32 %v1274, 4294901760
          %v1276 = vsub.f32 %v1274, %v1275
          %v1277 = vand.u32 %v1276, 4294901760
          %1278 = vmatpush2.xpose.msra.mxu0 %v1277
          %1279 = vmatprep.subr.mxu0 0.0
          %v1280 = vand.u32 %v646, 4294901760
          %v1281 = vsub.f32 %v646, %v1280
          %v1282 = vand.u32 %v1281, 4294901760
          %v1283 = vsub.f32 %v1281, %v1282
          %v1284 = vand.u32 %v1283, 4294901760
          %1285 = vmatpush2.xpose.msra.mxu0 %v1284
          %1286 = vmatprep.subr.mxu0 0.0
          %v1287 = vand.u32 %v643, 4294901760
          %v1288 = vsub.f32 %v643, %v1287
          %v1289 = vand.u32 %v1288, 4294901760
          %v1290 = vsub.f32 %v1288, %v1289
          %v1291 = vand.u32 %v1290, 4294901760
          %1292 = vmatpush2.xpose.msra.mxu0 %v1291
          %1293 = vmatprep.subr.mxu0 0.0
          %v1294 = vand.u32 %v640, 4294901760
          %v1295 = vsub.f32 %v640, %v1294
          %v1296 = vand.u32 %v1295, 4294901760
          %v1297 = vsub.f32 %v1295, %v1296
          %v1298 = vand.u32 %v1297, 4294901760
          %1299 = vmatpush2.xpose.msra.mxu0 %v1298
          %1300 = vmatprep.subr.mxu0 0.0
          %v1301 = vand.u32 %v637, 4294901760
          %v1302 = vsub.f32 %v637, %v1301
          %v1303 = vand.u32 %v1302, 4294901760
          %v1304 = vsub.f32 %v1302, %v1303
          %v1305 = vand.u32 %v1304, 4294901760
          %1306 = vmatpush2.xpose.msra.mxu0 %v1305
          %1307 = vmatprep.subr.mxu0 0.0
          %v1308 = vand.u32 %v634, 4294901760
          %v1309 = vsub.f32 %v634, %v1308
          %v1310 = vand.u32 %v1309, 4294901760
          %v1311 = vsub.f32 %v1309, %v1310
          %v1312 = vand.u32 %v1311, 4294901760
          %1313 = vmatpush2.xpose.msra.mxu0 %v1312
          %1314 = vmatprep.subr.mxu0 0.0
          %v1315 = vand.u32 %v631, 4294901760
          %v1316 = vsub.f32 %v631, %v1315
          %v1317 = vand.u32 %v1316, 4294901760
          %v1318 = vsub.f32 %v1316, %v1317
          %v1319 = vand.u32 %v1318, 4294901760
          %1320 = vmatpush2.xpose.msra.mxu0 %v1319
          %1321 = vmatprep.subr.mxu0 0.0
          %v1322 = vand.u32 %v628, 4294901760
          %v1323 = vsub.f32 %v628, %v1322
          %v1324 = vand.u32 %v1323, 4294901760
          %v1325 = vsub.f32 %v1323, %v1324
          %v1326 = vand.u32 %v1325, 4294901760
          %1327 = vmatpush2.xpose.msra.mxu0 %v1326
          %1328 = vmatprep.subr.mxu0 0.0
          %v1329 = vand.u32 %v625, 4294901760
          %v1330 = vsub.f32 %v625, %v1329
          %v1331 = vand.u32 %v1330, 4294901760
          %v1332 = vsub.f32 %v1330, %v1331
          %v1333 = vand.u32 %v1332, 4294901760
          %1334 = vmatpush2.xpose.msra.mxu0 %v1333
          %1335 = vmatprep.subr.mxu0 0.0
          %v1336 = vand.u32 %v622, 4294901760
          %v1337 = vsub.f32 %v622, %v1336
          %v1338 = vand.u32 %v1337, 4294901760
          %v1339 = vsub.f32 %v1337, %v1338
          %v1340 = vand.u32 %v1339, 4294901760
          %1341 = vmatpush2.xpose.msra.mxu0 %v1340
          %1342 = vmatprep.mubr.f32.mxu0 0.0
          %v1343 = vand.u32 %v478, 4294901760
          %1344 = vmatmul.mubr.f32.gmra.mxu0 %v1343
          %v1345 = vpop.f32.mrf.mxu0
          %v1346 = vadd.f32 %v773, %v1345
          %v1347 = vpop.f32.mrf.mxu0
          %v1348 = vadd.f32 %v775, %v1347
          %1349 = vmatprep.mubr.f32.mxu0 0.0
          %v1350 = vand.u32 %v481, 4294901760
          %1351 = vmatmul.mubr.f32.gmra.mxu0 %v1350
          %v1352 = vpop.f32.mrf.mxu0
          %v1353 = vadd.f32 %v784, %v1352
          %v1354 = vpop.f32.mrf.mxu0
          %v1355 = vadd.f32 %v786, %v1354
          %1356 = vmatprep.mubr.f32.mxu0 0.0
          %v1357 = vand.u32 %v484, 4294901760
          %1358 = vmatmul.mubr.f32.gmra.mxu0 %v1357
          %v1359 = vpop.f32.mrf.mxu0
          %v1360 = vadd.f32 %v795, %v1359
          %v1361 = vpop.f32.mrf.mxu0
          %v1362 = vadd.f32 %v797, %v1361
          %1363 = vmatprep.mubr.f32.mxu0 0.0
          %v1364 = vand.u32 %v487, 4294901760
          %1365 = vmatmul.mubr.f32.gmra.mxu0 %v1364
          %v1366 = vpop.f32.mrf.mxu0
          %v1367 = vadd.f32 %v806, %v1366
          %v1368 = vpop.f32.mrf.mxu0
          %v1369 = vadd.f32 %v808, %v1368
          %1370 = vmatprep.mubr.f32.mxu0 0.0
          %v1371 = vand.u32 %v490, 4294901760
          %1372 = vmatmul.mubr.f32.gmra.mxu0 %v1371
          %v1373 = vpop.f32.mrf.mxu0
          %v1374 = vadd.f32 %v817, %v1373
          %v1375 = vpop.f32.mrf.mxu0
          %v1376 = vadd.f32 %v819, %v1375
          %1377 = vmatprep.mubr.f32.mxu0 0.0
          %v1378 = vand.u32 %v493, 4294901760
          %1379 = vmatmul.mubr.f32.gmra.mxu0 %v1378
          %v1380 = vpop.f32.mrf.mxu0
          %v1381 = vadd.f32 %v828, %v1380
          %v1382 = vpop.f32.mrf.mxu0
          %v1383 = vadd.f32 %v830, %v1382
          %1384 = vmatprep.mubr.f32.mxu0 0.0
          %v1385 = vand.u32 %v496, 4294901760
          %1386 = vmatmul.mubr.f32.gmra.mxu0 %v1385
          %v1387 = vpop.f32.mrf.mxu0
          %v1388 = vadd.f32 %v839, %v1387
          %v1389 = vpop.f32.mrf.mxu0
          %v1390 = vadd.f32 %v841, %v1389
          %1391 = vmatprep.mubr.f32.mxu0 0.0
          %v1392 = vand.u32 %v499, 4294901760
          %1393 = vmatmul.mubr.f32.gmra.mxu0 %v1392
          %v1394 = vpop.f32.mrf.mxu0
          %v1395 = vadd.f32 %v850, %v1394
          %v1396 = vpop.f32.mrf.mxu0
          %v1397 = vadd.f32 %v852, %v1396
          %1398 = vmatprep.mubr.f32.mxu0 0.0
          %v1399 = vand.u32 %v502, 4294901760
          %1400 = vmatmul.mubr.f32.gmra.mxu0 %v1399
          %v1401 = vpop.f32.mrf.mxu0
          %v1402 = vadd.f32 %v861, %v1401
          %v1403 = vpop.f32.mrf.mxu0
          %v1404 = vadd.f32 %v863, %v1403
          %1405 = vmatprep.mubr.f32.mxu0 0.0
          %v1406 = vand.u32 %v505, 4294901760
          %1407 = vmatmul.mubr.f32.gmra.mxu0 %v1406
          %v1408 = vpop.f32.mrf.mxu0
          %v1409 = vadd.f32 %v872, %v1408
          %v1410 = vpop.f32.mrf.mxu0
          %v1411 = vadd.f32 %v874, %v1410
          %1412 = vmatprep.mubr.f32.mxu0 0.0
          %v1413 = vand.u32 %v508, 4294901760
          %1414 = vmatmul.mubr.f32.gmra.mxu0 %v1413
          %v1415 = vpop.f32.mrf.mxu0
          %v1416 = vadd.f32 %v883, %v1415
          %v1417 = vpop.f32.mrf.mxu0
          %v1418 = vadd.f32 %v885, %v1417
          %1419 = vmatprep.mubr.f32.mxu0 0.0
          %v1420 = vand.u32 %v511, 4294901760
          %1421 = vmatmul.mubr.f32.gmra.mxu0 %v1420
          %v1422 = vpop.f32.mrf.mxu0
          %v1423 = vadd.f32 %v894, %v1422
          %v1424 = vpop.f32.mrf.mxu0
          %v1425 = vadd.f32 %v896, %v1424
          %1426 = vmatprep.mubr.f32.mxu0 0.0
          %v1427 = vand.u32 %v514, 4294901760
          %1428 = vmatmul.mubr.f32.gmra.mxu0 %v1427
          %v1429 = vpop.f32.mrf.mxu0
          %v1430 = vadd.f32 %v905, %v1429
          %v1431 = vpop.f32.mrf.mxu0
          %v1432 = vadd.f32 %v907, %v1431
          %1433 = vmatprep.mubr.f32.mxu0 0.0
          %v1434 = vand.u32 %v517, 4294901760
          %1435 = vmatmul.mubr.f32.gmra.mxu0 %v1434
          %v1436 = vpop.f32.mrf.mxu0
          %v1437 = vadd.f32 %v916, %v1436
          %v1438 = vpop.f32.mrf.mxu0
          %v1439 = vadd.f32 %v918, %v1438
          %1440 = vmatprep.mubr.f32.mxu0 0.0
          %v1441 = vand.u32 %v520, 4294901760
          %1442 = vmatmul.mubr.f32.gmra.mxu0 %v1441
          %v1443 = vpop.f32.mrf.mxu0
          %v1444 = vadd.f32 %v927, %v1443
          %v1445 = vpop.f32.mrf.mxu0
          %v1446 = vadd.f32 %v929, %v1445
          %1447 = vmatprep.mubr.f32.mxu0 0.0
          %v1448 = vand.u32 %v523, 4294901760
          %1449 = vmatmul.mubr.f32.gmra.mxu0 %v1448
          %v1450 = vpop.f32.mrf.mxu0
          %v1451 = vadd.f32 %v938, %v1450
          %v1452 = vpop.f32.mrf.mxu0
          %v1453 = vadd.f32 %v940, %v1452
          %1454 = vmatprep.mubr.f32.mxu0 0.0
          %v1455 = vand.u32 %v526, 4294901760
          %1456 = vmatmul.mubr.f32.gmra.mxu0 %v1455
          %v1457 = vpop.f32.mrf.mxu0
          %v1458 = vadd.f32 %v949, %v1457
          %v1459 = vpop.f32.mrf.mxu0
          %v1460 = vadd.f32 %v951, %v1459
          %1461 = vmatprep.mubr.f32.mxu0 0.0
          %v1462 = vand.u32 %v529, 4294901760
          %1463 = vmatmul.mubr.f32.gmra.mxu0 %v1462
          %v1464 = vpop.f32.mrf.mxu0
          %v1465 = vadd.f32 %v960, %v1464
          %v1466 = vpop.f32.mrf.mxu0
          %v1467 = vadd.f32 %v962, %v1466
          %1468 = vmatprep.mubr.f32.mxu0 0.0
          %v1469 = vand.u32 %v532, 4294901760
          %1470 = vmatmul.mubr.f32.gmra.mxu0 %v1469
          %v1471 = vpop.f32.mrf.mxu0
          %v1472 = vadd.f32 %v971, %v1471
          %v1473 = vpop.f32.mrf.mxu0
          %v1474 = vadd.f32 %v973, %v1473
          %1475 = vmatprep.mubr.f32.mxu0 0.0
          %v1476 = vand.u32 %v535, 4294901760
          %1477 = vmatmul.mubr.f32.gmra.mxu0 %v1476
          %v1478 = vpop.f32.mrf.mxu0
          %v1479 = vadd.f32 %v982, %v1478
          %v1480 = vpop.f32.mrf.mxu0
          %v1481 = vadd.f32 %v984, %v1480
          %1482 = vmatprep.mubr.f32.mxu0 0.0
          %v1483 = vand.u32 %v538, 4294901760
          %1484 = vmatmul.mubr.f32.gmra.mxu0 %v1483
          %v1485 = vpop.f32.mrf.mxu0
          %v1486 = vadd.f32 %v993, %v1485
          %v1487 = vpop.f32.mrf.mxu0
          %v1488 = vadd.f32 %v995, %v1487
          %1489 = vmatprep.mubr.f32.mxu0 0.0
          %v1490 = vand.u32 %v541, 4294901760
          %1491 = vmatmul.mubr.f32.gmra.mxu0 %v1490
          %v1492 = vpop.f32.mrf.mxu0
          %v1493 = vadd.f32 %v1004, %v1492
          %v1494 = vpop.f32.mrf.mxu0
          %v1495 = vadd.f32 %v1006, %v1494
          %1496 = vmatprep.mubr.f32.mxu0 0.0
          %v1497 = vand.u32 %v544, 4294901760
          %1498 = vmatmul.mubr.f32.gmra.mxu0 %v1497
          %v1499 = vpop.f32.mrf.mxu0
          %v1500 = vadd.f32 %v1015, %v1499
          %v1501 = vpop.f32.mrf.mxu0
          %v1502 = vadd.f32 %v1017, %v1501
          %1503 = vmatprep.mubr.f32.mxu0 0.0
          %v1504 = vand.u32 %v547, 4294901760
          %1505 = vmatmul.mubr.f32.gmra.mxu0 %v1504
          %v1506 = vpop.f32.mrf.mxu0
          %v1507 = vadd.f32 %v1026, %v1506
          %v1508 = vpop.f32.mrf.mxu0
          %v1509 = vadd.f32 %v1028, %v1508
          %1510 = vmatprep.mubr.f32.mxu0 0.0
          %v1511 = vand.u32 %v550, 4294901760
          %1512 = vmatmul.mubr.f32.gmra.mxu0 %v1511
          %v1513 = vpop.f32.mrf.mxu0
          %v1514 = vadd.f32 %v1037, %v1513
          %v1515 = vpop.f32.mrf.mxu0
          %v1516 = vadd.f32 %v1039, %v1515
          %1517 = vmatprep.mubr.f32.mxu0 0.0
          %v1518 = vand.u32 %v553, 4294901760
          %1519 = vmatmul.mubr.f32.gmra.mxu0 %v1518
          %v1520 = vpop.f32.mrf.mxu0
          %v1521 = vadd.f32 %v1048, %v1520
          %v1522 = vpop.f32.mrf.mxu0
          %v1523 = vadd.f32 %v1050, %v1522
          %1524 = vmatprep.mubr.f32.mxu0 0.0
          %v1525 = vand.u32 %v556, 4294901760
          %1526 = vmatmul.mubr.f32.gmra.mxu0 %v1525
          %v1527 = vpop.f32.mrf.mxu0
          %v1528 = vadd.f32 %v1059, %v1527
          %v1529 = vpop.f32.mrf.mxu0
          %v1530 = vadd.f32 %v1061, %v1529
          %1531 = vmatprep.mubr.f32.mxu0 0.0
          %v1532 = vand.u32 %v559, 4294901760
          %1533 = vmatmul.mubr.f32.gmra.mxu0 %v1532
          %v1534 = vpop.f32.mrf.mxu0
          %v1535 = vadd.f32 %v1070, %v1534
          %v1536 = vpop.f32.mrf.mxu0
          %v1537 = vadd.f32 %v1072, %v1536
          %1538 = vmatprep.mubr.f32.mxu0 0.0
          %v1539 = vand.u32 %v562, 4294901760
          %1540 = vmatmul.mubr.f32.gmra.mxu0 %v1539
          %v1541 = vpop.f32.mrf.mxu0
          %v1542 = vadd.f32 %v1081, %v1541
          %v1543 = vpop.f32.mrf.mxu0
          %v1544 = vadd.f32 %v1083, %v1543
          %1545 = vmatprep.mubr.f32.mxu0 0.0
          %v1546 = vand.u32 %v565, 4294901760
          %1547 = vmatmul.mubr.f32.gmra.mxu0 %v1546
          %v1548 = vpop.f32.mrf.mxu0
          %v1549 = vadd.f32 %v1092, %v1548
          %v1550 = vpop.f32.mrf.mxu0
          %v1551 = vadd.f32 %v1094, %v1550
          %1552 = vmatprep.mubr.f32.mxu0 0.0
          %v1553 = vand.u32 %v568, 4294901760
          %1554 = vmatmul.mubr.f32.gmra.mxu0 %v1553
          %v1555 = vpop.f32.mrf.mxu0
          %v1556 = vadd.f32 %v1103, %v1555
          %v1557 = vpop.f32.mrf.mxu0
          %v1558 = vadd.f32 %v1105, %v1557
          %1559 = vmatprep.mubr.f32.mxu0 0.0
          %v1560 = vand.u32 %v571, 4294901760
          %1561 = vmatmul.mubr.f32.gmra.mxu0 %v1560
          %v1562 = vpop.f32.mrf.mxu0
          %v1563 = vadd.f32 %v1114, %v1562
          %v1564 = vpop.f32.mrf.mxu0
          %v1565 = vadd.f32 %v1116, %v1564
          %1566 = vdwg.mxu0
          %1567 = vmatprep.subr.mxu0 0.0
          %v1568 = vand.u32 %v619, 4294901760
          %v1569 = vsub.f32 %v619, %v1568
          %1570 = vmatpush1.xpose.msra.mxu0 %v1569
          %1571 = vmatprep.subr.mxu0 0.0
          %v1572 = vand.u32 %v616, 4294901760
          %v1573 = vsub.f32 %v616, %v1572
          %1574 = vmatpush1.xpose.msra.mxu0 %v1573
          %1575 = vmatprep.subr.mxu0 0.0
          %v1576 = vand.u32 %v613, 4294901760
          %v1577 = vsub.f32 %v613, %v1576
          %1578 = vmatpush1.xpose.msra.mxu0 %v1577
          %1579 = vmatprep.subr.mxu0 0.0
          %v1580 = vand.u32 %v610, 4294901760
          %v1581 = vsub.f32 %v610, %v1580
          %1582 = vmatpush1.xpose.msra.mxu0 %v1581
          %1583 = vmatprep.subr.mxu0 0.0
          %v1584 = vand.u32 %v607, 4294901760
          %v1585 = vsub.f32 %v607, %v1584
          %1586 = vmatpush1.xpose.msra.mxu0 %v1585
          %1587 = vmatprep.subr.mxu0 0.0
          %v1588 = vand.u32 %v604, 4294901760
          %v1589 = vsub.f32 %v604, %v1588
          %1590 = vmatpush1.xpose.msra.mxu0 %v1589
          %1591 = vmatprep.subr.mxu0 0.0
          %v1592 = vand.u32 %v601, 4294901760
          %v1593 = vsub.f32 %v601, %v1592
          %1594 = vmatpush1.xpose.msra.mxu0 %v1593
          %1595 = vmatprep.subr.mxu0 0.0
          %v1596 = vand.u32 %v598, 4294901760
          %v1597 = vsub.f32 %v598, %v1596
          %1598 = vmatpush1.xpose.msra.mxu0 %v1597
          %1599 = vmatprep.subr.mxu0 0.0
          %v1600 = vand.u32 %v595, 4294901760
          %v1601 = vsub.f32 %v595, %v1600
          %1602 = vmatpush1.xpose.msra.mxu0 %v1601
          %1603 = vmatprep.subr.mxu0 0.0
          %v1604 = vand.u32 %v592, 4294901760
          %v1605 = vsub.f32 %v592, %v1604
          %1606 = vmatpush1.xpose.msra.mxu0 %v1605
          %1607 = vmatprep.subr.mxu0 0.0
          %v1608 = vand.u32 %v589, 4294901760
          %v1609 = vsub.f32 %v589, %v1608
          %1610 = vmatpush1.xpose.msra.mxu0 %v1609
          %1611 = vmatprep.subr.mxu0 0.0
          %v1612 = vand.u32 %v586, 4294901760
          %v1613 = vsub.f32 %v586, %v1612
          %1614 = vmatpush1.xpose.msra.mxu0 %v1613
          %1615 = vmatprep.subr.mxu0 0.0
          %v1616 = vand.u32 %v583, 4294901760
          %v1617 = vsub.f32 %v583, %v1616
          %1618 = vmatpush1.xpose.msra.mxu0 %v1617
          %1619 = vmatprep.subr.mxu0 0.0
          %v1620 = vand.u32 %v580, 4294901760
          %v1621 = vsub.f32 %v580, %v1620
          %1622 = vmatpush1.xpose.msra.mxu0 %v1621
          %1623 = vmatprep.subr.mxu0 0.0
          %v1624 = vand.u32 %v577, 4294901760
          %v1625 = vsub.f32 %v577, %v1624
          %1626 = vmatpush1.xpose.msra.mxu0 %v1625
          %1627 = vmatprep.subr.mxu0 0.0
          %v1628 = vand.u32 %v574, 4294901760
          %v1629 = vsub.f32 %v574, %v1628
          %1630 = vmatpush1.xpose.msra.mxu0 %v1629
          %1631 = vmatprep.subr.mxu0 0.0
          %v1632 = vand.u32 %v667, 4294901760
          %v1633 = vsub.f32 %v667, %v1632
          %1634 = vmatpush2.xpose.msra.mxu0 %v1633
          %1635 = vmatprep.subr.mxu0 0.0
          %v1636 = vand.u32 %v664, 4294901760
          %v1637 = vsub.f32 %v664, %v1636
          %1638 = vmatpush2.xpose.msra.mxu0 %v1637
          %1639 = vmatprep.subr.mxu0 0.0
          %v1640 = vand.u32 %v661, 4294901760
          %v1641 = vsub.f32 %v661, %v1640
          %1642 = vmatpush2.xpose.msra.mxu0 %v1641
          %1643 = vmatprep.subr.mxu0 0.0
          %v1644 = vand.u32 %v658, 4294901760
          %v1645 = vsub.f32 %v658, %v1644
          %1646 = vmatpush2.xpose.msra.mxu0 %v1645
          %1647 = vmatprep.subr.mxu0 0.0
          %v1648 = vand.u32 %v655, 4294901760
          %v1649 = vsub.f32 %v655, %v1648
          %1650 = vmatpush2.xpose.msra.mxu0 %v1649
          %1651 = vmatprep.subr.mxu0 0.0
          %v1652 = vand.u32 %v652, 4294901760
          %v1653 = vsub.f32 %v652, %v1652
          %1654 = vmatpush2.xpose.msra.mxu0 %v1653
          %1655 = vmatprep.subr.mxu0 0.0
          %v1656 = vand.u32 %v649, 4294901760
          %v1657 = vsub.f32 %v649, %v1656
          %1658 = vmatpush2.xpose.msra.mxu0 %v1657
          %1659 = vmatprep.subr.mxu0 0.0
          %v1660 = vand.u32 %v646, 4294901760
          %v1661 = vsub.f32 %v646, %v1660
          %1662 = vmatpush2.xpose.msra.mxu0 %v1661
          %1663 = vmatprep.subr.mxu0 0.0
          %v1664 = vand.u32 %v643, 4294901760
          %v1665 = vsub.f32 %v643, %v1664
          %1666 = vmatpush2.xpose.msra.mxu0 %v1665
          %1667 = vmatprep.subr.mxu0 0.0
          %v1668 = vand.u32 %v640, 4294901760
          %v1669 = vsub.f32 %v640, %v1668
          %1670 = vmatpush2.xpose.msra.mxu0 %v1669
          %1671 = vmatprep.subr.mxu0 0.0
          %v1672 = vand.u32 %v637, 4294901760
          %v1673 = vsub.f32 %v637, %v1672
          %1674 = vmatpush2.xpose.msra.mxu0 %v1673
          %1675 = vmatprep.subr.mxu0 0.0
          %v1676 = vand.u32 %v634, 4294901760
          %v1677 = vsub.f32 %v634, %v1676
          %1678 = vmatpush2.xpose.msra.mxu0 %v1677
          %1679 = vmatprep.subr.mxu0 0.0
          %v1680 = vand.u32 %v631, 4294901760
          %v1681 = vsub.f32 %v631, %v1680
          %1682 = vmatpush2.xpose.msra.mxu0 %v1681
          %1683 = vmatprep.subr.mxu0 0.0
          %v1684 = vand.u32 %v628, 4294901760
          %v1685 = vsub.f32 %v628, %v1684
          %1686 = vmatpush2.xpose.msra.mxu0 %v1685
          %1687 = vmatprep.subr.mxu0 0.0
          %v1688 = vand.u32 %v625, 4294901760
          %v1689 = vsub.f32 %v625, %v1688
          %1690 = vmatpush2.xpose.msra.mxu0 %v1689
          %1691 = vmatprep.subr.mxu0 0.0
          %v1692 = vand.u32 %v622, 4294901760
          %v1693 = vsub.f32 %v622, %v1692
          %1694 = vmatpush2.xpose.msra.mxu0 %v1693
          %1695 = vmatprep.mubr.f32.mxu0 0.0
          %v1696 = vand.u32 %v478, 4294901760
          %v1697 = vsub.f32 %v478, %v1696
          %1698 = vmatmul.mubr.f32.gmra.mxu0 %v1697
          %v1699 = vpop.f32.mrf.mxu0
          %v1700 = vadd.f32 %v1346, %v1699
          %v1701 = vpop.f32.mrf.mxu0
          %v1702 = vadd.f32 %v1348, %v1701
          %1703 = vmatprep.mubr.f32.mxu0 0.0
          %v1704 = vand.u32 %v481, 4294901760
          %v1705 = vsub.f32 %v481, %v1704
          %1706 = vmatmul.mubr.f32.gmra.mxu0 %v1705
          %v1707 = vpop.f32.mrf.mxu0
          %v1708 = vadd.f32 %v1353, %v1707
          %v1709 = vpop.f32.mrf.mxu0
          %v1710 = vadd.f32 %v1355, %v1709
          %1711 = vmatprep.mubr.f32.mxu0 0.0
          %v1712 = vand.u32 %v484, 4294901760
          %v1713 = vsub.f32 %v484, %v1712
          %1714 = vmatmul.mubr.f32.gmra.mxu0 %v1713
          %v1715 = vpop.f32.mrf.mxu0
          %v1716 = vadd.f32 %v1360, %v1715
          %v1717 = vpop.f32.mrf.mxu0
          %v1718 = vadd.f32 %v1362, %v1717
          %1719 = vmatprep.mubr.f32.mxu0 0.0
          %v1720 = vand.u32 %v487, 4294901760
          %v1721 = vsub.f32 %v487, %v1720
          %1722 = vmatmul.mubr.f32.gmra.mxu0 %v1721
          %v1723 = vpop.f32.mrf.mxu0
          %v1724 = vadd.f32 %v1367, %v1723
          %v1725 = vpop.f32.mrf.mxu0
          %v1726 = vadd.f32 %v1369, %v1725
          %1727 = vmatprep.mubr.f32.mxu0 0.0
          %v1728 = vand.u32 %v490, 4294901760
          %v1729 = vsub.f32 %v490, %v1728
          %1730 = vmatmul.mubr.f32.gmra.mxu0 %v1729
          %v1731 = vpop.f32.mrf.mxu0
          %v1732 = vadd.f32 %v1374, %v1731
          %v1733 = vpop.f32.mrf.mxu0
          %v1734 = vadd.f32 %v1376, %v1733
          %1735 = vmatprep.mubr.f32.mxu0 0.0
          %v1736 = vand.u32 %v493, 4294901760
          %v1737 = vsub.f32 %v493, %v1736
          %1738 = vmatmul.mubr.f32.gmra.mxu0 %v1737
          %v1739 = vpop.f32.mrf.mxu0
          %v1740 = vadd.f32 %v1381, %v1739
          %v1741 = vpop.f32.mrf.mxu0
          %v1742 = vadd.f32 %v1383, %v1741
          %1743 = vmatprep.mubr.f32.mxu0 0.0
          %v1744 = vand.u32 %v496, 4294901760
          %v1745 = vsub.f32 %v496, %v1744
          %1746 = vmatmul.mubr.f32.gmra.mxu0 %v1745
          %v1747 = vpop.f32.mrf.mxu0
          %v1748 = vadd.f32 %v1388, %v1747
          %v1749 = vpop.f32.mrf.mxu0
          %v1750 = vadd.f32 %v1390, %v1749
          %1751 = vmatprep.mubr.f32.mxu0 0.0
          %v1752 = vand.u32 %v499, 4294901760
          %v1753 = vsub.f32 %v499, %v1752
          %1754 = vmatmul.mubr.f32.gmra.mxu0 %v1753
          %v1755 = vpop.f32.mrf.mxu0
          %v1756 = vadd.f32 %v1395, %v1755
          %v1757 = vpop.f32.mrf.mxu0
          %v1758 = vadd.f32 %v1397, %v1757
          %1759 = vmatprep.mubr.f32.mxu0 0.0
          %v1760 = vand.u32 %v502, 4294901760
          %v1761 = vsub.f32 %v502, %v1760
          %1762 = vmatmul.mubr.f32.gmra.mxu0 %v1761
          %v1763 = vpop.f32.mrf.mxu0
          %v1764 = vadd.f32 %v1402, %v1763
          %v1765 = vpop.f32.mrf.mxu0
          %v1766 = vadd.f32 %v1404, %v1765
          %1767 = vmatprep.mubr.f32.mxu0 0.0
          %v1768 = vand.u32 %v505, 4294901760
          %v1769 = vsub.f32 %v505, %v1768
          %1770 = vmatmul.mubr.f32.gmra.mxu0 %v1769
          %v1771 = vpop.f32.mrf.mxu0
          %v1772 = vadd.f32 %v1409, %v1771
          %v1773 = vpop.f32.mrf.mxu0
          %v1774 = vadd.f32 %v1411, %v1773
          %1775 = vmatprep.mubr.f32.mxu0 0.0
          %v1776 = vand.u32 %v508, 4294901760
          %v1777 = vsub.f32 %v508, %v1776
          %1778 = vmatmul.mubr.f32.gmra.mxu0 %v1777
          %v1779 = vpop.f32.mrf.mxu0
          %v1780 = vadd.f32 %v1416, %v1779
          %v1781 = vpop.f32.mrf.mxu0
          %v1782 = vadd.f32 %v1418, %v1781
          %1783 = vmatprep.mubr.f32.mxu0 0.0
          %v1784 = vand.u32 %v511, 4294901760
          %v1785 = vsub.f32 %v511, %v1784
          %1786 = vmatmul.mubr.f32.gmra.mxu0 %v1785
          %v1787 = vpop.f32.mrf.mxu0
          %v1788 = vadd.f32 %v1423, %v1787
          %v1789 = vpop.f32.mrf.mxu0
          %v1790 = vadd.f32 %v1425, %v1789
          %1791 = vmatprep.mubr.f32.mxu0 0.0
          %v1792 = vand.u32 %v514, 4294901760
          %v1793 = vsub.f32 %v514, %v1792
          %1794 = vmatmul.mubr.f32.gmra.mxu0 %v1793
          %v1795 = vpop.f32.mrf.mxu0
          %v1796 = vadd.f32 %v1430, %v1795
          %v1797 = vpop.f32.mrf.mxu0
          %v1798 = vadd.f32 %v1432, %v1797
          %1799 = vmatprep.mubr.f32.mxu0 0.0
          %v1800 = vand.u32 %v517, 4294901760
          %v1801 = vsub.f32 %v517, %v1800
          %1802 = vmatmul.mubr.f32.gmra.mxu0 %v1801
          %v1803 = vpop.f32.mrf.mxu0
          %v1804 = vadd.f32 %v1437, %v1803
          %v1805 = vpop.f32.mrf.mxu0
          %v1806 = vadd.f32 %v1439, %v1805
          %1807 = vmatprep.mubr.f32.mxu0 0.0
          %v1808 = vand.u32 %v520, 4294901760
          %v1809 = vsub.f32 %v520, %v1808
          %1810 = vmatmul.mubr.f32.gmra.mxu0 %v1809
          %v1811 = vpop.f32.mrf.mxu0
          %v1812 = vadd.f32 %v1444, %v1811
          %v1813 = vpop.f32.mrf.mxu0
          %v1814 = vadd.f32 %v1446, %v1813
          %1815 = vmatprep.mubr.f32.mxu0 0.0
          %v1816 = vand.u32 %v523, 4294901760
          %v1817 = vsub.f32 %v523, %v1816
          %1818 = vmatmul.mubr.f32.gmra.mxu0 %v1817
          %v1819 = vpop.f32.mrf.mxu0
          %v1820 = vadd.f32 %v1451, %v1819
          %v1821 = vpop.f32.mrf.mxu0
          %v1822 = vadd.f32 %v1453, %v1821
          %1823 = vmatprep.mubr.f32.mxu0 0.0
          %v1824 = vand.u32 %v526, 4294901760
          %v1825 = vsub.f32 %v526, %v1824
          %1826 = vmatmul.mubr.f32.gmra.mxu0 %v1825
          %v1827 = vpop.f32.mrf.mxu0
          %v1828 = vadd.f32 %v1458, %v1827
          %v1829 = vpop.f32.mrf.mxu0
          %v1830 = vadd.f32 %v1460, %v1829
          %1831 = vmatprep.mubr.f32.mxu0 0.0
          %v1832 = vand.u32 %v529, 4294901760
          %v1833 = vsub.f32 %v529, %v1832
          %1834 = vmatmul.mubr.f32.gmra.mxu0 %v1833
          %v1835 = vpop.f32.mrf.mxu0
          %v1836 = vadd.f32 %v1465, %v1835
          %v1837 = vpop.f32.mrf.mxu0
          %v1838 = vadd.f32 %v1467, %v1837
          %1839 = vmatprep.mubr.f32.mxu0 0.0
          %v1840 = vand.u32 %v532, 4294901760
          %v1841 = vsub.f32 %v532, %v1840
          %1842 = vmatmul.mubr.f32.gmra.mxu0 %v1841
          %v1843 = vpop.f32.mrf.mxu0
          %v1844 = vadd.f32 %v1472, %v1843
          %v1845 = vpop.f32.mrf.mxu0
          %v1846 = vadd.f32 %v1474, %v1845
          %1847 = vmatprep.mubr.f32.mxu0 0.0
          %v1848 = vand.u32 %v535, 4294901760
          %v1849 = vsub.f32 %v535, %v1848
          %1850 = vmatmul.mubr.f32.gmra.mxu0 %v1849
          %v1851 = vpop.f32.mrf.mxu0
          %v1852 = vadd.f32 %v1479, %v1851
          %v1853 = vpop.f32.mrf.mxu0
          %v1854 = vadd.f32 %v1481, %v1853
          %1855 = vmatprep.mubr.f32.mxu0 0.0
          %v1856 = vand.u32 %v538, 4294901760
          %v1857 = vsub.f32 %v538, %v1856
          %1858 = vmatmul.mubr.f32.gmra.mxu0 %v1857
          %v1859 = vpop.f32.mrf.mxu0
          %v1860 = vadd.f32 %v1486, %v1859
          %v1861 = vpop.f32.mrf.mxu0
          %v1862 = vadd.f32 %v1488, %v1861
          %1863 = vmatprep.mubr.f32.mxu0 0.0
          %v1864 = vand.u32 %v541, 4294901760
          %v1865 = vsub.f32 %v541, %v1864
          %1866 = vmatmul.mubr.f32.gmra.mxu0 %v1865
          %v1867 = vpop.f32.mrf.mxu0
          %v1868 = vadd.f32 %v1493, %v1867
          %v1869 = vpop.f32.mrf.mxu0
          %v1870 = vadd.f32 %v1495, %v1869
          %1871 = vmatprep.mubr.f32.mxu0 0.0
          %v1872 = vand.u32 %v544, 4294901760
          %v1873 = vsub.f32 %v544, %v1872
          %1874 = vmatmul.mubr.f32.gmra.mxu0 %v1873
          %v1875 = vpop.f32.mrf.mxu0
          %v1876 = vadd.f32 %v1500, %v1875
          %v1877 = vpop.f32.mrf.mxu0
          %v1878 = vadd.f32 %v1502, %v1877
          %1879 = vmatprep.mubr.f32.mxu0 0.0
          %v1880 = vand.u32 %v547, 4294901760
          %v1881 = vsub.f32 %v547, %v1880
          %1882 = vmatmul.mubr.f32.gmra.mxu0 %v1881
          %v1883 = vpop.f32.mrf.mxu0
          %v1884 = vadd.f32 %v1507, %v1883
          %v1885 = vpop.f32.mrf.mxu0
          %v1886 = vadd.f32 %v1509, %v1885
          %1887 = vmatprep.mubr.f32.mxu0 0.0
          %v1888 = vand.u32 %v550, 4294901760
          %v1889 = vsub.f32 %v550, %v1888
          %1890 = vmatmul.mubr.f32.gmra.mxu0 %v1889
          %v1891 = vpop.f32.mrf.mxu0
          %v1892 = vadd.f32 %v1514, %v1891
          %v1893 = vpop.f32.mrf.mxu0
          %v1894 = vadd.f32 %v1516, %v1893
          %1895 = vmatprep.mubr.f32.mxu0 0.0
          %v1896 = vand.u32 %v553, 4294901760
          %v1897 = vsub.f32 %v553, %v1896
          %1898 = vmatmul.mubr.f32.gmra.mxu0 %v1897
          %v1899 = vpop.f32.mrf.mxu0
          %v1900 = vadd.f32 %v1521, %v1899
          %v1901 = vpop.f32.mrf.mxu0
          %v1902 = vadd.f32 %v1523, %v1901
          %1903 = vmatprep.mubr.f32.mxu0 0.0
          %v1904 = vand.u32 %v556, 4294901760
          %v1905 = vsub.f32 %v556, %v1904
          %1906 = vmatmul.mubr.f32.gmra.mxu0 %v1905
          %v1907 = vpop.f32.mrf.mxu0
          %v1908 = vadd.f32 %v1528, %v1907
          %v1909 = vpop.f32.mrf.mxu0
          %v1910 = vadd.f32 %v1530, %v1909
          %1911 = vmatprep.mubr.f32.mxu0 0.0
          %v1912 = vand.u32 %v559, 4294901760
          %v1913 = vsub.f32 %v559, %v1912
          %1914 = vmatmul.mubr.f32.gmra.mxu0 %v1913
          %v1915 = vpop.f32.mrf.mxu0
          %v1916 = vadd.f32 %v1535, %v1915
          %v1917 = vpop.f32.mrf.mxu0
          %v1918 = vadd.f32 %v1537, %v1917
          %1919 = vmatprep.mubr.f32.mxu0 0.0
          %v1920 = vand.u32 %v562, 4294901760
          %v1921 = vsub.f32 %v562, %v1920
          %1922 = vmatmul.mubr.f32.gmra.mxu0 %v1921
          %v1923 = vpop.f32.mrf.mxu0
          %v1924 = vadd.f32 %v1542, %v1923
          %v1925 = vpop.f32.mrf.mxu0
          %v1926 = vadd.f32 %v1544, %v1925
          %1927 = vmatprep.mubr.f32.mxu0 0.0
          %v1928 = vand.u32 %v565, 4294901760
          %v1929 = vsub.f32 %v565, %v1928
          %1930 = vmatmul.mubr.f32.gmra.mxu0 %v1929
          %v1931 = vpop.f32.mrf.mxu0
          %v1932 = vadd.f32 %v1549, %v1931
          %v1933 = vpop.f32.mrf.mxu0
          %v1934 = vadd.f32 %v1551, %v1933
          %1935 = vmatprep.mubr.f32.mxu0 0.0
          %v1936 = vand.u32 %v568, 4294901760
          %v1937 = vsub.f32 %v568, %v1936
          %1938 = vmatmul.mubr.f32.gmra.mxu0 %v1937
          %v1939 = vpop.f32.mrf.mxu0
          %v1940 = vadd.f32 %v1556, %v1939
          %v1941 = vpop.f32.mrf.mxu0
          %v1942 = vadd.f32 %v1558, %v1941
          %1943 = vmatprep.mubr.f32.mxu0 0.0
          %v1944 = vand.u32 %v571, 4294901760
          %v1945 = vsub.f32 %v571, %v1944
          %1946 = vmatmul.mubr.f32.gmra.mxu0 %v1945
          %v1947 = vpop.f32.mrf.mxu0
          %v1948 = vadd.f32 %v1563, %v1947
          %v1949 = vpop.f32.mrf.mxu0
          %v1950 = vadd.f32 %v1565, %v1949
          %1951 = vdwg.mxu0
          %1952 = vmatprep.subr.mxu0 0.0
          %v1953 = vand.u32 %v619, 4294901760
          %1954 = vmatpush1.xpose.msra.mxu0 %v1953
          %1955 = vmatprep.subr.mxu0 0.0
          %v1956 = vand.u32 %v616, 4294901760
          %1957 = vmatpush1.xpose.msra.mxu0 %v1956
          %1958 = vmatprep.subr.mxu0 0.0
          %v1959 = vand.u32 %v613, 4294901760
          %1960 = vmatpush1.xpose.msra.mxu0 %v1959
          %1961 = vmatprep.subr.mxu0 0.0
          %v1962 = vand.u32 %v610, 4294901760
          %1963 = vmatpush1.xpose.msra.mxu0 %v1962
          %1964 = vmatprep.subr.mxu0 0.0
          %v1965 = vand.u32 %v607, 4294901760
          %1966 = vmatpush1.xpose.msra.mxu0 %v1965
          %1967 = vmatprep.subr.mxu0 0.0
          %v1968 = vand.u32 %v604, 4294901760
          %1969 = vmatpush1.xpose.msra.mxu0 %v1968
          %1970 = vmatprep.subr.mxu0 0.0
          %v1971 = vand.u32 %v601, 4294901760
          %1972 = vmatpush1.xpose.msra.mxu0 %v1971
          %1973 = vmatprep.subr.mxu0 0.0
          %v1974 = vand.u32 %v598, 4294901760
          %1975 = vmatpush1.xpose.msra.mxu0 %v1974
          %1976 = vmatprep.subr.mxu0 0.0
          %v1977 = vand.u32 %v595, 4294901760
          %1978 = vmatpush1.xpose.msra.mxu0 %v1977
          %1979 = vmatprep.subr.mxu0 0.0
          %v1980 = vand.u32 %v592, 4294901760
          %1981 = vmatpush1.xpose.msra.mxu0 %v1980
          %1982 = vmatprep.subr.mxu0 0.0
          %v1983 = vand.u32 %v589, 4294901760
          %1984 = vmatpush1.xpose.msra.mxu0 %v1983
          %1985 = vmatprep.subr.mxu0 0.0
          %v1986 = vand.u32 %v586, 4294901760
          %1987 = vmatpush1.xpose.msra.mxu0 %v1986
          %1988 = vmatprep.subr.mxu0 0.0
          %v1989 = vand.u32 %v583, 4294901760
          %1990 = vmatpush1.xpose.msra.mxu0 %v1989
          %1991 = vmatprep.subr.mxu0 0.0
          %v1992 = vand.u32 %v580, 4294901760
          %1993 = vmatpush1.xpose.msra.mxu0 %v1992
          %1994 = vmatprep.subr.mxu0 0.0
          %v1995 = vand.u32 %v577, 4294901760
          %1996 = vmatpush1.xpose.msra.mxu0 %v1995
          %1997 = vmatprep.subr.mxu0 0.0
          %v1998 = vand.u32 %v574, 4294901760
          %1999 = vmatpush1.xpose.msra.mxu0 %v1998
          %2000 = vmatprep.subr.mxu0 0.0
          %v2001 = vand.u32 %v667, 4294901760
          %2002 = vmatpush2.xpose.msra.mxu0 %v2001
          %2003 = vmatprep.subr.mxu0 0.0
          %v2004 = vand.u32 %v664, 4294901760
          %2005 = vmatpush2.xpose.msra.mxu0 %v2004
          %2006 = vmatprep.subr.mxu0 0.0
          %v2007 = vand.u32 %v661, 4294901760
          %2008 = vmatpush2.xpose.msra.mxu0 %v2007
          %2009 = vmatprep.subr.mxu0 0.0
          %v2010 = vand.u32 %v658, 4294901760
          %2011 = vmatpush2.xpose.msra.mxu0 %v2010
          %2012 = vmatprep.subr.mxu0 0.0
          %v2013 = vand.u32 %v655, 4294901760
          %2014 = vmatpush2.xpose.msra.mxu0 %v2013
          %2015 = vmatprep.subr.mxu0 0.0
          %v2016 = vand.u32 %v652, 4294901760
          %2017 = vmatpush2.xpose.msra.mxu0 %v2016
          %2018 = vmatprep.subr.mxu0 0.0
          %v2019 = vand.u32 %v649, 4294901760
          %2020 = vmatpush2.xpose.msra.mxu0 %v2019
          %2021 = vmatprep.subr.mxu0 0.0
          %v2022 = vand.u32 %v646, 4294901760
          %2023 = vmatpush2.xpose.msra.mxu0 %v2022
          %2024 = vmatprep.subr.mxu0 0.0
          %v2025 = vand.u32 %v643, 4294901760
          %2026 = vmatpush2.xpose.msra.mxu0 %v2025
          %2027 = vmatprep.subr.mxu0 0.0
          %v2028 = vand.u32 %v640, 4294901760
          %2029 = vmatpush2.xpose.msra.mxu0 %v2028
          %2030 = vmatprep.subr.mxu0 0.0
          %v2031 = vand.u32 %v637, 4294901760
          %2032 = vmatpush2.xpose.msra.mxu0 %v2031
          %2033 = vmatprep.subr.mxu0 0.0
          %v2034 = vand.u32 %v634, 4294901760
          %2035 = vmatpush2.xpose.msra.mxu0 %v2034
          %2036 = vmatprep.subr.mxu0 0.0
          %v2037 = vand.u32 %v631, 4294901760
          %2038 = vmatpush2.xpose.msra.mxu0 %v2037
          %2039 = vmatprep.subr.mxu0 0.0
          %v2040 = vand.u32 %v628, 4294901760
          %2041 = vmatpush2.xpose.msra.mxu0 %v2040
          %2042 = vmatprep.subr.mxu0 0.0
          %v2043 = vand.u32 %v625, 4294901760
          %2044 = vmatpush2.xpose.msra.mxu0 %v2043
          %2045 = vmatprep.subr.mxu0 0.0
          %v2046 = vand.u32 %v622, 4294901760
          %2047 = vmatpush2.xpose.msra.mxu0 %v2046
          %2048 = vmatprep.mubr.f32.mxu0 0.0
          %v2049 = vand.u32 %v478, 4294901760
          %v2050 = vsub.f32 %v478, %v2049
          %v2051 = vand.u32 %v2050, 4294901760
          %2052 = vmatmul.mubr.f32.gmra.mxu0 %v2051
          %v2053 = vpop.f32.mrf.mxu0
          %v2054 = vadd.f32 %v1700, %v2053
          %v2055 = vpop.f32.mrf.mxu0
          %v2056 = vadd.f32 %v1702, %v2055
          %2057 = vmatprep.mubr.f32.mxu0 0.0
          %v2058 = vand.u32 %v481, 4294901760
          %v2059 = vsub.f32 %v481, %v2058
          %v2060 = vand.u32 %v2059, 4294901760
          %2061 = vmatmul.mubr.f32.gmra.mxu0 %v2060
          %v2062 = vpop.f32.mrf.mxu0
          %v2063 = vadd.f32 %v1708, %v2062
          %v2064 = vpop.f32.mrf.mxu0
          %v2065 = vadd.f32 %v1710, %v2064
          %2066 = vmatprep.mubr.f32.mxu0 0.0
          %v2067 = vand.u32 %v484, 4294901760
          %v2068 = vsub.f32 %v484, %v2067
          %v2069 = vand.u32 %v2068, 4294901760
          %2070 = vmatmul.mubr.f32.gmra.mxu0 %v2069
          %v2071 = vpop.f32.mrf.mxu0
          %v2072 = vadd.f32 %v1716, %v2071
          %v2073 = vpop.f32.mrf.mxu0
          %v2074 = vadd.f32 %v1718, %v2073
          %2075 = vmatprep.mubr.f32.mxu0 0.0
          %v2076 = vand.u32 %v487, 4294901760
          %v2077 = vsub.f32 %v487, %v2076
          %v2078 = vand.u32 %v2077, 4294901760
          %2079 = vmatmul.mubr.f32.gmra.mxu0 %v2078
          %v2080 = vpop.f32.mrf.mxu0
          %v2081 = vadd.f32 %v1724, %v2080
          %v2082 = vpop.f32.mrf.mxu0
          %v2083 = vadd.f32 %v1726, %v2082
          %2084 = vmatprep.mubr.f32.mxu0 0.0
          %v2085 = vand.u32 %v490, 4294901760
          %v2086 = vsub.f32 %v490, %v2085
          %v2087 = vand.u32 %v2086, 4294901760
          %2088 = vmatmul.mubr.f32.gmra.mxu0 %v2087
          %v2089 = vpop.f32.mrf.mxu0
          %v2090 = vadd.f32 %v1732, %v2089
          %v2091 = vpop.f32.mrf.mxu0
          %v2092 = vadd.f32 %v1734, %v2091
          %2093 = vmatprep.mubr.f32.mxu0 0.0
          %v2094 = vand.u32 %v493, 4294901760
          %v2095 = vsub.f32 %v493, %v2094
          %v2096 = vand.u32 %v2095, 4294901760
          %2097 = vmatmul.mubr.f32.gmra.mxu0 %v2096
          %v2098 = vpop.f32.mrf.mxu0
          %v2099 = vadd.f32 %v1740, %v2098
          %v2100 = vpop.f32.mrf.mxu0
          %v2101 = vadd.f32 %v1742, %v2100
          %2102 = vmatprep.mubr.f32.mxu0 0.0
          %v2103 = vand.u32 %v496, 4294901760
          %v2104 = vsub.f32 %v496, %v2103
          %v2105 = vand.u32 %v2104, 4294901760
          %2106 = vmatmul.mubr.f32.gmra.mxu0 %v2105
          %v2107 = vpop.f32.mrf.mxu0
          %v2108 = vadd.f32 %v1748, %v2107
          %v2109 = vpop.f32.mrf.mxu0
          %v2110 = vadd.f32 %v1750, %v2109
          %2111 = vmatprep.mubr.f32.mxu0 0.0
          %v2112 = vand.u32 %v499, 4294901760
          %v2113 = vsub.f32 %v499, %v2112
          %v2114 = vand.u32 %v2113, 4294901760
          %2115 = vmatmul.mubr.f32.gmra.mxu0 %v2114
          %v2116 = vpop.f32.mrf.mxu0
          %v2117 = vadd.f32 %v1756, %v2116
          %v2118 = vpop.f32.mrf.mxu0
          %v2119 = vadd.f32 %v1758, %v2118
          %2120 = vmatprep.mubr.f32.mxu0 0.0
          %v2121 = vand.u32 %v502, 4294901760
          %v2122 = vsub.f32 %v502, %v2121
          %v2123 = vand.u32 %v2122, 4294901760
          %2124 = vmatmul.mubr.f32.gmra.mxu0 %v2123
          %v2125 = vpop.f32.mrf.mxu0
          %v2126 = vadd.f32 %v1764, %v2125
          %v2127 = vpop.f32.mrf.mxu0
          %v2128 = vadd.f32 %v1766, %v2127
          %2129 = vmatprep.mubr.f32.mxu0 0.0
          %v2130 = vand.u32 %v505, 4294901760
          %v2131 = vsub.f32 %v505, %v2130
          %v2132 = vand.u32 %v2131, 4294901760
          %2133 = vmatmul.mubr.f32.gmra.mxu0 %v2132
          %v2134 = vpop.f32.mrf.mxu0
          %v2135 = vadd.f32 %v1772, %v2134
          %v2136 = vpop.f32.mrf.mxu0
          %v2137 = vadd.f32 %v1774, %v2136
          %2138 = vmatprep.mubr.f32.mxu0 0.0
          %v2139 = vand.u32 %v508, 4294901760
          %v2140 = vsub.f32 %v508, %v2139
          %v2141 = vand.u32 %v2140, 4294901760
          %2142 = vmatmul.mubr.f32.gmra.mxu0 %v2141
          %v2143 = vpop.f32.mrf.mxu0
          %v2144 = vadd.f32 %v1780, %v2143
          %v2145 = vpop.f32.mrf.mxu0
          %v2146 = vadd.f32 %v1782, %v2145
          %2147 = vmatprep.mubr.f32.mxu0 0.0
          %v2148 = vand.u32 %v511, 4294901760
          %v2149 = vsub.f32 %v511, %v2148
          %v2150 = vand.u32 %v2149, 4294901760
          %2151 = vmatmul.mubr.f32.gmra.mxu0 %v2150
          %v2152 = vpop.f32.mrf.mxu0
          %v2153 = vadd.f32 %v1788, %v2152
          %v2154 = vpop.f32.mrf.mxu0
          %v2155 = vadd.f32 %v1790, %v2154
          %2156 = vmatprep.mubr.f32.mxu0 0.0
          %v2157 = vand.u32 %v514, 4294901760
          %v2158 = vsub.f32 %v514, %v2157
          %v2159 = vand.u32 %v2158, 4294901760
          %2160 = vmatmul.mubr.f32.gmra.mxu0 %v2159
          %v2161 = vpop.f32.mrf.mxu0
          %v2162 = vadd.f32 %v1796, %v2161
          %v2163 = vpop.f32.mrf.mxu0
          %v2164 = vadd.f32 %v1798, %v2163
          %2165 = vmatprep.mubr.f32.mxu0 0.0
          %v2166 = vand.u32 %v517, 4294901760
          %v2167 = vsub.f32 %v517, %v2166
          %v2168 = vand.u32 %v2167, 4294901760
          %2169 = vmatmul.mubr.f32.gmra.mxu0 %v2168
          %v2170 = vpop.f32.mrf.mxu0
          %v2171 = vadd.f32 %v1804, %v2170
          %v2172 = vpop.f32.mrf.mxu0
          %v2173 = vadd.f32 %v1806, %v2172
          %2174 = vmatprep.mubr.f32.mxu0 0.0
          %v2175 = vand.u32 %v520, 4294901760
          %v2176 = vsub.f32 %v520, %v2175
          %v2177 = vand.u32 %v2176, 4294901760
          %2178 = vmatmul.mubr.f32.gmra.mxu0 %v2177
          %v2179 = vpop.f32.mrf.mxu0
          %v2180 = vadd.f32 %v1812, %v2179
          %v2181 = vpop.f32.mrf.mxu0
          %v2182 = vadd.f32 %v1814, %v2181
          %2183 = vmatprep.mubr.f32.mxu0 0.0
          %v2184 = vand.u32 %v523, 4294901760
          %v2185 = vsub.f32 %v523, %v2184
          %v2186 = vand.u32 %v2185, 4294901760
          %2187 = vmatmul.mubr.f32.gmra.mxu0 %v2186
          %v2188 = vpop.f32.mrf.mxu0
          %v2189 = vadd.f32 %v1820, %v2188
          %v2190 = vpop.f32.mrf.mxu0
          %v2191 = vadd.f32 %v1822, %v2190
          %2192 = vmatprep.mubr.f32.mxu0 0.0
          %v2193 = vand.u32 %v526, 4294901760
          %v2194 = vsub.f32 %v526, %v2193
          %v2195 = vand.u32 %v2194, 4294901760
          %2196 = vmatmul.mubr.f32.gmra.mxu0 %v2195
          %v2197 = vpop.f32.mrf.mxu0
          %v2198 = vadd.f32 %v1828, %v2197
          %v2199 = vpop.f32.mrf.mxu0
          %v2200 = vadd.f32 %v1830, %v2199
          %2201 = vmatprep.mubr.f32.mxu0 0.0
          %v2202 = vand.u32 %v529, 4294901760
          %v2203 = vsub.f32 %v529, %v2202
          %v2204 = vand.u32 %v2203, 4294901760
          %2205 = vmatmul.mubr.f32.gmra.mxu0 %v2204
          %v2206 = vpop.f32.mrf.mxu0
          %v2207 = vadd.f32 %v1836, %v2206
          %v2208 = vpop.f32.mrf.mxu0
          %v2209 = vadd.f32 %v1838, %v2208
          %2210 = vmatprep.mubr.f32.mxu0 0.0
          %v2211 = vand.u32 %v532, 4294901760
          %v2212 = vsub.f32 %v532, %v2211
          %v2213 = vand.u32 %v2212, 4294901760
          %2214 = vmatmul.mubr.f32.gmra.mxu0 %v2213
          %v2215 = vpop.f32.mrf.mxu0
          %v2216 = vadd.f32 %v1844, %v2215
          %v2217 = vpop.f32.mrf.mxu0
          %v2218 = vadd.f32 %v1846, %v2217
          %2219 = vmatprep.mubr.f32.mxu0 0.0
          %v2220 = vand.u32 %v535, 4294901760
          %v2221 = vsub.f32 %v535, %v2220
          %v2222 = vand.u32 %v2221, 4294901760
          %2223 = vmatmul.mubr.f32.gmra.mxu0 %v2222
          %v2224 = vpop.f32.mrf.mxu0
          %v2225 = vadd.f32 %v1852, %v2224
          %v2226 = vpop.f32.mrf.mxu0
          %v2227 = vadd.f32 %v1854, %v2226
          %2228 = vmatprep.mubr.f32.mxu0 0.0
          %v2229 = vand.u32 %v538, 4294901760
          %v2230 = vsub.f32 %v538, %v2229
          %v2231 = vand.u32 %v2230, 4294901760
          %2232 = vmatmul.mubr.f32.gmra.mxu0 %v2231
          %v2233 = vpop.f32.mrf.mxu0
          %v2234 = vadd.f32 %v1860, %v2233
          %v2235 = vpop.f32.mrf.mxu0
          %v2236 = vadd.f32 %v1862, %v2235
          %2237 = vmatprep.mubr.f32.mxu0 0.0
          %v2238 = vand.u32 %v541, 4294901760
          %v2239 = vsub.f32 %v541, %v2238
          %v2240 = vand.u32 %v2239, 4294901760
          %2241 = vmatmul.mubr.f32.gmra.mxu0 %v2240
          %v2242 = vpop.f32.mrf.mxu0
          %v2243 = vadd.f32 %v1868, %v2242
          %v2244 = vpop.f32.mrf.mxu0
          %v2245 = vadd.f32 %v1870, %v2244
          %2246 = vmatprep.mubr.f32.mxu0 0.0
          %v2247 = vand.u32 %v544, 4294901760
          %v2248 = vsub.f32 %v544, %v2247
          %v2249 = vand.u32 %v2248, 4294901760
          %2250 = vmatmul.mubr.f32.gmra.mxu0 %v2249
          %v2251 = vpop.f32.mrf.mxu0
          %v2252 = vadd.f32 %v1876, %v2251
          %v2253 = vpop.f32.mrf.mxu0
          %v2254 = vadd.f32 %v1878, %v2253
          %2255 = vmatprep.mubr.f32.mxu0 0.0
          %v2256 = vand.u32 %v547, 4294901760
          %v2257 = vsub.f32 %v547, %v2256
          %v2258 = vand.u32 %v2257, 4294901760
          %2259 = vmatmul.mubr.f32.gmra.mxu0 %v2258
          %v2260 = vpop.f32.mrf.mxu0
          %v2261 = vadd.f32 %v1884, %v2260
          %v2262 = vpop.f32.mrf.mxu0
          %v2263 = vadd.f32 %v1886, %v2262
          %2264 = vmatprep.mubr.f32.mxu0 0.0
          %v2265 = vand.u32 %v550, 4294901760
          %v2266 = vsub.f32 %v550, %v2265
          %v2267 = vand.u32 %v2266, 4294901760
          %2268 = vmatmul.mubr.f32.gmra.mxu0 %v2267
          %v2269 = vpop.f32.mrf.mxu0
          %v2270 = vadd.f32 %v1892, %v2269
          %v2271 = vpop.f32.mrf.mxu0
          %v2272 = vadd.f32 %v1894, %v2271
          %2273 = vmatprep.mubr.f32.mxu0 0.0
          %v2274 = vand.u32 %v553, 4294901760
          %v2275 = vsub.f32 %v553, %v2274
          %v2276 = vand.u32 %v2275, 4294901760
          %2277 = vmatmul.mubr.f32.gmra.mxu0 %v2276
          %v2278 = vpop.f32.mrf.mxu0
          %v2279 = vadd.f32 %v1900, %v2278
          %v2280 = vpop.f32.mrf.mxu0
          %v2281 = vadd.f32 %v1902, %v2280
          %2282 = vmatprep.mubr.f32.mxu0 0.0
          %v2283 = vand.u32 %v556, 4294901760
          %v2284 = vsub.f32 %v556, %v2283
          %v2285 = vand.u32 %v2284, 4294901760
          %2286 = vmatmul.mubr.f32.gmra.mxu0 %v2285
          %v2287 = vpop.f32.mrf.mxu0
          %v2288 = vadd.f32 %v1908, %v2287
          %v2289 = vpop.f32.mrf.mxu0
          %v2290 = vadd.f32 %v1910, %v2289
          %2291 = vmatprep.mubr.f32.mxu0 0.0
          %v2292 = vand.u32 %v559, 4294901760
          %v2293 = vsub.f32 %v559, %v2292
          %v2294 = vand.u32 %v2293, 4294901760
          %2295 = vmatmul.mubr.f32.gmra.mxu0 %v2294
          %v2296 = vpop.f32.mrf.mxu0
          %v2297 = vadd.f32 %v1916, %v2296
          %v2298 = vpop.f32.mrf.mxu0
          %v2299 = vadd.f32 %v1918, %v2298
          %2300 = vmatprep.mubr.f32.mxu0 0.0
          %v2301 = vand.u32 %v562, 4294901760
          %v2302 = vsub.f32 %v562, %v2301
          %v2303 = vand.u32 %v2302, 4294901760
          %2304 = vmatmul.mubr.f32.gmra.mxu0 %v2303
          %v2305 = vpop.f32.mrf.mxu0
          %v2306 = vadd.f32 %v1924, %v2305
          %v2307 = vpop.f32.mrf.mxu0
          %v2308 = vadd.f32 %v1926, %v2307
          %2309 = vmatprep.mubr.f32.mxu0 0.0
          %v2310 = vand.u32 %v565, 4294901760
          %v2311 = vsub.f32 %v565, %v2310
          %v2312 = vand.u32 %v2311, 4294901760
          %2313 = vmatmul.mubr.f32.gmra.mxu0 %v2312
          %v2314 = vpop.f32.mrf.mxu0
          %v2315 = vadd.f32 %v1932, %v2314
          %v2316 = vpop.f32.mrf.mxu0
          %v2317 = vadd.f32 %v1934, %v2316
          %2318 = vmatprep.mubr.f32.mxu0 0.0
          %v2319 = vand.u32 %v568, 4294901760
          %v2320 = vsub.f32 %v568, %v2319
          %v2321 = vand.u32 %v2320, 4294901760
          %2322 = vmatmul.mubr.f32.gmra.mxu0 %v2321
          %v2323 = vpop.f32.mrf.mxu0
          %v2324 = vadd.f32 %v1940, %v2323
          %v2325 = vpop.f32.mrf.mxu0
          %v2326 = vadd.f32 %v1942, %v2325
          %2327 = vmatprep.mubr.f32.mxu0 0.0
          %v2328 = vand.u32 %v571, 4294901760
          %v2329 = vsub.f32 %v571, %v2328
          %v2330 = vand.u32 %v2329, 4294901760
          %2331 = vmatmul.mubr.f32.gmra.mxu0 %v2330
          %v2332 = vpop.f32.mrf.mxu0
          %v2333 = vadd.f32 %v1948, %v2332
          %v2334 = vpop.f32.mrf.mxu0
          %v2335 = vadd.f32 %v1950, %v2334
          %2336 = vdwg.mxu0
          %2337 = vmatprep.subr.mxu0 0.0
          %v2338 = vand.u32 %v619, 4294901760
          %v2339 = vsub.f32 %v619, %v2338
          %v2340 = vand.u32 %v2339, 4294901760
          %2341 = vmatpush1.xpose.msra.mxu0 %v2340
          %2342 = vmatprep.subr.mxu0 0.0
          %v2343 = vand.u32 %v616, 4294901760
          %v2344 = vsub.f32 %v616, %v2343
          %v2345 = vand.u32 %v2344, 4294901760
          %2346 = vmatpush1.xpose.msra.mxu0 %v2345
          %2347 = vmatprep.subr.mxu0 0.0
          %v2348 = vand.u32 %v613, 4294901760
          %v2349 = vsub.f32 %v613, %v2348
          %v2350 = vand.u32 %v2349, 4294901760
          %2351 = vmatpush1.xpose.msra.mxu0 %v2350
          %2352 = vmatprep.subr.mxu0 0.0
          %v2353 = vand.u32 %v610, 4294901760
          %v2354 = vsub.f32 %v610, %v2353
          %v2355 = vand.u32 %v2354, 4294901760
          %2356 = vmatpush1.xpose.msra.mxu0 %v2355
          %2357 = vmatprep.subr.mxu0 0.0
          %v2358 = vand.u32 %v607, 4294901760
          %v2359 = vsub.f32 %v607, %v2358
          %v2360 = vand.u32 %v2359, 4294901760
          %2361 = vmatpush1.xpose.msra.mxu0 %v2360
          %2362 = vmatprep.subr.mxu0 0.0
          %v2363 = vand.u32 %v604, 4294901760
          %v2364 = vsub.f32 %v604, %v2363
          %v2365 = vand.u32 %v2364, 4294901760
          %2366 = vmatpush1.xpose.msra.mxu0 %v2365
          %2367 = vmatprep.subr.mxu0 0.0
          %v2368 = vand.u32 %v601, 4294901760
          %v2369 = vsub.f32 %v601, %v2368
          %v2370 = vand.u32 %v2369, 4294901760
          %2371 = vmatpush1.xpose.msra.mxu0 %v2370
          %2372 = vmatprep.subr.mxu0 0.0
          %v2373 = vand.u32 %v598, 4294901760
          %v2374 = vsub.f32 %v598, %v2373
          %v2375 = vand.u32 %v2374, 4294901760
          %2376 = vmatpush1.xpose.msra.mxu0 %v2375
          %2377 = vmatprep.subr.mxu0 0.0
          %v2378 = vand.u32 %v595, 4294901760
          %v2379 = vsub.f32 %v595, %v2378
          %v2380 = vand.u32 %v2379, 4294901760
          %2381 = vmatpush1.xpose.msra.mxu0 %v2380
          %2382 = vmatprep.subr.mxu0 0.0
          %v2383 = vand.u32 %v592, 4294901760
          %v2384 = vsub.f32 %v592, %v2383
          %v2385 = vand.u32 %v2384, 4294901760
          %2386 = vmatpush1.xpose.msra.mxu0 %v2385
          %2387 = vmatprep.subr.mxu0 0.0
          %v2388 = vand.u32 %v589, 4294901760
          %v2389 = vsub.f32 %v589, %v2388
          %v2390 = vand.u32 %v2389, 4294901760
          %2391 = vmatpush1.xpose.msra.mxu0 %v2390
          %2392 = vmatprep.subr.mxu0 0.0
          %v2393 = vand.u32 %v586, 4294901760
          %v2394 = vsub.f32 %v586, %v2393
          %v2395 = vand.u32 %v2394, 4294901760
          %2396 = vmatpush1.xpose.msra.mxu0 %v2395
          %2397 = vmatprep.subr.mxu0 0.0
          %v2398 = vand.u32 %v583, 4294901760
          %v2399 = vsub.f32 %v583, %v2398
          %v2400 = vand.u32 %v2399, 4294901760
          %2401 = vmatpush1.xpose.msra.mxu0 %v2400
          %2402 = vmatprep.subr.mxu0 0.0
          %v2403 = vand.u32 %v580, 4294901760
          %v2404 = vsub.f32 %v580, %v2403
          %v2405 = vand.u32 %v2404, 4294901760
          %2406 = vmatpush1.xpose.msra.mxu0 %v2405
          %2407 = vmatprep.subr.mxu0 0.0
          %v2408 = vand.u32 %v577, 4294901760
          %v2409 = vsub.f32 %v577, %v2408
          %v2410 = vand.u32 %v2409, 4294901760
          %2411 = vmatpush1.xpose.msra.mxu0 %v2410
          %2412 = vmatprep.subr.mxu0 0.0
          %v2413 = vand.u32 %v574, 4294901760
          %v2414 = vsub.f32 %v574, %v2413
          %v2415 = vand.u32 %v2414, 4294901760
          %2416 = vmatpush1.xpose.msra.mxu0 %v2415
          %2417 = vmatprep.subr.mxu0 0.0
          %v2418 = vand.u32 %v667, 4294901760
          %v2419 = vsub.f32 %v667, %v2418
          %v2420 = vand.u32 %v2419, 4294901760
          %2421 = vmatpush2.xpose.msra.mxu0 %v2420
          %2422 = vmatprep.subr.mxu0 0.0
          %v2423 = vand.u32 %v664, 4294901760
          %v2424 = vsub.f32 %v664, %v2423
          %v2425 = vand.u32 %v2424, 4294901760
          %2426 = vmatpush2.xpose.msra.mxu0 %v2425
          %2427 = vmatprep.subr.mxu0 0.0
          %v2428 = vand.u32 %v661, 4294901760
          %v2429 = vsub.f32 %v661, %v2428
          %v2430 = vand.u32 %v2429, 4294901760
          %2431 = vmatpush2.xpose.msra.mxu0 %v2430
          %2432 = vmatprep.subr.mxu0 0.0
          %v2433 = vand.u32 %v658, 4294901760
          %v2434 = vsub.f32 %v658, %v2433
          %v2435 = vand.u32 %v2434, 4294901760
          %2436 = vmatpush2.xpose.msra.mxu0 %v2435
          %2437 = vmatprep.subr.mxu0 0.0
          %v2438 = vand.u32 %v655, 4294901760
          %v2439 = vsub.f32 %v655, %v2438
          %v2440 = vand.u32 %v2439, 4294901760
          %2441 = vmatpush2.xpose.msra.mxu0 %v2440
          %2442 = vmatprep.subr.mxu0 0.0
          %v2443 = vand.u32 %v652, 4294901760
          %v2444 = vsub.f32 %v652, %v2443
          %v2445 = vand.u32 %v2444, 4294901760
          %2446 = vmatpush2.xpose.msra.mxu0 %v2445
          %2447 = vmatprep.subr.mxu0 0.0
          %v2448 = vand.u32 %v649, 4294901760
          %v2449 = vsub.f32 %v649, %v2448
          %v2450 = vand.u32 %v2449, 4294901760
          %2451 = vmatpush2.xpose.msra.mxu0 %v2450
          %2452 = vmatprep.subr.mxu0 0.0
          %v2453 = vand.u32 %v646, 4294901760
          %v2454 = vsub.f32 %v646, %v2453
          %v2455 = vand.u32 %v2454, 4294901760
          %2456 = vmatpush2.xpose.msra.mxu0 %v2455
          %2457 = vmatprep.subr.mxu0 0.0
          %v2458 = vand.u32 %v643, 4294901760
          %v2459 = vsub.f32 %v643, %v2458
          %v2460 = vand.u32 %v2459, 4294901760
          %2461 = vmatpush2.xpose.msra.mxu0 %v2460
          %2462 = vmatprep.subr.mxu0 0.0
          %v2463 = vand.u32 %v640, 4294901760
          %v2464 = vsub.f32 %v640, %v2463
          %v2465 = vand.u32 %v2464, 4294901760
          %2466 = vmatpush2.xpose.msra.mxu0 %v2465
          %2467 = vmatprep.subr.mxu0 0.0
          %v2468 = vand.u32 %v637, 4294901760
          %v2469 = vsub.f32 %v637, %v2468
          %v2470 = vand.u32 %v2469, 4294901760
          %2471 = vmatpush2.xpose.msra.mxu0 %v2470
          %2472 = vmatprep.subr.mxu0 0.0
          %v2473 = vand.u32 %v634, 4294901760
          %v2474 = vsub.f32 %v634, %v2473
          %v2475 = vand.u32 %v2474, 4294901760
          %2476 = vmatpush2.xpose.msra.mxu0 %v2475
          %2477 = vmatprep.subr.mxu0 0.0
          %v2478 = vand.u32 %v631, 4294901760
          %v2479 = vsub.f32 %v631, %v2478
          %v2480 = vand.u32 %v2479, 4294901760
          %2481 = vmatpush2.xpose.msra.mxu0 %v2480
          %2482 = vmatprep.subr.mxu0 0.0
          %v2483 = vand.u32 %v628, 4294901760
          %v2484 = vsub.f32 %v628, %v2483
          %v2485 = vand.u32 %v2484, 4294901760
          %2486 = vmatpush2.xpose.msra.mxu0 %v2485
          %2487 = vmatprep.subr.mxu0 0.0
          %v2488 = vand.u32 %v625, 4294901760
          %v2489 = vsub.f32 %v625, %v2488
          %v2490 = vand.u32 %v2489, 4294901760
          %2491 = vmatpush2.xpose.msra.mxu0 %v2490
          %2492 = vmatprep.subr.mxu0 0.0
          %v2493 = vand.u32 %v622, 4294901760
          %v2494 = vsub.f32 %v622, %v2493
          %v2495 = vand.u32 %v2494, 4294901760
          %2496 = vmatpush2.xpose.msra.mxu0 %v2495
          %2497 = vmatprep.mubr.f32.mxu0 0.0
          %v2498 = vand.u32 %v478, 4294901760
          %2499 = vmatmul.mubr.f32.gmra.mxu0 %v2498
          %v2500 = vpop.f32.mrf.mxu0
          %v2501 = vadd.f32 %v2054, %v2500
          %v2502 = vpop.f32.mrf.mxu0
          %v2503 = vadd.f32 %v2056, %v2502
          %2504 = vmatprep.mubr.f32.mxu0 0.0
          %v2505 = vand.u32 %v481, 4294901760
          %2506 = vmatmul.mubr.f32.gmra.mxu0 %v2505
          %v2507 = vpop.f32.mrf.mxu0
          %v2508 = vadd.f32 %v2063, %v2507
          %v2509 = vpop.f32.mrf.mxu0
          %v2510 = vadd.f32 %v2065, %v2509
          %2511 = vmatprep.mubr.f32.mxu0 0.0
          %v2512 = vand.u32 %v484, 4294901760
          %2513 = vmatmul.mubr.f32.gmra.mxu0 %v2512
          %v2514 = vpop.f32.mrf.mxu0
          %v2515 = vadd.f32 %v2072, %v2514
          %v2516 = vpop.f32.mrf.mxu0
          %v2517 = vadd.f32 %v2074, %v2516
          %2518 = vmatprep.mubr.f32.mxu0 0.0
          %v2519 = vand.u32 %v487, 4294901760
          %2520 = vmatmul.mubr.f32.gmra.mxu0 %v2519
          %v2521 = vpop.f32.mrf.mxu0
          %v2522 = vadd.f32 %v2081, %v2521
          %v2523 = vpop.f32.mrf.mxu0
          %v2524 = vadd.f32 %v2083, %v2523
          %2525 = vmatprep.mubr.f32.mxu0 0.0
          %v2526 = vand.u32 %v490, 4294901760
          %2527 = vmatmul.mubr.f32.gmra.mxu0 %v2526
          %v2528 = vpop.f32.mrf.mxu0
          %v2529 = vadd.f32 %v2090, %v2528
          %v2530 = vpop.f32.mrf.mxu0
          %v2531 = vadd.f32 %v2092, %v2530
          %2532 = vmatprep.mubr.f32.mxu0 0.0
          %v2533 = vand.u32 %v493, 4294901760
          %2534 = vmatmul.mubr.f32.gmra.mxu0 %v2533
          %v2535 = vpop.f32.mrf.mxu0
          %v2536 = vadd.f32 %v2099, %v2535
          %v2537 = vpop.f32.mrf.mxu0
          %v2538 = vadd.f32 %v2101, %v2537
          %2539 = vmatprep.mubr.f32.mxu0 0.0
          %v2540 = vand.u32 %v496, 4294901760
          %2541 = vmatmul.mubr.f32.gmra.mxu0 %v2540
          %v2542 = vpop.f32.mrf.mxu0
          %v2543 = vadd.f32 %v2108, %v2542
          %v2544 = vpop.f32.mrf.mxu0
          %v2545 = vadd.f32 %v2110, %v2544
          %2546 = vmatprep.mubr.f32.mxu0 0.0
          %v2547 = vand.u32 %v499, 4294901760
          %2548 = vmatmul.mubr.f32.gmra.mxu0 %v2547
          %v2549 = vpop.f32.mrf.mxu0
          %v2550 = vadd.f32 %v2117, %v2549
          %v2551 = vpop.f32.mrf.mxu0
          %v2552 = vadd.f32 %v2119, %v2551
          %2553 = vmatprep.mubr.f32.mxu0 0.0
          %v2554 = vand.u32 %v502, 4294901760
          %2555 = vmatmul.mubr.f32.gmra.mxu0 %v2554
          %v2556 = vpop.f32.mrf.mxu0
          %v2557 = vadd.f32 %v2126, %v2556
          %v2558 = vpop.f32.mrf.mxu0
          %v2559 = vadd.f32 %v2128, %v2558
          %2560 = vmatprep.mubr.f32.mxu0 0.0
          %v2561 = vand.u32 %v505, 4294901760
          %2562 = vmatmul.mubr.f32.gmra.mxu0 %v2561
          %v2563 = vpop.f32.mrf.mxu0
          %v2564 = vadd.f32 %v2135, %v2563
          %v2565 = vpop.f32.mrf.mxu0
          %v2566 = vadd.f32 %v2137, %v2565
          %2567 = vmatprep.mubr.f32.mxu0 0.0
          %v2568 = vand.u32 %v508, 4294901760
          %2569 = vmatmul.mubr.f32.gmra.mxu0 %v2568
          %v2570 = vpop.f32.mrf.mxu0
          %v2571 = vadd.f32 %v2144, %v2570
          %v2572 = vpop.f32.mrf.mxu0
          %v2573 = vadd.f32 %v2146, %v2572
          %2574 = vmatprep.mubr.f32.mxu0 0.0
          %v2575 = vand.u32 %v511, 4294901760
          %2576 = vmatmul.mubr.f32.gmra.mxu0 %v2575
          %v2577 = vpop.f32.mrf.mxu0
          %v2578 = vadd.f32 %v2153, %v2577
          %v2579 = vpop.f32.mrf.mxu0
          %v2580 = vadd.f32 %v2155, %v2579
          %2581 = vmatprep.mubr.f32.mxu0 0.0
          %v2582 = vand.u32 %v514, 4294901760
          %2583 = vmatmul.mubr.f32.gmra.mxu0 %v2582
          %v2584 = vpop.f32.mrf.mxu0
          %v2585 = vadd.f32 %v2162, %v2584
          %v2586 = vpop.f32.mrf.mxu0
          %v2587 = vadd.f32 %v2164, %v2586
          %2588 = vmatprep.mubr.f32.mxu0 0.0
          %v2589 = vand.u32 %v517, 4294901760
          %2590 = vmatmul.mubr.f32.gmra.mxu0 %v2589
          %v2591 = vpop.f32.mrf.mxu0
          %v2592 = vadd.f32 %v2171, %v2591
          %v2593 = vpop.f32.mrf.mxu0
          %v2594 = vadd.f32 %v2173, %v2593
          %2595 = vmatprep.mubr.f32.mxu0 0.0
          %v2596 = vand.u32 %v520, 4294901760
          %2597 = vmatmul.mubr.f32.gmra.mxu0 %v2596
          %v2598 = vpop.f32.mrf.mxu0
          %v2599 = vadd.f32 %v2180, %v2598
          %v2600 = vpop.f32.mrf.mxu0
          %v2601 = vadd.f32 %v2182, %v2600
          %2602 = vmatprep.mubr.f32.mxu0 0.0
          %v2603 = vand.u32 %v523, 4294901760
          %2604 = vmatmul.mubr.f32.gmra.mxu0 %v2603
          %v2605 = vpop.f32.mrf.mxu0
          %v2606 = vadd.f32 %v2189, %v2605
          %v2607 = vpop.f32.mrf.mxu0
          %v2608 = vadd.f32 %v2191, %v2607
          %2609 = vmatprep.mubr.f32.mxu0 0.0
          %v2610 = vand.u32 %v526, 4294901760
          %2611 = vmatmul.mubr.f32.gmra.mxu0 %v2610
          %v2612 = vpop.f32.mrf.mxu0
          %v2613 = vadd.f32 %v2198, %v2612
          %v2614 = vpop.f32.mrf.mxu0
          %v2615 = vadd.f32 %v2200, %v2614
          %2616 = vmatprep.mubr.f32.mxu0 0.0
          %v2617 = vand.u32 %v529, 4294901760
          %2618 = vmatmul.mubr.f32.gmra.mxu0 %v2617
          %v2619 = vpop.f32.mrf.mxu0
          %v2620 = vadd.f32 %v2207, %v2619
          %v2621 = vpop.f32.mrf.mxu0
          %v2622 = vadd.f32 %v2209, %v2621
          %2623 = vmatprep.mubr.f32.mxu0 0.0
          %v2624 = vand.u32 %v532, 4294901760
          %2625 = vmatmul.mubr.f32.gmra.mxu0 %v2624
          %v2626 = vpop.f32.mrf.mxu0
          %v2627 = vadd.f32 %v2216, %v2626
          %v2628 = vpop.f32.mrf.mxu0
          %v2629 = vadd.f32 %v2218, %v2628
          %2630 = vmatprep.mubr.f32.mxu0 0.0
          %v2631 = vand.u32 %v535, 4294901760
          %2632 = vmatmul.mubr.f32.gmra.mxu0 %v2631
          %v2633 = vpop.f32.mrf.mxu0
          %v2634 = vadd.f32 %v2225, %v2633
          %v2635 = vpop.f32.mrf.mxu0
          %v2636 = vadd.f32 %v2227, %v2635
          %2637 = vmatprep.mubr.f32.mxu0 0.0
          %v2638 = vand.u32 %v538, 4294901760
          %2639 = vmatmul.mubr.f32.gmra.mxu0 %v2638
          %v2640 = vpop.f32.mrf.mxu0
          %v2641 = vadd.f32 %v2234, %v2640
          %v2642 = vpop.f32.mrf.mxu0
          %v2643 = vadd.f32 %v2236, %v2642
          %2644 = vmatprep.mubr.f32.mxu0 0.0
          %v2645 = vand.u32 %v541, 4294901760
          %2646 = vmatmul.mubr.f32.gmra.mxu0 %v2645
          %v2647 = vpop.f32.mrf.mxu0
          %v2648 = vadd.f32 %v2243, %v2647
          %v2649 = vpop.f32.mrf.mxu0
          %v2650 = vadd.f32 %v2245, %v2649
          %2651 = vmatprep.mubr.f32.mxu0 0.0
          %v2652 = vand.u32 %v544, 4294901760
          %2653 = vmatmul.mubr.f32.gmra.mxu0 %v2652
          %v2654 = vpop.f32.mrf.mxu0
          %v2655 = vadd.f32 %v2252, %v2654
          %v2656 = vpop.f32.mrf.mxu0
          %v2657 = vadd.f32 %v2254, %v2656
          %2658 = vmatprep.mubr.f32.mxu0 0.0
          %v2659 = vand.u32 %v547, 4294901760
          %2660 = vmatmul.mubr.f32.gmra.mxu0 %v2659
          %v2661 = vpop.f32.mrf.mxu0
          %v2662 = vadd.f32 %v2261, %v2661
          %v2663 = vpop.f32.mrf.mxu0
          %v2664 = vadd.f32 %v2263, %v2663
          %2665 = vmatprep.mubr.f32.mxu0 0.0
          %v2666 = vand.u32 %v550, 4294901760
          %2667 = vmatmul.mubr.f32.gmra.mxu0 %v2666
          %v2668 = vpop.f32.mrf.mxu0
          %v2669 = vadd.f32 %v2270, %v2668
          %v2670 = vpop.f32.mrf.mxu0
          %v2671 = vadd.f32 %v2272, %v2670
          %2672 = vmatprep.mubr.f32.mxu0 0.0
          %v2673 = vand.u32 %v553, 4294901760
          %2674 = vmatmul.mubr.f32.gmra.mxu0 %v2673
          %v2675 = vpop.f32.mrf.mxu0
          %v2676 = vadd.f32 %v2279, %v2675
          %v2677 = vpop.f32.mrf.mxu0
          %v2678 = vadd.f32 %v2281, %v2677
          %2679 = vmatprep.mubr.f32.mxu0 0.0
          %v2680 = vand.u32 %v556, 4294901760
          %2681 = vmatmul.mubr.f32.gmra.mxu0 %v2680
          %v2682 = vpop.f32.mrf.mxu0
          %v2683 = vadd.f32 %v2288, %v2682
          %v2684 = vpop.f32.mrf.mxu0
          %v2685 = vadd.f32 %v2290, %v2684
          %2686 = vmatprep.mubr.f32.mxu0 0.0
          %v2687 = vand.u32 %v559, 4294901760
          %2688 = vmatmul.mubr.f32.gmra.mxu0 %v2687
          %v2689 = vpop.f32.mrf.mxu0
          %v2690 = vadd.f32 %v2297, %v2689
          %v2691 = vpop.f32.mrf.mxu0
          %v2692 = vadd.f32 %v2299, %v2691
          %2693 = vmatprep.mubr.f32.mxu0 0.0
          %v2694 = vand.u32 %v562, 4294901760
          %2695 = vmatmul.mubr.f32.gmra.mxu0 %v2694
          %v2696 = vpop.f32.mrf.mxu0
          %v2697 = vadd.f32 %v2306, %v2696
          %v2698 = vpop.f32.mrf.mxu0
          %v2699 = vadd.f32 %v2308, %v2698
          %2700 = vmatprep.mubr.f32.mxu0 0.0
          %v2701 = vand.u32 %v565, 4294901760
          %2702 = vmatmul.mubr.f32.gmra.mxu0 %v2701
          %v2703 = vpop.f32.mrf.mxu0
          %v2704 = vadd.f32 %v2315, %v2703
          %v2705 = vpop.f32.mrf.mxu0
          %v2706 = vadd.f32 %v2317, %v2705
          %2707 = vmatprep.mubr.f32.mxu0 0.0
          %v2708 = vand.u32 %v568, 4294901760
          %2709 = vmatmul.mubr.f32.gmra.mxu0 %v2708
          %v2710 = vpop.f32.mrf.mxu0
          %v2711 = vadd.f32 %v2324, %v2710
          %v2712 = vpop.f32.mrf.mxu0
          %v2713 = vadd.f32 %v2326, %v2712
          %2714 = vmatprep.mubr.f32.mxu0 0.0
          %v2715 = vand.u32 %v571, 4294901760
          %2716 = vmatmul.mubr.f32.gmra.mxu0 %v2715
          %v2717 = vpop.f32.mrf.mxu0
          %v2718 = vadd.f32 %v2333, %v2717
          %v2719 = vpop.f32.mrf.mxu0
          %v2720 = vadd.f32 %v2335, %v2719
          %2721 = vdwg.mxu0
          %2722 = vmatprep.subr.mxu0 0.0
          %v2723 = vand.u32 %v619, 4294901760
          %2724 = vmatpush1.xpose.msra.mxu0 %v2723
          %2725 = vmatprep.subr.mxu0 0.0
          %v2726 = vand.u32 %v616, 4294901760
          %2727 = vmatpush1.xpose.msra.mxu0 %v2726
          %2728 = vmatprep.subr.mxu0 0.0
          %v2729 = vand.u32 %v613, 4294901760
          %2730 = vmatpush1.xpose.msra.mxu0 %v2729
          %2731 = vmatprep.subr.mxu0 0.0
          %v2732 = vand.u32 %v610, 4294901760
          %2733 = vmatpush1.xpose.msra.mxu0 %v2732
          %2734 = vmatprep.subr.mxu0 0.0
          %v2735 = vand.u32 %v607, 4294901760
          %2736 = vmatpush1.xpose.msra.mxu0 %v2735
          %2737 = vmatprep.subr.mxu0 0.0
          %v2738 = vand.u32 %v604, 4294901760
          %2739 = vmatpush1.xpose.msra.mxu0 %v2738
          %2740 = vmatprep.subr.mxu0 0.0
          %v2741 = vand.u32 %v601, 4294901760
          %2742 = vmatpush1.xpose.msra.mxu0 %v2741
          %2743 = vmatprep.subr.mxu0 0.0
          %v2744 = vand.u32 %v598, 4294901760
          %2745 = vmatpush1.xpose.msra.mxu0 %v2744
          %2746 = vmatprep.subr.mxu0 0.0
          %v2747 = vand.u32 %v595, 4294901760
          %2748 = vmatpush1.xpose.msra.mxu0 %v2747
          %2749 = vmatprep.subr.mxu0 0.0
          %v2750 = vand.u32 %v592, 4294901760
          %2751 = vmatpush1.xpose.msra.mxu0 %v2750
          %2752 = vmatprep.subr.mxu0 0.0
          %v2753 = vand.u32 %v589, 4294901760
          %2754 = vmatpush1.xpose.msra.mxu0 %v2753
          %2755 = vmatprep.subr.mxu0 0.0
          %v2756 = vand.u32 %v586, 4294901760
          %2757 = vmatpush1.xpose.msra.mxu0 %v2756
          %2758 = vmatprep.subr.mxu0 0.0
          %v2759 = vand.u32 %v583, 4294901760
          %2760 = vmatpush1.xpose.msra.mxu0 %v2759
          %2761 = vmatprep.subr.mxu0 0.0
          %v2762 = vand.u32 %v580, 4294901760
          %2763 = vmatpush1.xpose.msra.mxu0 %v2762
          %2764 = vmatprep.subr.mxu0 0.0
          %v2765 = vand.u32 %v577, 4294901760
          %2766 = vmatpush1.xpose.msra.mxu0 %v2765
          %2767 = vmatprep.subr.mxu0 0.0
          %v2768 = vand.u32 %v574, 4294901760
          %2769 = vmatpush1.xpose.msra.mxu0 %v2768
          %2770 = vmatprep.subr.mxu0 0.0
          %v2771 = vand.u32 %v667, 4294901760
          %2772 = vmatpush2.xpose.msra.mxu0 %v2771
          %2773 = vmatprep.subr.mxu0 0.0
          %v2774 = vand.u32 %v664, 4294901760
          %2775 = vmatpush2.xpose.msra.mxu0 %v2774
          %2776 = vmatprep.subr.mxu0 0.0
          %v2777 = vand.u32 %v661, 4294901760
          %2778 = vmatpush2.xpose.msra.mxu0 %v2777
          %2779 = vmatprep.subr.mxu0 0.0
          %v2780 = vand.u32 %v658, 4294901760
          %2781 = vmatpush2.xpose.msra.mxu0 %v2780
          %2782 = vmatprep.subr.mxu0 0.0
          %v2783 = vand.u32 %v655, 4294901760
          %2784 = vmatpush2.xpose.msra.mxu0 %v2783
          %2785 = vmatprep.subr.mxu0 0.0
          %v2786 = vand.u32 %v652, 4294901760
          %2787 = vmatpush2.xpose.msra.mxu0 %v2786
          %2788 = vmatprep.subr.mxu0 0.0
          %v2789 = vand.u32 %v649, 4294901760
          %2790 = vmatpush2.xpose.msra.mxu0 %v2789
          %2791 = vmatprep.subr.mxu0 0.0
          %v2792 = vand.u32 %v646, 4294901760
          %2793 = vmatpush2.xpose.msra.mxu0 %v2792
          %2794 = vmatprep.subr.mxu0 0.0
          %v2795 = vand.u32 %v643, 4294901760
          %2796 = vmatpush2.xpose.msra.mxu0 %v2795
          %2797 = vmatprep.subr.mxu0 0.0
          %v2798 = vand.u32 %v640, 4294901760
          %2799 = vmatpush2.xpose.msra.mxu0 %v2798
          %2800 = vmatprep.subr.mxu0 0.0
          %v2801 = vand.u32 %v637, 4294901760
          %2802 = vmatpush2.xpose.msra.mxu0 %v2801
          %2803 = vmatprep.subr.mxu0 0.0
          %v2804 = vand.u32 %v634, 4294901760
          %2805 = vmatpush2.xpose.msra.mxu0 %v2804
          %2806 = vmatprep.subr.mxu0 0.0
          %v2807 = vand.u32 %v631, 4294901760
          %2808 = vmatpush2.xpose.msra.mxu0 %v2807
          %2809 = vmatprep.subr.mxu0 0.0
          %v2810 = vand.u32 %v628, 4294901760
          %2811 = vmatpush2.xpose.msra.mxu0 %v2810
          %2812 = vmatprep.subr.mxu0 0.0
          %v2813 = vand.u32 %v625, 4294901760
          %2814 = vmatpush2.xpose.msra.mxu0 %v2813
          %2815 = vmatprep.subr.mxu0 0.0
          %v2816 = vand.u32 %v622, 4294901760
          %2817 = vmatpush2.xpose.msra.mxu0 %v2816
          %2818 = vmatprep.mubr.f32.mxu0 0.0
          %v2819 = vand.u32 %v478, 4294901760
          %2820 = vmatmul.mubr.f32.gmra.mxu0 %v2819
          %v2821 = vpop.f32.mrf.mxu0
          %v2822 = vadd.f32 %v2501, %v2821
          %v2823 = vpop.f32.mrf.mxu0
          %v2824 = vadd.f32 %v2503, %v2823
          %2825 = vmatprep.mubr.f32.mxu0 0.0
          %v2826 = vand.u32 %v481, 4294901760
          %2827 = vmatmul.mubr.f32.gmra.mxu0 %v2826
          %v2828 = vpop.f32.mrf.mxu0
          %v2829 = vadd.f32 %v2508, %v2828
          %v2830 = vpop.f32.mrf.mxu0
          %v2831 = vadd.f32 %v2510, %v2830
          %2832 = vmatprep.mubr.f32.mxu0 0.0
          %v2833 = vand.u32 %v484, 4294901760
          %2834 = vmatmul.mubr.f32.gmra.mxu0 %v2833
          %v2835 = vpop.f32.mrf.mxu0
          %v2836 = vadd.f32 %v2515, %v2835
          %v2837 = vpop.f32.mrf.mxu0
          %v2838 = vadd.f32 %v2517, %v2837
          %2839 = vmatprep.mubr.f32.mxu0 0.0
          %v2840 = vand.u32 %v487, 4294901760
          %2841 = vmatmul.mubr.f32.gmra.mxu0 %v2840
          %v2842 = vpop.f32.mrf.mxu0
          %v2843 = vadd.f32 %v2522, %v2842
          %v2844 = vpop.f32.mrf.mxu0
          %v2845 = vadd.f32 %v2524, %v2844
          %2846 = vmatprep.mubr.f32.mxu0 0.0
          %v2847 = vand.u32 %v490, 4294901760
          %2848 = vmatmul.mubr.f32.gmra.mxu0 %v2847
          %v2849 = vpop.f32.mrf.mxu0
          %v2850 = vadd.f32 %v2529, %v2849
          %v2851 = vpop.f32.mrf.mxu0
          %v2852 = vadd.f32 %v2531, %v2851
          %2853 = vmatprep.mubr.f32.mxu0 0.0
          %v2854 = vand.u32 %v493, 4294901760
          %2855 = vmatmul.mubr.f32.gmra.mxu0 %v2854
          %v2856 = vpop.f32.mrf.mxu0
          %v2857 = vadd.f32 %v2536, %v2856
          %v2858 = vpop.f32.mrf.mxu0
          %v2859 = vadd.f32 %v2538, %v2858
          %2860 = vmatprep.mubr.f32.mxu0 0.0
          %v2861 = vand.u32 %v496, 4294901760
          %2862 = vmatmul.mubr.f32.gmra.mxu0 %v2861
          %v2863 = vpop.f32.mrf.mxu0
          %v2864 = vadd.f32 %v2543, %v2863
          %v2865 = vpop.f32.mrf.mxu0
          %v2866 = vadd.f32 %v2545, %v2865
          %2867 = vmatprep.mubr.f32.mxu0 0.0
          %v2868 = vand.u32 %v499, 4294901760
          %2869 = vmatmul.mubr.f32.gmra.mxu0 %v2868
          %v2870 = vpop.f32.mrf.mxu0
          %v2871 = vadd.f32 %v2550, %v2870
          %v2872 = vpop.f32.mrf.mxu0
          %v2873 = vadd.f32 %v2552, %v2872
          %2874 = vmatprep.mubr.f32.mxu0 0.0
          %v2875 = vand.u32 %v502, 4294901760
          %2876 = vmatmul.mubr.f32.gmra.mxu0 %v2875
          %v2877 = vpop.f32.mrf.mxu0
          %v2878 = vadd.f32 %v2557, %v2877
          %v2879 = vpop.f32.mrf.mxu0
          %v2880 = vadd.f32 %v2559, %v2879
          %2881 = vmatprep.mubr.f32.mxu0 0.0
          %v2882 = vand.u32 %v505, 4294901760
          %2883 = vmatmul.mubr.f32.gmra.mxu0 %v2882
          %v2884 = vpop.f32.mrf.mxu0
          %v2885 = vadd.f32 %v2564, %v2884
          %v2886 = vpop.f32.mrf.mxu0
          %v2887 = vadd.f32 %v2566, %v2886
          %2888 = vmatprep.mubr.f32.mxu0 0.0
          %v2889 = vand.u32 %v508, 4294901760
          %2890 = vmatmul.mubr.f32.gmra.mxu0 %v2889
          %v2891 = vpop.f32.mrf.mxu0
          %v2892 = vadd.f32 %v2571, %v2891
          %v2893 = vpop.f32.mrf.mxu0
          %v2894 = vadd.f32 %v2573, %v2893
          %2895 = vmatprep.mubr.f32.mxu0 0.0
          %v2896 = vand.u32 %v511, 4294901760
          %2897 = vmatmul.mubr.f32.gmra.mxu0 %v2896
          %v2898 = vpop.f32.mrf.mxu0
          %v2899 = vadd.f32 %v2578, %v2898
          %v2900 = vpop.f32.mrf.mxu0
          %v2901 = vadd.f32 %v2580, %v2900
          %2902 = vmatprep.mubr.f32.mxu0 0.0
          %v2903 = vand.u32 %v514, 4294901760
          %2904 = vmatmul.mubr.f32.gmra.mxu0 %v2903
          %v2905 = vpop.f32.mrf.mxu0
          %v2906 = vadd.f32 %v2585, %v2905
          %v2907 = vpop.f32.mrf.mxu0
          %v2908 = vadd.f32 %v2587, %v2907
          %2909 = vmatprep.mubr.f32.mxu0 0.0
          %v2910 = vand.u32 %v517, 4294901760
          %2911 = vmatmul.mubr.f32.gmra.mxu0 %v2910
          %v2912 = vpop.f32.mrf.mxu0
          %v2913 = vadd.f32 %v2592, %v2912
          %v2914 = vpop.f32.mrf.mxu0
          %v2915 = vadd.f32 %v2594, %v2914
          %2916 = vmatprep.mubr.f32.mxu0 0.0
          %v2917 = vand.u32 %v520, 4294901760
          %2918 = vmatmul.mubr.f32.gmra.mxu0 %v2917
          %v2919 = vpop.f32.mrf.mxu0
          %v2920 = vadd.f32 %v2599, %v2919
          %v2921 = vpop.f32.mrf.mxu0
          %v2922 = vadd.f32 %v2601, %v2921
          %2923 = vmatprep.mubr.f32.mxu0 0.0
          %v2924 = vand.u32 %v523, 4294901760
          %2925 = vmatmul.mubr.f32.gmra.mxu0 %v2924
          %v2926 = vpop.f32.mrf.mxu0
          %v2927 = vadd.f32 %v2606, %v2926
          %v2928 = vpop.f32.mrf.mxu0
          %v2929 = vadd.f32 %v2608, %v2928
          %2930 = vmatprep.mubr.f32.mxu0 0.0
          %v2931 = vand.u32 %v526, 4294901760
          %2932 = vmatmul.mubr.f32.gmra.mxu0 %v2931
          %v2933 = vpop.f32.mrf.mxu0
          %v2934 = vadd.f32 %v2613, %v2933
          %v2935 = vpop.f32.mrf.mxu0
          %v2936 = vadd.f32 %v2615, %v2935
          %2937 = vmatprep.mubr.f32.mxu0 0.0
          %v2938 = vand.u32 %v529, 4294901760
          %2939 = vmatmul.mubr.f32.gmra.mxu0 %v2938
          %v2940 = vpop.f32.mrf.mxu0
          %v2941 = vadd.f32 %v2620, %v2940
          %v2942 = vpop.f32.mrf.mxu0
          %v2943 = vadd.f32 %v2622, %v2942
          %2944 = vmatprep.mubr.f32.mxu0 0.0
          %v2945 = vand.u32 %v532, 4294901760
          %2946 = vmatmul.mubr.f32.gmra.mxu0 %v2945
          %v2947 = vpop.f32.mrf.mxu0
          %v2948 = vadd.f32 %v2627, %v2947
          %v2949 = vpop.f32.mrf.mxu0
          %v2950 = vadd.f32 %v2629, %v2949
          %2951 = vmatprep.mubr.f32.mxu0 0.0
          %v2952 = vand.u32 %v535, 4294901760
          %2953 = vmatmul.mubr.f32.gmra.mxu0 %v2952
          %v2954 = vpop.f32.mrf.mxu0
          %v2955 = vadd.f32 %v2634, %v2954
          %v2956 = vpop.f32.mrf.mxu0
          %v2957 = vadd.f32 %v2636, %v2956
          %2958 = vmatprep.mubr.f32.mxu0 0.0
          %v2959 = vand.u32 %v538, 4294901760
          %2960 = vmatmul.mubr.f32.gmra.mxu0 %v2959
          %v2961 = vpop.f32.mrf.mxu0
          %v2962 = vadd.f32 %v2641, %v2961
          %v2963 = vpop.f32.mrf.mxu0
          %v2964 = vadd.f32 %v2643, %v2963
          %2965 = vmatprep.mubr.f32.mxu0 0.0
          %v2966 = vand.u32 %v541, 4294901760
          %2967 = vmatmul.mubr.f32.gmra.mxu0 %v2966
          %v2968 = vpop.f32.mrf.mxu0
          %v2969 = vadd.f32 %v2648, %v2968
          %v2970 = vpop.f32.mrf.mxu0
          %v2971 = vadd.f32 %v2650, %v2970
          %2972 = vmatprep.mubr.f32.mxu0 0.0
          %v2973 = vand.u32 %v544, 4294901760
          %2974 = vmatmul.mubr.f32.gmra.mxu0 %v2973
          %v2975 = vpop.f32.mrf.mxu0
          %v2976 = vadd.f32 %v2655, %v2975
          %v2977 = vpop.f32.mrf.mxu0
          %v2978 = vadd.f32 %v2657, %v2977
          %2979 = vmatprep.mubr.f32.mxu0 0.0
          %v2980 = vand.u32 %v547, 4294901760
          %2981 = vmatmul.mubr.f32.gmra.mxu0 %v2980
          %v2982 = vpop.f32.mrf.mxu0
          %v2983 = vadd.f32 %v2662, %v2982
          %v2984 = vpop.f32.mrf.mxu0
          %v2985 = vadd.f32 %v2664, %v2984
          %2986 = vmatprep.mubr.f32.mxu0 0.0
          %v2987 = vand.u32 %v550, 4294901760
          %2988 = vmatmul.mubr.f32.gmra.mxu0 %v2987
          %v2989 = vpop.f32.mrf.mxu0
          %v2990 = vadd.f32 %v2669, %v2989
          %v2991 = vpop.f32.mrf.mxu0
          %v2992 = vadd.f32 %v2671, %v2991
          %2993 = vmatprep.mubr.f32.mxu0 0.0
          %v2994 = vand.u32 %v553, 4294901760
          %2995 = vmatmul.mubr.f32.gmra.mxu0 %v2994
          %v2996 = vpop.f32.mrf.mxu0
          %v2997 = vadd.f32 %v2676, %v2996
          %v2998 = vpop.f32.mrf.mxu0
          %v2999 = vadd.f32 %v2678, %v2998
          %3000 = vmatprep.mubr.f32.mxu0 0.0
          %v3001 = vand.u32 %v556, 4294901760
          %3002 = vmatmul.mubr.f32.gmra.mxu0 %v3001
          %v3003 = vpop.f32.mrf.mxu0
          %v3004 = vadd.f32 %v2683, %v3003
          %v3005 = vpop.f32.mrf.mxu0
          %v3006 = vadd.f32 %v2685, %v3005
          %3007 = vmatprep.mubr.f32.mxu0 0.0
          %v3008 = vand.u32 %v559, 4294901760
          %3009 = vmatmul.mubr.f32.gmra.mxu0 %v3008
          %v3010 = vpop.f32.mrf.mxu0
          %v3011 = vadd.f32 %v2690, %v3010
          %v3012 = vpop.f32.mrf.mxu0
          %v3013 = vadd.f32 %v2692, %v3012
          %3014 = vmatprep.mubr.f32.mxu0 0.0
          %v3015 = vand.u32 %v562, 4294901760
          %3016 = vmatmul.mubr.f32.gmra.mxu0 %v3015
          %v3017 = vpop.f32.mrf.mxu0
          %v3018 = vadd.f32 %v2697, %v3017
          %v3019 = vpop.f32.mrf.mxu0
          %v3020 = vadd.f32 %v2699, %v3019
          %3021 = vmatprep.mubr.f32.mxu0 0.0
          %v3022 = vand.u32 %v565, 4294901760
          %3023 = vmatmul.mubr.f32.gmra.mxu0 %v3022
          %v3024 = vpop.f32.mrf.mxu0
          %v3025 = vadd.f32 %v2704, %v3024
          %v3026 = vpop.f32.mrf.mxu0
          %v3027 = vadd.f32 %v2706, %v3026
          %3028 = vmatprep.mubr.f32.mxu0 0.0
          %v3029 = vand.u32 %v568, 4294901760
          %3030 = vmatmul.mubr.f32.gmra.mxu0 %v3029
          %v3031 = vpop.f32.mrf.mxu0
          %v3032 = vadd.f32 %v2711, %v3031
          %v3033 = vpop.f32.mrf.mxu0
          %v3034 = vadd.f32 %v2713, %v3033
          %3035 = vmatprep.mubr.f32.mxu0 0.0
          %v3036 = vand.u32 %v571, 4294901760
          %3037 = vmatmul.mubr.f32.gmra.mxu0 %v3036
          %v3038 = vpop.f32.mrf.mxu0
          %v3039 = vadd.f32 %v2718, %v3038
          %v3040 = vpop.f32.mrf.mxu0
          %v3041 = vadd.f32 %v2720, %v3040
          %3042 = vdwg.mxu0
          %v3043 = vld [vmem:[%s365] sm:$0xff]
          %v3044 = vld [vmem:[%s365 + $0x8] sm:$0xff]
          %v3045 = vld [vmem:[%s365 + $0x10] sm:$0xff]
          %v3046 = vld [vmem:[%s365 + $0x18] sm:$0xff]
          %v3047 = vld [vmem:[%s365 + $0x20] sm:$0xff]
          %v3048 = vld [vmem:[%s365 + $0x28] sm:$0xff]
          %v3049 = vld [vmem:[%s365 + $0x30] sm:$0xff]
          %v3050 = vld [vmem:[%s365 + $0x38] sm:$0xff]
          %v3051 = vld [vmem:[%s365 + $0x40] sm:$0xff]
          %v3052 = vld [vmem:[%s365 + $0x48] sm:$0xff]
          %v3053 = vld [vmem:[%s365 + $0x50] sm:$0xff]
          %v3054 = vld [vmem:[%s365 + $0x58] sm:$0xff]
          %v3055 = vld [vmem:[%s365 + $0x60] sm:$0xff]
          %v3056 = vld [vmem:[%s365 + $0x68] sm:$0xff]
          %v3057 = vld [vmem:[%s365 + $0x70] sm:$0xff]
          %v3058 = vld [vmem:[%s365 + $0x78] sm:$0xff]
          %v3059 = vld [vmem:[%s365 + $0x80] sm:$0xff]
          %v3060 = vld [vmem:[%s365 + $0x88] sm:$0xff]
          %v3061 = vld [vmem:[%s365 + $0x90] sm:$0xff]
          %v3062 = vld [vmem:[%s365 + $0x98] sm:$0xff]
          %v3063 = vld [vmem:[%s365 + $0xa0] sm:$0xff]
          %v3064 = vld [vmem:[%s365 + $0xa8] sm:$0xff]
          %v3065 = vld [vmem:[%s365 + $0xb0] sm:$0xff]
          %v3066 = vld [vmem:[%s365 + $0xb8] sm:$0xff]
          %v3067 = vld [vmem:[%s365 + $0xc0] sm:$0xff]
          %v3068 = vld [vmem:[%s365 + $0xc8] sm:$0xff]
          %v3069 = vld [vmem:[%s365 + $0xd0] sm:$0xff]
          %v3070 = vld [vmem:[%s365 + $0xd8] sm:$0xff]
          %v3071 = vld [vmem:[%s365 + $0xe0] sm:$0xff]
          %v3072 = vld [vmem:[%s365 + $0xe8] sm:$0xff]
          %v3073 = vld [vmem:[%s365 + $0xf0] sm:$0xff]
          %v3074 = vld [vmem:[%s365 + $0xf8] sm:$0xff]
          %v3075 = vld [vmem:[%s373] sm:$0x3]
          %3077 = vset.pattern.permute.xlu0 0
          %3078 = vperm.xlu0 %3077, %v3043
          %v3079 = vpop.permute.xlu0 %3078
          %3082 = vset.pattern.permute.xlu0 0
          %3083 = vperm.xlu0 %3082, %v3044
          %v3084 = vpop.permute.xlu0 %3083
          %3087 = vset.pattern.permute.xlu0 0
          %3088 = vperm.xlu0 %3087, %v3045
          %v3089 = vpop.permute.xlu0 %3088
          %3092 = vset.pattern.permute.xlu0 0
          %3093 = vperm.xlu0 %3092, %v3046
          %v3094 = vpop.permute.xlu0 %3093
          %3097 = vset.pattern.permute.xlu0 0
          %3098 = vperm.xlu0 %3097, %v3047
          %v3099 = vpop.permute.xlu0 %3098
          %3102 = vset.pattern.permute.xlu0 0
          %3103 = vperm.xlu0 %3102, %v3048
          %v3104 = vpop.permute.xlu0 %3103
          %3107 = vset.pattern.permute.xlu0 0
          %3108 = vperm.xlu0 %3107, %v3049
          %v3109 = vpop.permute.xlu0 %3108
          %3112 = vset.pattern.permute.xlu0 0
          %3113 = vperm.xlu0 %3112, %v3050
          %v3114 = vpop.permute.xlu0 %3113
          %3117 = vset.pattern.permute.xlu0 0
          %3118 = vperm.xlu0 %3117, %v3051
          %v3119 = vpop.permute.xlu0 %3118
          %3122 = vset.pattern.permute.xlu0 0
          %3123 = vperm.xlu0 %3122, %v3052
          %v3124 = vpop.permute.xlu0 %3123
          %3127 = vset.pattern.permute.xlu0 0
          %3128 = vperm.xlu0 %3127, %v3053
          %v3129 = vpop.permute.xlu0 %3128
          %3132 = vset.pattern.permute.xlu0 0
          %3133 = vperm.xlu0 %3132, %v3054
          %v3134 = vpop.permute.xlu0 %3133
          %3137 = vset.pattern.permute.xlu0 0
          %3138 = vperm.xlu0 %3137, %v3055
          %v3139 = vpop.permute.xlu0 %3138
          %3142 = vset.pattern.permute.xlu0 0
          %3143 = vperm.xlu0 %3142, %v3056
          %v3144 = vpop.permute.xlu0 %3143
          %3147 = vset.pattern.permute.xlu0 0
          %3148 = vperm.xlu0 %3147, %v3057
          %v3149 = vpop.permute.xlu0 %3148
          %3152 = vset.pattern.permute.xlu0 0
          %3153 = vperm.xlu0 %3152, %v3058
          %v3154 = vpop.permute.xlu0 %3153
          %3157 = vset.pattern.permute.xlu0 0
          %3158 = vperm.xlu0 %3157, %v3059
          %v3159 = vpop.permute.xlu0 %3158
          %3162 = vset.pattern.permute.xlu0 0
          %3163 = vperm.xlu0 %3162, %v3060
          %v3164 = vpop.permute.xlu0 %3163
          %3167 = vset.pattern.permute.xlu0 0
          %3168 = vperm.xlu0 %3167, %v3061
          %v3169 = vpop.permute.xlu0 %3168
          %3172 = vset.pattern.permute.xlu0 0
          %3173 = vperm.xlu0 %3172, %v3062
          %v3174 = vpop.permute.xlu0 %3173
          %3177 = vset.pattern.permute.xlu0 0
          %3178 = vperm.xlu0 %3177, %v3063
          %v3179 = vpop.permute.xlu0 %3178
          %3182 = vset.pattern.permute.xlu0 0
          %3183 = vperm.xlu0 %3182, %v3064
          %v3184 = vpop.permute.xlu0 %3183
          %3187 = vset.pattern.permute.xlu0 0
          %3188 = vperm.xlu0 %3187, %v3065
          %v3189 = vpop.permute.xlu0 %3188
          %3192 = vset.pattern.permute.xlu0 0
          %3193 = vperm.xlu0 %3192, %v3066
          %v3194 = vpop.permute.xlu0 %3193
          %3197 = vset.pattern.permute.xlu0 0
          %3198 = vperm.xlu0 %3197, %v3067
          %v3199 = vpop.permute.xlu0 %3198
          %3202 = vset.pattern.permute.xlu0 0
          %3203 = vperm.xlu0 %3202, %v3068
          %v3204 = vpop.permute.xlu0 %3203
          %3207 = vset.pattern.permute.xlu0 0
          %3208 = vperm.xlu0 %3207, %v3069
          %v3209 = vpop.permute.xlu0 %3208
          %3212 = vset.pattern.permute.xlu0 0
          %3213 = vperm.xlu0 %3212, %v3070
          %v3214 = vpop.permute.xlu0 %3213
          %3217 = vset.pattern.permute.xlu0 0
          %3218 = vperm.xlu0 %3217, %v3071
          %v3219 = vpop.permute.xlu0 %3218
          %3222 = vset.pattern.permute.xlu0 0
          %3223 = vperm.xlu0 %3222, %v3072
          %v3224 = vpop.permute.xlu0 %3223
          %3227 = vset.pattern.permute.xlu0 0
          %3228 = vperm.xlu0 %3227, %v3073
          %v3229 = vpop.permute.xlu0 %3228
          %3232 = vset.pattern.permute.xlu0 0
          %3233 = vperm.xlu0 %3232, %v3074
          %v3234 = vpop.permute.xlu0 %3233
          %v3237 = vlaneseq
          %v3238 = vshrl.u32 %v3237, 7
          %v3239 = vsub.s32 0, %v3238
          %v3240 = vrot.slane %v3075, %v3239
          %v3241 = vlaneseq
          %v3242 = vshrl.u32 %v3241, 7
          %v3243 = vsub.s32 1, %v3242
          %v3244 = vrot.slane %v3075, %v3243
          %v3247 = vadd.f32 %v3079, %v3240
          %v3248 = vadd.f32 %v3079, %v3244
          %v3249 = vadd.f32 %v3084, %v3240
          %v3250 = vadd.f32 %v3084, %v3244
          %v3251 = vadd.f32 %v3089, %v3240
          %v3252 = vadd.f32 %v3089, %v3244
          %v3253 = vadd.f32 %v3094, %v3240
          %v3254 = vadd.f32 %v3094, %v3244
          %v3255 = vadd.f32 %v3099, %v3240
          %v3256 = vadd.f32 %v3099, %v3244
          %v3257 = vadd.f32 %v3104, %v3240
          %v3258 = vadd.f32 %v3104, %v3244
          %v3259 = vadd.f32 %v3109, %v3240
          %v3260 = vadd.f32 %v3109, %v3244
          %v3261 = vadd.f32 %v3114, %v3240
          %v3262 = vadd.f32 %v3114, %v3244
          %v3263 = vadd.f32 %v3119, %v3240
          %v3264 = vadd.f32 %v3119, %v3244
          %v3265 = vadd.f32 %v3124, %v3240
          %v3266 = vadd.f32 %v3124, %v3244
          %v3267 = vadd.f32 %v3129, %v3240
          %v3268 = vadd.f32 %v3129, %v3244
          %v3269 = vadd.f32 %v3134, %v3240
          %v3270 = vadd.f32 %v3134, %v3244
          %v3271 = vadd.f32 %v3139, %v3240
          %v3272 = vadd.f32 %v3139, %v3244
          %v3273 = vadd.f32 %v3144, %v3240
          %v3274 = vadd.f32 %v3144, %v3244
          %v3275 = vadd.f32 %v3149, %v3240
          %v3276 = vadd.f32 %v3149, %v3244
          %v3277 = vadd.f32 %v3154, %v3240
          %v3278 = vadd.f32 %v3154, %v3244
          %v3279 = vadd.f32 %v3159, %v3240
          %v3280 = vadd.f32 %v3159, %v3244
          %v3281 = vadd.f32 %v3164, %v3240
          %v3282 = vadd.f32 %v3164, %v3244
          %v3283 = vadd.f32 %v3169, %v3240
          %v3284 = vadd.f32 %v3169, %v3244
          %v3285 = vadd.f32 %v3174, %v3240
          %v3286 = vadd.f32 %v3174, %v3244
          %v3287 = vadd.f32 %v3179, %v3240
          %v3288 = vadd.f32 %v3179, %v3244
          %v3289 = vadd.f32 %v3184, %v3240
          %v3290 = vadd.f32 %v3184, %v3244
          %v3291 = vadd.f32 %v3189, %v3240
          %v3292 = vadd.f32 %v3189, %v3244
          %v3293 = vadd.f32 %v3194, %v3240
          %v3294 = vadd.f32 %v3194, %v3244
          %v3295 = vadd.f32 %v3199, %v3240
          %v3296 = vadd.f32 %v3199, %v3244
          %v3297 = vadd.f32 %v3204, %v3240
          %v3298 = vadd.f32 %v3204, %v3244
          %v3299 = vadd.f32 %v3209, %v3240
          %v3300 = vadd.f32 %v3209, %v3244
          %v3301 = vadd.f32 %v3214, %v3240
          %v3302 = vadd.f32 %v3214, %v3244
          %v3303 = vadd.f32 %v3219, %v3240
          %v3304 = vadd.f32 %v3219, %v3244
          %v3305 = vadd.f32 %v3224, %v3240
          %v3306 = vadd.f32 %v3224, %v3244
          %v3307 = vadd.f32 %v3229, %v3240
          %v3308 = vadd.f32 %v3229, %v3244
          %v3309 = vadd.f32 %v3234, %v3240
          %v3310 = vadd.f32 %v3234, %v3244
          %v3311 = vmul.f32 %v2822, 2.0
          %v3312 = vmul.f32 %v2824, 2.0
          %v3313 = vmul.f32 %v2829, 2.0
          %v3314 = vmul.f32 %v2831, 2.0
          %v3315 = vmul.f32 %v2836, 2.0
          %v3316 = vmul.f32 %v2838, 2.0
          %v3317 = vmul.f32 %v2843, 2.0
          %v3318 = vmul.f32 %v2845, 2.0
          %v3319 = vmul.f32 %v2850, 2.0
          %v3320 = vmul.f32 %v2852, 2.0
          %v3321 = vmul.f32 %v2857, 2.0
          %v3322 = vmul.f32 %v2859, 2.0
          %v3323 = vmul.f32 %v2864, 2.0
          %v3324 = vmul.f32 %v2866, 2.0
          %v3325 = vmul.f32 %v2871, 2.0
          %v3326 = vmul.f32 %v2873, 2.0
          %v3327 = vmul.f32 %v2878, 2.0
          %v3328 = vmul.f32 %v2880, 2.0
          %v3329 = vmul.f32 %v2885, 2.0
          %v3330 = vmul.f32 %v2887, 2.0
          %v3331 = vmul.f32 %v2892, 2.0
          %v3332 = vmul.f32 %v2894, 2.0
          %v3333 = vmul.f32 %v2899, 2.0
          %v3334 = vmul.f32 %v2901, 2.0
          %v3335 = vmul.f32 %v2906, 2.0
          %v3336 = vmul.f32 %v2908, 2.0
          %v3337 = vmul.f32 %v2913, 2.0
          %v3338 = vmul.f32 %v2915, 2.0
          %v3339 = vmul.f32 %v2920, 2.0
          %v3340 = vmul.f32 %v2922, 2.0
          %v3341 = vmul.f32 %v2927, 2.0
          %v3342 = vmul.f32 %v2929, 2.0
          %v3343 = vmul.f32 %v2934, 2.0
          %v3344 = vmul.f32 %v2936, 2.0
          %v3345 = vmul.f32 %v2941, 2.0
          %v3346 = vmul.f32 %v2943, 2.0
          %v3347 = vmul.f32 %v2948, 2.0
          %v3348 = vmul.f32 %v2950, 2.0
          %v3349 = vmul.f32 %v2955, 2.0
          %v3350 = vmul.f32 %v2957, 2.0
          %v3351 = vmul.f32 %v2962, 2.0
          %v3352 = vmul.f32 %v2964, 2.0
          %v3353 = vmul.f32 %v2969, 2.0
          %v3354 = vmul.f32 %v2971, 2.0
          %v3355 = vmul.f32 %v2976, 2.0
          %v3356 = vmul.f32 %v2978, 2.0
          %v3357 = vmul.f32 %v2983, 2.0
          %v3358 = vmul.f32 %v2985, 2.0
          %v3359 = vmul.f32 %v2990, 2.0
          %v3360 = vmul.f32 %v2992, 2.0
          %v3361 = vmul.f32 %v2997, 2.0
          %v3362 = vmul.f32 %v2999, 2.0
          %v3363 = vmul.f32 %v3004, 2.0
          %v3364 = vmul.f32 %v3006, 2.0
          %v3365 = vmul.f32 %v3011, 2.0
          %v3366 = vmul.f32 %v3013, 2.0
          %v3367 = vmul.f32 %v3018, 2.0
          %v3368 = vmul.f32 %v3020, 2.0
          %v3369 = vmul.f32 %v3025, 2.0
          %v3370 = vmul.f32 %v3027, 2.0
          %v3371 = vmul.f32 %v3032, 2.0
          %v3372 = vmul.f32 %v3034, 2.0
          %v3373 = vmul.f32 %v3039, 2.0
          %v3374 = vmul.f32 %v3041, 2.0
          %v3375 = vsub.f32 %v3247, %v3311
          %v3376 = vsub.f32 %v3248, %v3312
          %v3377 = vsub.f32 %v3249, %v3313
          %v3378 = vsub.f32 %v3250, %v3314
          %v3379 = vsub.f32 %v3251, %v3315
          %v3380 = vsub.f32 %v3252, %v3316
          %v3381 = vsub.f32 %v3253, %v3317
          %v3382 = vsub.f32 %v3254, %v3318
          %v3383 = vsub.f32 %v3255, %v3319
          %v3384 = vsub.f32 %v3256, %v3320
          %v3385 = vsub.f32 %v3257, %v3321
          %v3386 = vsub.f32 %v3258, %v3322
          %v3387 = vsub.f32 %v3259, %v3323
          %v3388 = vsub.f32 %v3260, %v3324
          %v3389 = vsub.f32 %v3261, %v3325
          %v3390 = vsub.f32 %v3262, %v3326
          %v3391 = vsub.f32 %v3263, %v3327
          %v3392 = vsub.f32 %v3264, %v3328
          %v3393 = vsub.f32 %v3265, %v3329
          %v3394 = vsub.f32 %v3266, %v3330
          %v3395 = vsub.f32 %v3267, %v3331
          %v3396 = vsub.f32 %v3268, %v3332
          %v3397 = vsub.f32 %v3269, %v3333
          %v3398 = vsub.f32 %v3270, %v3334
          %v3399 = vsub.f32 %v3271, %v3335
          %v3400 = vsub.f32 %v3272, %v3336
          %v3401 = vsub.f32 %v3273, %v3337
          %v3402 = vsub.f32 %v3274, %v3338
          %v3403 = vsub.f32 %v3275, %v3339
          %v3404 = vsub.f32 %v3276, %v3340
          %v3405 = vsub.f32 %v3277, %v3341
          %v3406 = vsub.f32 %v3278, %v3342
          %v3407 = vsub.f32 %v3279, %v3343
          %v3408 = vsub.f32 %v3280, %v3344
          %v3409 = vsub.f32 %v3281, %v3345
          %v3410 = vsub.f32 %v3282, %v3346
          %v3411 = vsub.f32 %v3283, %v3347
          %v3412 = vsub.f32 %v3284, %v3348
          %v3413 = vsub.f32 %v3285, %v3349
          %v3414 = vsub.f32 %v3286, %v3350
          %v3415 = vsub.f32 %v3287, %v3351
          %v3416 = vsub.f32 %v3288, %v3352
          %v3417 = vsub.f32 %v3289, %v3353
          %v3418 = vsub.f32 %v3290, %v3354
          %v3419 = vsub.f32 %v3291, %v3355
          %v3420 = vsub.f32 %v3292, %v3356
          %v3421 = vsub.f32 %v3293, %v3357
          %v3422 = vsub.f32 %v3294, %v3358
          %v3423 = vsub.f32 %v3295, %v3359
          %v3424 = vsub.f32 %v3296, %v3360
          %v3425 = vsub.f32 %v3297, %v3361
          %v3426 = vsub.f32 %v3298, %v3362
          %v3427 = vsub.f32 %v3299, %v3363
          %v3428 = vsub.f32 %v3300, %v3364
          %v3429 = vsub.f32 %v3301, %v3365
          %v3430 = vsub.f32 %v3302, %v3366
          %v3431 = vsub.f32 %v3303, %v3367
          %v3432 = vsub.f32 %v3304, %v3368
          %v3433 = vsub.f32 %v3305, %v3369
          %v3434 = vsub.f32 %v3306, %v3370
          %v3435 = vsub.f32 %v3307, %v3371
          %v3436 = vsub.f32 %v3308, %v3372
          %v3437 = vsub.f32 %v3309, %v3373
          %v3438 = vsub.f32 %v3310, %v3374
          %v3439 = vmax.f32 %v3375, 0.0
          %v3440 = vmax.f32 %v3376, 0.0
          %v3441 = vmax.f32 %v3377, 0.0
          %v3442 = vmax.f32 %v3378, 0.0
          %v3443 = vmax.f32 %v3379, 0.0
          %v3444 = vmax.f32 %v3380, 0.0
          %v3445 = vmax.f32 %v3381, 0.0
          %v3446 = vmax.f32 %v3382, 0.0
          %v3447 = vmax.f32 %v3383, 0.0
          %v3448 = vmax.f32 %v3384, 0.0
          %v3449 = vmax.f32 %v3385, 0.0
          %v3450 = vmax.f32 %v3386, 0.0
          %v3451 = vmax.f32 %v3387, 0.0
          %v3452 = vmax.f32 %v3388, 0.0
          %v3453 = vmax.f32 %v3389, 0.0
          %v3454 = vmax.f32 %v3390, 0.0
          %v3455 = vmax.f32 %v3391, 0.0
          %v3456 = vmax.f32 %v3392, 0.0
          %v3457 = vmax.f32 %v3393, 0.0
          %v3458 = vmax.f32 %v3394, 0.0
          %v3459 = vmax.f32 %v3395, 0.0
          %v3460 = vmax.f32 %v3396, 0.0
          %v3461 = vmax.f32 %v3397, 0.0
          %v3462 = vmax.f32 %v3398, 0.0
          %v3463 = vmax.f32 %v3399, 0.0
          %v3464 = vmax.f32 %v3400, 0.0
          %v3465 = vmax.f32 %v3401, 0.0
          %v3466 = vmax.f32 %v3402, 0.0
          %v3467 = vmax.f32 %v3403, 0.0
          %v3468 = vmax.f32 %v3404, 0.0
          %v3469 = vmax.f32 %v3405, 0.0
          %v3470 = vmax.f32 %v3406, 0.0
          %v3471 = vmax.f32 %v3407, 0.0
          %v3472 = vmax.f32 %v3408, 0.0
          %v3473 = vmax.f32 %v3409, 0.0
          %v3474 = vmax.f32 %v3410, 0.0
          %v3475 = vmax.f32 %v3411, 0.0
          %v3476 = vmax.f32 %v3412, 0.0
          %v3477 = vmax.f32 %v3413, 0.0
          %v3478 = vmax.f32 %v3414, 0.0
          %v3479 = vmax.f32 %v3415, 0.0
          %v3480 = vmax.f32 %v3416, 0.0
          %v3481 = vmax.f32 %v3417, 0.0
          %v3482 = vmax.f32 %v3418, 0.0
          %v3483 = vmax.f32 %v3419, 0.0
          %v3484 = vmax.f32 %v3420, 0.0
          %v3485 = vmax.f32 %v3421, 0.0
          %v3486 = vmax.f32 %v3422, 0.0
          %v3487 = vmax.f32 %v3423, 0.0
          %v3488 = vmax.f32 %v3424, 0.0
          %v3489 = vmax.f32 %v3425, 0.0
          %v3490 = vmax.f32 %v3426, 0.0
          %v3491 = vmax.f32 %v3427, 0.0
          %v3492 = vmax.f32 %v3428, 0.0
          %v3493 = vmax.f32 %v3429, 0.0
          %v3494 = vmax.f32 %v3430, 0.0
          %v3495 = vmax.f32 %v3431, 0.0
          %v3496 = vmax.f32 %v3432, 0.0
          %v3497 = vmax.f32 %v3433, 0.0
          %v3498 = vmax.f32 %v3434, 0.0
          %v3499 = vmax.f32 %v3435, 0.0
          %v3500 = vmax.f32 %v3436, 0.0
          %v3501 = vmax.f32 %v3437, 0.0
          %v3502 = vmax.f32 %v3438, 0.0
          %v3503 = vrsqrt.pop %v3439
          %v3504 = vmul.f32 %v3439, %v3503
          %vm3505 = vcmp.eq.f32.partialorder %v3439, inf
          %v3506 = vsel %vm3505, %v3439, %v3504
          %vm3507 = vcmp.eq.f32.partialorder %v3439, 0.0
          %v3508 = vand.u32 %v3439, 2147483648
          %v3509 = vsel %vm3507, %v3508, %v3506
          %v3510 = vrsqrt.pop %v3440
          %v3511 = vmul.f32 %v3440, %v3510
          %vm3512 = vcmp.eq.f32.partialorder %v3440, inf
          %v3513 = vsel %vm3512, %v3440, %v3511
          %vm3514 = vcmp.eq.f32.partialorder %v3440, 0.0
          %v3515 = vand.u32 %v3440, 2147483648
          %v3516 = vsel %vm3514, %v3515, %v3513
          %v3517 = vrsqrt.pop %v3441
          %v3518 = vmul.f32 %v3441, %v3517
          %vm3519 = vcmp.eq.f32.partialorder %v3441, inf
          %v3520 = vsel %vm3519, %v3441, %v3518
          %vm3521 = vcmp.eq.f32.partialorder %v3441, 0.0
          %v3522 = vand.u32 %v3441, 2147483648
          %v3523 = vsel %vm3521, %v3522, %v3520
          %v3524 = vrsqrt.pop %v3442
          %v3525 = vmul.f32 %v3442, %v3524
          %vm3526 = vcmp.eq.f32.partialorder %v3442, inf
          %v3527 = vsel %vm3526, %v3442, %v3525
          %vm3528 = vcmp.eq.f32.partialorder %v3442, 0.0
          %v3529 = vand.u32 %v3442, 2147483648
          %v3530 = vsel %vm3528, %v3529, %v3527
          %v3531 = vrsqrt.pop %v3443
          %v3532 = vmul.f32 %v3443, %v3531
          %vm3533 = vcmp.eq.f32.partialorder %v3443, inf
          %v3534 = vsel %vm3533, %v3443, %v3532
          %vm3535 = vcmp.eq.f32.partialorder %v3443, 0.0
          %v3536 = vand.u32 %v3443, 2147483648
          %v3537 = vsel %vm3535, %v3536, %v3534
          %v3538 = vrsqrt.pop %v3444
          %v3539 = vmul.f32 %v3444, %v3538
          %vm3540 = vcmp.eq.f32.partialorder %v3444, inf
          %v3541 = vsel %vm3540, %v3444, %v3539
          %vm3542 = vcmp.eq.f32.partialorder %v3444, 0.0
          %v3543 = vand.u32 %v3444, 2147483648
          %v3544 = vsel %vm3542, %v3543, %v3541
          %v3545 = vrsqrt.pop %v3445
          %v3546 = vmul.f32 %v3445, %v3545
          %vm3547 = vcmp.eq.f32.partialorder %v3445, inf
          %v3548 = vsel %vm3547, %v3445, %v3546
          %vm3549 = vcmp.eq.f32.partialorder %v3445, 0.0
          %v3550 = vand.u32 %v3445, 2147483648
          %v3551 = vsel %vm3549, %v3550, %v3548
          %v3552 = vrsqrt.pop %v3446
          %v3553 = vmul.f32 %v3446, %v3552
          %vm3554 = vcmp.eq.f32.partialorder %v3446, inf
          %v3555 = vsel %vm3554, %v3446, %v3553
          %vm3556 = vcmp.eq.f32.partialorder %v3446, 0.0
          %v3557 = vand.u32 %v3446, 2147483648
          %v3558 = vsel %vm3556, %v3557, %v3555
          %v3559 = vrsqrt.pop %v3447
          %v3560 = vmul.f32 %v3447, %v3559
          %vm3561 = vcmp.eq.f32.partialorder %v3447, inf
          %v3562 = vsel %vm3561, %v3447, %v3560
          %vm3563 = vcmp.eq.f32.partialorder %v3447, 0.0
          %v3564 = vand.u32 %v3447, 2147483648
          %v3565 = vsel %vm3563, %v3564, %v3562
          %v3566 = vrsqrt.pop %v3448
          %v3567 = vmul.f32 %v3448, %v3566
          %vm3568 = vcmp.eq.f32.partialorder %v3448, inf
          %v3569 = vsel %vm3568, %v3448, %v3567
          %vm3570 = vcmp.eq.f32.partialorder %v3448, 0.0
          %v3571 = vand.u32 %v3448, 2147483648
          %v3572 = vsel %vm3570, %v3571, %v3569
          %v3573 = vrsqrt.pop %v3449
          %v3574 = vmul.f32 %v3449, %v3573
          %vm3575 = vcmp.eq.f32.partialorder %v3449, inf
          %v3576 = vsel %vm3575, %v3449, %v3574
          %vm3577 = vcmp.eq.f32.partialorder %v3449, 0.0
          %v3578 = vand.u32 %v3449, 2147483648
          %v3579 = vsel %vm3577, %v3578, %v3576
          %v3580 = vrsqrt.pop %v3450
          %v3581 = vmul.f32 %v3450, %v3580
          %vm3582 = vcmp.eq.f32.partialorder %v3450, inf
          %v3583 = vsel %vm3582, %v3450, %v3581
          %vm3584 = vcmp.eq.f32.partialorder %v3450, 0.0
          %v3585 = vand.u32 %v3450, 2147483648
          %v3586 = vsel %vm3584, %v3585, %v3583
          %v3587 = vrsqrt.pop %v3451
          %v3588 = vmul.f32 %v3451, %v3587
          %vm3589 = vcmp.eq.f32.partialorder %v3451, inf
          %v3590 = vsel %vm3589, %v3451, %v3588
          %vm3591 = vcmp.eq.f32.partialorder %v3451, 0.0
          %v3592 = vand.u32 %v3451, 2147483648
          %v3593 = vsel %vm3591, %v3592, %v3590
          %v3594 = vrsqrt.pop %v3452
          %v3595 = vmul.f32 %v3452, %v3594
          %vm3596 = vcmp.eq.f32.partialorder %v3452, inf
          %v3597 = vsel %vm3596, %v3452, %v3595
          %vm3598 = vcmp.eq.f32.partialorder %v3452, 0.0
          %v3599 = vand.u32 %v3452, 2147483648
          %v3600 = vsel %vm3598, %v3599, %v3597
          %v3601 = vrsqrt.pop %v3453
          %v3602 = vmul.f32 %v3453, %v3601
          %vm3603 = vcmp.eq.f32.partialorder %v3453, inf
          %v3604 = vsel %vm3603, %v3453, %v3602
          %vm3605 = vcmp.eq.f32.partialorder %v3453, 0.0
          %v3606 = vand.u32 %v3453, 2147483648
          %v3607 = vsel %vm3605, %v3606, %v3604
          %v3608 = vrsqrt.pop %v3454
          %v3609 = vmul.f32 %v3454, %v3608
          %vm3610 = vcmp.eq.f32.partialorder %v3454, inf
          %v3611 = vsel %vm3610, %v3454, %v3609
          %vm3612 = vcmp.eq.f32.partialorder %v3454, 0.0
          %v3613 = vand.u32 %v3454, 2147483648
          %v3614 = vsel %vm3612, %v3613, %v3611
          %v3615 = vrsqrt.pop %v3455
          %v3616 = vmul.f32 %v3455, %v3615
          %vm3617 = vcmp.eq.f32.partialorder %v3455, inf
          %v3618 = vsel %vm3617, %v3455, %v3616
          %vm3619 = vcmp.eq.f32.partialorder %v3455, 0.0
          %v3620 = vand.u32 %v3455, 2147483648
          %v3621 = vsel %vm3619, %v3620, %v3618
          %v3622 = vrsqrt.pop %v3456
          %v3623 = vmul.f32 %v3456, %v3622
          %vm3624 = vcmp.eq.f32.partialorder %v3456, inf
          %v3625 = vsel %vm3624, %v3456, %v3623
          %vm3626 = vcmp.eq.f32.partialorder %v3456, 0.0
          %v3627 = vand.u32 %v3456, 2147483648
          %v3628 = vsel %vm3626, %v3627, %v3625
          %v3629 = vrsqrt.pop %v3457
          %v3630 = vmul.f32 %v3457, %v3629
          %vm3631 = vcmp.eq.f32.partialorder %v3457, inf
          %v3632 = vsel %vm3631, %v3457, %v3630
          %vm3633 = vcmp.eq.f32.partialorder %v3457, 0.0
          %v3634 = vand.u32 %v3457, 2147483648
          %v3635 = vsel %vm3633, %v3634, %v3632
          %v3636 = vrsqrt.pop %v3458
          %v3637 = vmul.f32 %v3458, %v3636
          %vm3638 = vcmp.eq.f32.partialorder %v3458, inf
          %v3639 = vsel %vm3638, %v3458, %v3637
          %vm3640 = vcmp.eq.f32.partialorder %v3458, 0.0
          %v3641 = vand.u32 %v3458, 2147483648
          %v3642 = vsel %vm3640, %v3641, %v3639
          %v3643 = vrsqrt.pop %v3459
          %v3644 = vmul.f32 %v3459, %v3643
          %vm3645 = vcmp.eq.f32.partialorder %v3459, inf
          %v3646 = vsel %vm3645, %v3459, %v3644
          %vm3647 = vcmp.eq.f32.partialorder %v3459, 0.0
          %v3648 = vand.u32 %v3459, 2147483648
          %v3649 = vsel %vm3647, %v3648, %v3646
          %v3650 = vrsqrt.pop %v3460
          %v3651 = vmul.f32 %v3460, %v3650
          %vm3652 = vcmp.eq.f32.partialorder %v3460, inf
          %v3653 = vsel %vm3652, %v3460, %v3651
          %vm3654 = vcmp.eq.f32.partialorder %v3460, 0.0
          %v3655 = vand.u32 %v3460, 2147483648
          %v3656 = vsel %vm3654, %v3655, %v3653
          %v3657 = vrsqrt.pop %v3461
          %v3658 = vmul.f32 %v3461, %v3657
          %vm3659 = vcmp.eq.f32.partialorder %v3461, inf
          %v3660 = vsel %vm3659, %v3461, %v3658
          %vm3661 = vcmp.eq.f32.partialorder %v3461, 0.0
          %v3662 = vand.u32 %v3461, 2147483648
          %v3663 = vsel %vm3661, %v3662, %v3660
          %v3664 = vrsqrt.pop %v3462
          %v3665 = vmul.f32 %v3462, %v3664
          %vm3666 = vcmp.eq.f32.partialorder %v3462, inf
          %v3667 = vsel %vm3666, %v3462, %v3665
          %vm3668 = vcmp.eq.f32.partialorder %v3462, 0.0
          %v3669 = vand.u32 %v3462, 2147483648
          %v3670 = vsel %vm3668, %v3669, %v3667
          %v3671 = vrsqrt.pop %v3463
          %v3672 = vmul.f32 %v3463, %v3671
          %vm3673 = vcmp.eq.f32.partialorder %v3463, inf
          %v3674 = vsel %vm3673, %v3463, %v3672
          %vm3675 = vcmp.eq.f32.partialorder %v3463, 0.0
          %v3676 = vand.u32 %v3463, 2147483648
          %v3677 = vsel %vm3675, %v3676, %v3674
          %v3678 = vrsqrt.pop %v3464
          %v3679 = vmul.f32 %v3464, %v3678
          %vm3680 = vcmp.eq.f32.partialorder %v3464, inf
          %v3681 = vsel %vm3680, %v3464, %v3679
          %vm3682 = vcmp.eq.f32.partialorder %v3464, 0.0
          %v3683 = vand.u32 %v3464, 2147483648
          %v3684 = vsel %vm3682, %v3683, %v3681
          %v3685 = vrsqrt.pop %v3465
          %v3686 = vmul.f32 %v3465, %v3685
          %vm3687 = vcmp.eq.f32.partialorder %v3465, inf
          %v3688 = vsel %vm3687, %v3465, %v3686
          %vm3689 = vcmp.eq.f32.partialorder %v3465, 0.0
          %v3690 = vand.u32 %v3465, 2147483648
          %v3691 = vsel %vm3689, %v3690, %v3688
          %v3692 = vrsqrt.pop %v3466
          %v3693 = vmul.f32 %v3466, %v3692
          %vm3694 = vcmp.eq.f32.partialorder %v3466, inf
          %v3695 = vsel %vm3694, %v3466, %v3693
          %vm3696 = vcmp.eq.f32.partialorder %v3466, 0.0
          %v3697 = vand.u32 %v3466, 2147483648
          %v3698 = vsel %vm3696, %v3697, %v3695
          %v3699 = vrsqrt.pop %v3467
          %v3700 = vmul.f32 %v3467, %v3699
          %vm3701 = vcmp.eq.f32.partialorder %v3467, inf
          %v3702 = vsel %vm3701, %v3467, %v3700
          %vm3703 = vcmp.eq.f32.partialorder %v3467, 0.0
          %v3704 = vand.u32 %v3467, 2147483648
          %v3705 = vsel %vm3703, %v3704, %v3702
          %v3706 = vrsqrt.pop %v3468
          %v3707 = vmul.f32 %v3468, %v3706
          %vm3708 = vcmp.eq.f32.partialorder %v3468, inf
          %v3709 = vsel %vm3708, %v3468, %v3707
          %vm3710 = vcmp.eq.f32.partialorder %v3468, 0.0
          %v3711 = vand.u32 %v3468, 2147483648
          %v3712 = vsel %vm3710, %v3711, %v3709
          %v3713 = vrsqrt.pop %v3469
          %v3714 = vmul.f32 %v3469, %v3713
          %vm3715 = vcmp.eq.f32.partialorder %v3469, inf
          %v3716 = vsel %vm3715, %v3469, %v3714
          %vm3717 = vcmp.eq.f32.partialorder %v3469, 0.0
          %v3718 = vand.u32 %v3469, 2147483648
          %v3719 = vsel %vm3717, %v3718, %v3716
          %v3720 = vrsqrt.pop %v3470
          %v3721 = vmul.f32 %v3470, %v3720
          %vm3722 = vcmp.eq.f32.partialorder %v3470, inf
          %v3723 = vsel %vm3722, %v3470, %v3721
          %vm3724 = vcmp.eq.f32.partialorder %v3470, 0.0
          %v3725 = vand.u32 %v3470, 2147483648
          %v3726 = vsel %vm3724, %v3725, %v3723
          %v3727 = vrsqrt.pop %v3471
          %v3728 = vmul.f32 %v3471, %v3727
          %vm3729 = vcmp.eq.f32.partialorder %v3471, inf
          %v3730 = vsel %vm3729, %v3471, %v3728
          %vm3731 = vcmp.eq.f32.partialorder %v3471, 0.0
          %v3732 = vand.u32 %v3471, 2147483648
          %v3733 = vsel %vm3731, %v3732, %v3730
          %v3734 = vrsqrt.pop %v3472
          %v3735 = vmul.f32 %v3472, %v3734
          %vm3736 = vcmp.eq.f32.partialorder %v3472, inf
          %v3737 = vsel %vm3736, %v3472, %v3735
          %vm3738 = vcmp.eq.f32.partialorder %v3472, 0.0
          %v3739 = vand.u32 %v3472, 2147483648
          %v3740 = vsel %vm3738, %v3739, %v3737
          %v3741 = vrsqrt.pop %v3473
          %v3742 = vmul.f32 %v3473, %v3741
          %vm3743 = vcmp.eq.f32.partialorder %v3473, inf
          %v3744 = vsel %vm3743, %v3473, %v3742
          %vm3745 = vcmp.eq.f32.partialorder %v3473, 0.0
          %v3746 = vand.u32 %v3473, 2147483648
          %v3747 = vsel %vm3745, %v3746, %v3744
          %v3748 = vrsqrt.pop %v3474
          %v3749 = vmul.f32 %v3474, %v3748
          %vm3750 = vcmp.eq.f32.partialorder %v3474, inf
          %v3751 = vsel %vm3750, %v3474, %v3749
          %vm3752 = vcmp.eq.f32.partialorder %v3474, 0.0
          %v3753 = vand.u32 %v3474, 2147483648
          %v3754 = vsel %vm3752, %v3753, %v3751
          %v3755 = vrsqrt.pop %v3475
          %v3756 = vmul.f32 %v3475, %v3755
          %vm3757 = vcmp.eq.f32.partialorder %v3475, inf
          %v3758 = vsel %vm3757, %v3475, %v3756
          %vm3759 = vcmp.eq.f32.partialorder %v3475, 0.0
          %v3760 = vand.u32 %v3475, 2147483648
          %v3761 = vsel %vm3759, %v3760, %v3758
          %v3762 = vrsqrt.pop %v3476
          %v3763 = vmul.f32 %v3476, %v3762
          %vm3764 = vcmp.eq.f32.partialorder %v3476, inf
          %v3765 = vsel %vm3764, %v3476, %v3763
          %vm3766 = vcmp.eq.f32.partialorder %v3476, 0.0
          %v3767 = vand.u32 %v3476, 2147483648
          %v3768 = vsel %vm3766, %v3767, %v3765
          %v3769 = vrsqrt.pop %v3477
          %v3770 = vmul.f32 %v3477, %v3769
          %vm3771 = vcmp.eq.f32.partialorder %v3477, inf
          %v3772 = vsel %vm3771, %v3477, %v3770
          %vm3773 = vcmp.eq.f32.partialorder %v3477, 0.0
          %v3774 = vand.u32 %v3477, 2147483648
          %v3775 = vsel %vm3773, %v3774, %v3772
          %v3776 = vrsqrt.pop %v3478
          %v3777 = vmul.f32 %v3478, %v3776
          %vm3778 = vcmp.eq.f32.partialorder %v3478, inf
          %v3779 = vsel %vm3778, %v3478, %v3777
          %vm3780 = vcmp.eq.f32.partialorder %v3478, 0.0
          %v3781 = vand.u32 %v3478, 2147483648
          %v3782 = vsel %vm3780, %v3781, %v3779
          %v3783 = vrsqrt.pop %v3479
          %v3784 = vmul.f32 %v3479, %v3783
          %vm3785 = vcmp.eq.f32.partialorder %v3479, inf
          %v3786 = vsel %vm3785, %v3479, %v3784
          %vm3787 = vcmp.eq.f32.partialorder %v3479, 0.0
          %v3788 = vand.u32 %v3479, 2147483648
          %v3789 = vsel %vm3787, %v3788, %v3786
          %v3790 = vrsqrt.pop %v3480
          %v3791 = vmul.f32 %v3480, %v3790
          %vm3792 = vcmp.eq.f32.partialorder %v3480, inf
          %v3793 = vsel %vm3792, %v3480, %v3791
          %vm3794 = vcmp.eq.f32.partialorder %v3480, 0.0
          %v3795 = vand.u32 %v3480, 2147483648
          %v3796 = vsel %vm3794, %v3795, %v3793
          %v3797 = vrsqrt.pop %v3481
          %v3798 = vmul.f32 %v3481, %v3797
          %vm3799 = vcmp.eq.f32.partialorder %v3481, inf
          %v3800 = vsel %vm3799, %v3481, %v3798
          %vm3801 = vcmp.eq.f32.partialorder %v3481, 0.0
          %v3802 = vand.u32 %v3481, 2147483648
          %v3803 = vsel %vm3801, %v3802, %v3800
          %v3804 = vrsqrt.pop %v3482
          %v3805 = vmul.f32 %v3482, %v3804
          %vm3806 = vcmp.eq.f32.partialorder %v3482, inf
          %v3807 = vsel %vm3806, %v3482, %v3805
          %vm3808 = vcmp.eq.f32.partialorder %v3482, 0.0
          %v3809 = vand.u32 %v3482, 2147483648
          %v3810 = vsel %vm3808, %v3809, %v3807
          %v3811 = vrsqrt.pop %v3483
          %v3812 = vmul.f32 %v3483, %v3811
          %vm3813 = vcmp.eq.f32.partialorder %v3483, inf
          %v3814 = vsel %vm3813, %v3483, %v3812
          %vm3815 = vcmp.eq.f32.partialorder %v3483, 0.0
          %v3816 = vand.u32 %v3483, 2147483648
          %v3817 = vsel %vm3815, %v3816, %v3814
          %v3818 = vrsqrt.pop %v3484
          %v3819 = vmul.f32 %v3484, %v3818
          %vm3820 = vcmp.eq.f32.partialorder %v3484, inf
          %v3821 = vsel %vm3820, %v3484, %v3819
          %vm3822 = vcmp.eq.f32.partialorder %v3484, 0.0
          %v3823 = vand.u32 %v3484, 2147483648
          %v3824 = vsel %vm3822, %v3823, %v3821
          %v3825 = vrsqrt.pop %v3485
          %v3826 = vmul.f32 %v3485, %v3825
          %vm3827 = vcmp.eq.f32.partialorder %v3485, inf
          %v3828 = vsel %vm3827, %v3485, %v3826
          %vm3829 = vcmp.eq.f32.partialorder %v3485, 0.0
          %v3830 = vand.u32 %v3485, 2147483648
          %v3831 = vsel %vm3829, %v3830, %v3828
          %v3832 = vrsqrt.pop %v3486
          %v3833 = vmul.f32 %v3486, %v3832
          %vm3834 = vcmp.eq.f32.partialorder %v3486, inf
          %v3835 = vsel %vm3834, %v3486, %v3833
          %vm3836 = vcmp.eq.f32.partialorder %v3486, 0.0
          %v3837 = vand.u32 %v3486, 2147483648
          %v3838 = vsel %vm3836, %v3837, %v3835
          %v3839 = vrsqrt.pop %v3487
          %v3840 = vmul.f32 %v3487, %v3839
          %vm3841 = vcmp.eq.f32.partialorder %v3487, inf
          %v3842 = vsel %vm3841, %v3487, %v3840
          %vm3843 = vcmp.eq.f32.partialorder %v3487, 0.0
          %v3844 = vand.u32 %v3487, 2147483648
          %v3845 = vsel %vm3843, %v3844, %v3842
          %v3846 = vrsqrt.pop %v3488
          %v3847 = vmul.f32 %v3488, %v3846
          %vm3848 = vcmp.eq.f32.partialorder %v3488, inf
          %v3849 = vsel %vm3848, %v3488, %v3847
          %vm3850 = vcmp.eq.f32.partialorder %v3488, 0.0
          %v3851 = vand.u32 %v3488, 2147483648
          %v3852 = vsel %vm3850, %v3851, %v3849
          %v3853 = vrsqrt.pop %v3489
          %v3854 = vmul.f32 %v3489, %v3853
          %vm3855 = vcmp.eq.f32.partialorder %v3489, inf
          %v3856 = vsel %vm3855, %v3489, %v3854
          %vm3857 = vcmp.eq.f32.partialorder %v3489, 0.0
          %v3858 = vand.u32 %v3489, 2147483648
          %v3859 = vsel %vm3857, %v3858, %v3856
          %v3860 = vrsqrt.pop %v3490
          %v3861 = vmul.f32 %v3490, %v3860
          %vm3862 = vcmp.eq.f32.partialorder %v3490, inf
          %v3863 = vsel %vm3862, %v3490, %v3861
          %vm3864 = vcmp.eq.f32.partialorder %v3490, 0.0
          %v3865 = vand.u32 %v3490, 2147483648
          %v3866 = vsel %vm3864, %v3865, %v3863
          %v3867 = vrsqrt.pop %v3491
          %v3868 = vmul.f32 %v3491, %v3867
          %vm3869 = vcmp.eq.f32.partialorder %v3491, inf
          %v3870 = vsel %vm3869, %v3491, %v3868
          %vm3871 = vcmp.eq.f32.partialorder %v3491, 0.0
          %v3872 = vand.u32 %v3491, 2147483648
          %v3873 = vsel %vm3871, %v3872, %v3870
          %v3874 = vrsqrt.pop %v3492
          %v3875 = vmul.f32 %v3492, %v3874
          %vm3876 = vcmp.eq.f32.partialorder %v3492, inf
          %v3877 = vsel %vm3876, %v3492, %v3875
          %vm3878 = vcmp.eq.f32.partialorder %v3492, 0.0
          %v3879 = vand.u32 %v3492, 2147483648
          %v3880 = vsel %vm3878, %v3879, %v3877
          %v3881 = vrsqrt.pop %v3493
          %v3882 = vmul.f32 %v3493, %v3881
          %vm3883 = vcmp.eq.f32.partialorder %v3493, inf
          %v3884 = vsel %vm3883, %v3493, %v3882
          %vm3885 = vcmp.eq.f32.partialorder %v3493, 0.0
          %v3886 = vand.u32 %v3493, 2147483648
          %v3887 = vsel %vm3885, %v3886, %v3884
          %v3888 = vrsqrt.pop %v3494
          %v3889 = vmul.f32 %v3494, %v3888
          %vm3890 = vcmp.eq.f32.partialorder %v3494, inf
          %v3891 = vsel %vm3890, %v3494, %v3889
          %vm3892 = vcmp.eq.f32.partialorder %v3494, 0.0
          %v3893 = vand.u32 %v3494, 2147483648
          %v3894 = vsel %vm3892, %v3893, %v3891
          %v3895 = vrsqrt.pop %v3495
          %v3896 = vmul.f32 %v3495, %v3895
          %vm3897 = vcmp.eq.f32.partialorder %v3495, inf
          %v3898 = vsel %vm3897, %v3495, %v3896
          %vm3899 = vcmp.eq.f32.partialorder %v3495, 0.0
          %v3900 = vand.u32 %v3495, 2147483648
          %v3901 = vsel %vm3899, %v3900, %v3898
          %v3902 = vrsqrt.pop %v3496
          %v3903 = vmul.f32 %v3496, %v3902
          %vm3904 = vcmp.eq.f32.partialorder %v3496, inf
          %v3905 = vsel %vm3904, %v3496, %v3903
          %vm3906 = vcmp.eq.f32.partialorder %v3496, 0.0
          %v3907 = vand.u32 %v3496, 2147483648
          %v3908 = vsel %vm3906, %v3907, %v3905
          %v3909 = vrsqrt.pop %v3497
          %v3910 = vmul.f32 %v3497, %v3909
          %vm3911 = vcmp.eq.f32.partialorder %v3497, inf
          %v3912 = vsel %vm3911, %v3497, %v3910
          %vm3913 = vcmp.eq.f32.partialorder %v3497, 0.0
          %v3914 = vand.u32 %v3497, 2147483648
          %v3915 = vsel %vm3913, %v3914, %v3912
          %v3916 = vrsqrt.pop %v3498
          %v3917 = vmul.f32 %v3498, %v3916
          %vm3918 = vcmp.eq.f32.partialorder %v3498, inf
          %v3919 = vsel %vm3918, %v3498, %v3917
          %vm3920 = vcmp.eq.f32.partialorder %v3498, 0.0
          %v3921 = vand.u32 %v3498, 2147483648
          %v3922 = vsel %vm3920, %v3921, %v3919
          %v3923 = vrsqrt.pop %v3499
          %v3924 = vmul.f32 %v3499, %v3923
          %vm3925 = vcmp.eq.f32.partialorder %v3499, inf
          %v3926 = vsel %vm3925, %v3499, %v3924
          %vm3927 = vcmp.eq.f32.partialorder %v3499, 0.0
          %v3928 = vand.u32 %v3499, 2147483648
          %v3929 = vsel %vm3927, %v3928, %v3926
          %v3930 = vrsqrt.pop %v3500
          %v3931 = vmul.f32 %v3500, %v3930
          %vm3932 = vcmp.eq.f32.partialorder %v3500, inf
          %v3933 = vsel %vm3932, %v3500, %v3931
          %vm3934 = vcmp.eq.f32.partialorder %v3500, 0.0
          %v3935 = vand.u32 %v3500, 2147483648
          %v3936 = vsel %vm3934, %v3935, %v3933
          %v3937 = vrsqrt.pop %v3501
          %v3938 = vmul.f32 %v3501, %v3937
          %vm3939 = vcmp.eq.f32.partialorder %v3501, inf
          %v3940 = vsel %vm3939, %v3501, %v3938
          %vm3941 = vcmp.eq.f32.partialorder %v3501, 0.0
          %v3942 = vand.u32 %v3501, 2147483648
          %v3943 = vsel %vm3941, %v3942, %v3940
          %v3944 = vrsqrt.pop %v3502
          %v3945 = vmul.f32 %v3502, %v3944
          %vm3946 = vcmp.eq.f32.partialorder %v3502, inf
          %v3947 = vsel %vm3946, %v3502, %v3945
          %vm3948 = vcmp.eq.f32.partialorder %v3502, 0.0
          %v3949 = vand.u32 %v3502, 2147483648
          %v3950 = vsel %vm3948, %v3949, %v3947
          %v3951 = vld [vmem:[%s309] sm:$0xff]
          %v3952 = vld [vmem:[%s309 + $0x8] sm:$0xff]
          %v3953 = vld [vmem:[%s309 + $0x10] sm:$0xff]
          %v3954 = vld [vmem:[%s309 + $0x18] sm:$0xff]
          %v3955 = vld [vmem:[%s309 + $0x20] sm:$0xff]
          %v3956 = vld [vmem:[%s309 + $0x28] sm:$0xff]
          %v3957 = vld [vmem:[%s309 + $0x30] sm:$0xff]
          %v3958 = vld [vmem:[%s309 + $0x38] sm:$0xff]
          %v3959 = vld [vmem:[%s309 + $0x40] sm:$0xff]
          %v3960 = vld [vmem:[%s309 + $0x48] sm:$0xff]
          %v3961 = vld [vmem:[%s309 + $0x50] sm:$0xff]
          %v3962 = vld [vmem:[%s309 + $0x58] sm:$0xff]
          %v3963 = vld [vmem:[%s309 + $0x60] sm:$0xff]
          %v3964 = vld [vmem:[%s309 + $0x68] sm:$0xff]
          %v3965 = vld [vmem:[%s309 + $0x70] sm:$0xff]
          %v3966 = vld [vmem:[%s309 + $0x78] sm:$0xff]
          %v3967 = vld [vmem:[%s309 + $0x80] sm:$0xff]
          %v3968 = vld [vmem:[%s309 + $0x88] sm:$0xff]
          %v3969 = vld [vmem:[%s309 + $0x90] sm:$0xff]
          %v3970 = vld [vmem:[%s309 + $0x98] sm:$0xff]
          %v3971 = vld [vmem:[%s309 + $0xa0] sm:$0xff]
          %v3972 = vld [vmem:[%s309 + $0xa8] sm:$0xff]
          %v3973 = vld [vmem:[%s309 + $0xb0] sm:$0xff]
          %v3974 = vld [vmem:[%s309 + $0xb8] sm:$0xff]
          %v3975 = vld [vmem:[%s309 + $0xc0] sm:$0xff]
          %v3976 = vld [vmem:[%s309 + $0xc8] sm:$0xff]
          %v3977 = vld [vmem:[%s309 + $0xd0] sm:$0xff]
          %v3978 = vld [vmem:[%s309 + $0xd8] sm:$0xff]
          %v3979 = vld [vmem:[%s309 + $0xe0] sm:$0xff]
          %v3980 = vld [vmem:[%s309 + $0xe8] sm:$0xff]
          %v3981 = vld [vmem:[%s309 + $0xf0] sm:$0xff]
          %v3982 = vld [vmem:[%s309 + $0xf8] sm:$0xff]
          %v3983 = vld [vmem:[%s309 + $0x100] sm:$0xff]
          %v3984 = vld [vmem:[%s309 + $0x108] sm:$0xff]
          %v3985 = vld [vmem:[%s309 + $0x110] sm:$0xff]
          %v3986 = vld [vmem:[%s309 + $0x118] sm:$0xff]
          %v3987 = vld [vmem:[%s309 + $0x120] sm:$0xff]
          %v3988 = vld [vmem:[%s309 + $0x128] sm:$0xff]
          %v3989 = vld [vmem:[%s309 + $0x130] sm:$0xff]
          %v3990 = vld [vmem:[%s309 + $0x138] sm:$0xff]
          %v3991 = vld [vmem:[%s309 + $0x140] sm:$0xff]
          %v3992 = vld [vmem:[%s309 + $0x148] sm:$0xff]
          %v3993 = vld [vmem:[%s309 + $0x150] sm:$0xff]
          %v3994 = vld [vmem:[%s309 + $0x158] sm:$0xff]
          %v3995 = vld [vmem:[%s309 + $0x160] sm:$0xff]
          %v3996 = vld [vmem:[%s309 + $0x168] sm:$0xff]
          %v3997 = vld [vmem:[%s309 + $0x170] sm:$0xff]
          %v3998 = vld [vmem:[%s309 + $0x178] sm:$0xff]
          %v3999 = vld [vmem:[%s309 + $0x180] sm:$0xff]
          %v4000 = vld [vmem:[%s309 + $0x188] sm:$0xff]
          %v4001 = vld [vmem:[%s309 + $0x190] sm:$0xff]
          %v4002 = vld [vmem:[%s309 + $0x198] sm:$0xff]
          %v4003 = vld [vmem:[%s309 + $0x1a0] sm:$0xff]
          %v4004 = vld [vmem:[%s309 + $0x1a8] sm:$0xff]
          %v4005 = vld [vmem:[%s309 + $0x1b0] sm:$0xff]
          %v4006 = vld [vmem:[%s309 + $0x1b8] sm:$0xff]
          %v4007 = vld [vmem:[%s309 + $0x1c0] sm:$0xff]
          %v4008 = vld [vmem:[%s309 + $0x1c8] sm:$0xff]
          %v4009 = vld [vmem:[%s309 + $0x1d0] sm:$0xff]
          %v4010 = vld [vmem:[%s309 + $0x1d8] sm:$0xff]
          %v4011 = vld [vmem:[%s309 + $0x1e0] sm:$0xff]
          %v4012 = vld [vmem:[%s309 + $0x1e8] sm:$0xff]
          %v4013 = vld [vmem:[%s309 + $0x1f0] sm:$0xff]
          %v4014 = vld [vmem:[%s309 + $0x1f8] sm:$0xff]
          // Predicated region
          $region53: #{tpu_custom_call.1} parent=51 // pred_check
            %p4015 = pneg %p401
          $region54: #{tpu_custom_call.1} parent=51 // pred_check_branch
            %4017 = sbr.rel (%p4015) target = $region56
          $region55: #{tpu_custom_call.1} parent=51 // pred_region
            %v4018 = vlaneseq
            %v4019 = vshrl.u32 %v4018, 7
            %v4020 = vadd.s32 %v4019, 8
            %v4021 = vadd.s32 %v4019, 16
            %v4022 = vadd.s32 %v4019, 24
            %v4023 = vadd.s32 %v4019, 32
            %v4024 = vadd.s32 %v4019, 40
            %v4025 = vadd.s32 %v4019, 48
            %v4026 = vadd.s32 %v4019, 56
            %v4027 = vadd.s32 %v4019, 64
            %v4028 = vadd.s32 %v4019, 72
            %v4029 = vadd.s32 %v4019, 80
            %v4030 = vadd.s32 %v4019, 88
            %v4031 = vadd.s32 %v4019, 96
            %v4032 = vadd.s32 %v4019, 104
            %v4033 = vadd.s32 %v4019, 112
            %v4034 = vadd.s32 %v4019, 120
            %v4035 = vadd.s32 %v4019, 128
            %v4036 = vadd.s32 %v4019, 136
            %v4037 = vadd.s32 %v4019, 144
            %v4038 = vadd.s32 %v4019, 152
            %v4039 = vadd.s32 %v4019, 160
            %v4040 = vadd.s32 %v4019, 168
            %v4041 = vadd.s32 %v4019, 176
            %v4042 = vadd.s32 %v4019, 184
            %v4043 = vadd.s32 %v4019, 192
            %v4044 = vadd.s32 %v4019, 200
            %v4045 = vadd.s32 %v4019, 208
            %v4046 = vadd.s32 %v4019, 216
            %v4047 = vadd.s32 %v4019, 224
            %v4048 = vadd.s32 %v4019, 232
            %v4049 = vadd.s32 %v4019, 240
            %v4050 = vadd.s32 %v4019, 248
            %v4051 = vlaneseq
            %v4052 = vand.u32 %v4051, 127
            %v4053 = vadd.s32 %v4052, 128
            %vm4054 = vcmp.eq.s32.totalorder %v4019, %v4052
            %vm4055 = vcmp.eq.s32.totalorder %v4019, %v4053
            %vm4056 = vcmp.eq.s32.totalorder %v4020, %v4052
            %vm4057 = vcmp.eq.s32.totalorder %v4020, %v4053
            %vm4058 = vcmp.eq.s32.totalorder %v4021, %v4052
            %vm4059 = vcmp.eq.s32.totalorder %v4021, %v4053
            %vm4060 = vcmp.eq.s32.totalorder %v4022, %v4052
            %vm4061 = vcmp.eq.s32.totalorder %v4022, %v4053
            %vm4062 = vcmp.eq.s32.totalorder %v4023, %v4052
            %vm4063 = vcmp.eq.s32.totalorder %v4023, %v4053
            %vm4064 = vcmp.eq.s32.totalorder %v4024, %v4052
            %vm4065 = vcmp.eq.s32.totalorder %v4024, %v4053
            %vm4066 = vcmp.eq.s32.totalorder %v4025, %v4052
            %vm4067 = vcmp.eq.s32.totalorder %v4025, %v4053
            %vm4068 = vcmp.eq.s32.totalorder %v4026, %v4052
            %vm4069 = vcmp.eq.s32.totalorder %v4026, %v4053
            %vm4070 = vcmp.eq.s32.totalorder %v4027, %v4052
            %vm4071 = vcmp.eq.s32.totalorder %v4027, %v4053
            %vm4072 = vcmp.eq.s32.totalorder %v4028, %v4052
            %vm4073 = vcmp.eq.s32.totalorder %v4028, %v4053
            %vm4074 = vcmp.eq.s32.totalorder %v4029, %v4052
            %vm4075 = vcmp.eq.s32.totalorder %v4029, %v4053
            %vm4076 = vcmp.eq.s32.totalorder %v4030, %v4052
            %vm4077 = vcmp.eq.s32.totalorder %v4030, %v4053
            %vm4078 = vcmp.eq.s32.totalorder %v4031, %v4052
            %vm4079 = vcmp.eq.s32.totalorder %v4031, %v4053
            %vm4080 = vcmp.eq.s32.totalorder %v4032, %v4052
            %vm4081 = vcmp.eq.s32.totalorder %v4032, %v4053
            %vm4082 = vcmp.eq.s32.totalorder %v4033, %v4052
            %vm4083 = vcmp.eq.s32.totalorder %v4033, %v4053
            %vm4084 = vcmp.eq.s32.totalorder %v4034, %v4052
            %vm4085 = vcmp.eq.s32.totalorder %v4034, %v4053
            %vm4086 = vcmp.eq.s32.totalorder %v4035, %v4052
            %vm4087 = vcmp.eq.s32.totalorder %v4035, %v4053
            %vm4088 = vcmp.eq.s32.totalorder %v4036, %v4052
            %vm4089 = vcmp.eq.s32.totalorder %v4036, %v4053
            %vm4090 = vcmp.eq.s32.totalorder %v4037, %v4052
            %vm4091 = vcmp.eq.s32.totalorder %v4037, %v4053
            %vm4092 = vcmp.eq.s32.totalorder %v4038, %v4052
            %vm4093 = vcmp.eq.s32.totalorder %v4038, %v4053
            %vm4094 = vcmp.eq.s32.totalorder %v4039, %v4052
            %vm4095 = vcmp.eq.s32.totalorder %v4039, %v4053
            %vm4096 = vcmp.eq.s32.totalorder %v4040, %v4052
            %vm4097 = vcmp.eq.s32.totalorder %v4040, %v4053
            %vm4098 = vcmp.eq.s32.totalorder %v4041, %v4052
            %vm4099 = vcmp.eq.s32.totalorder %v4041, %v4053
            %vm4100 = vcmp.eq.s32.totalorder %v4042, %v4052
            %vm4101 = vcmp.eq.s32.totalorder %v4042, %v4053
            %vm4102 = vcmp.eq.s32.totalorder %v4043, %v4052
            %vm4103 = vcmp.eq.s32.totalorder %v4043, %v4053
            %vm4104 = vcmp.eq.s32.totalorder %v4044, %v4052
            %vm4105 = vcmp.eq.s32.totalorder %v4044, %v4053
            %vm4106 = vcmp.eq.s32.totalorder %v4045, %v4052
            %vm4107 = vcmp.eq.s32.totalorder %v4045, %v4053
            %vm4108 = vcmp.eq.s32.totalorder %v4046, %v4052
            %vm4109 = vcmp.eq.s32.totalorder %v4046, %v4053
            %vm4110 = vcmp.eq.s32.totalorder %v4047, %v4052
            %vm4111 = vcmp.eq.s32.totalorder %v4047, %v4053
            %vm4112 = vcmp.eq.s32.totalorder %v4048, %v4052
            %vm4113 = vcmp.eq.s32.totalorder %v4048, %v4053
            %vm4114 = vcmp.eq.s32.totalorder %v4049, %v4052
            %vm4115 = vcmp.eq.s32.totalorder %v4049, %v4053
            %vm4116 = vcmp.eq.s32.totalorder %v4050, %v4052
            %vm4117 = vcmp.eq.s32.totalorder %v4050, %v4053
            %v4118 = vsel %vm4054, 0.0, %v3509
            %v4119 = vsel %vm4055, 0.0, %v3516
            %v4120 = vsel %vm4056, 0.0, %v3523
            %v4121 = vsel %vm4057, 0.0, %v3530
            %v4122 = vsel %vm4058, 0.0, %v3537
            %v4123 = vsel %vm4059, 0.0, %v3544
            %v4124 = vsel %vm4060, 0.0, %v3551
            %v4125 = vsel %vm4061, 0.0, %v3558
            %v4126 = vsel %vm4062, 0.0, %v3565
            %v4127 = vsel %vm4063, 0.0, %v3572
            %v4128 = vsel %vm4064, 0.0, %v3579
            %v4129 = vsel %vm4065, 0.0, %v3586
            %v4130 = vsel %vm4066, 0.0, %v3593
            %v4131 = vsel %vm4067, 0.0, %v3600
            %v4132 = vsel %vm4068, 0.0, %v3607
            %v4133 = vsel %vm4069, 0.0, %v3614
            %v4134 = vsel %vm4070, 0.0, %v3621
            %v4135 = vsel %vm4071, 0.0, %v3628
            %v4136 = vsel %vm4072, 0.0, %v3635
            %v4137 = vsel %vm4073, 0.0, %v3642
            %v4138 = vsel %vm4074, 0.0, %v3649
            %v4139 = vsel %vm4075, 0.0, %v3656
            %v4140 = vsel %vm4076, 0.0, %v3663
            %v4141 = vsel %vm4077, 0.0, %v3670
            %v4142 = vsel %vm4078, 0.0, %v3677
            %v4143 = vsel %vm4079, 0.0, %v3684
            %v4144 = vsel %vm4080, 0.0, %v3691
            %v4145 = vsel %vm4081, 0.0, %v3698
            %v4146 = vsel %vm4082, 0.0, %v3705
            %v4147 = vsel %vm4083, 0.0, %v3712
            %v4148 = vsel %vm4084, 0.0, %v3719
            %v4149 = vsel %vm4085, 0.0, %v3726
            %v4150 = vsel %vm4086, 0.0, %v3733
            %v4151 = vsel %vm4087, 0.0, %v3740
            %v4152 = vsel %vm4088, 0.0, %v3747
            %v4153 = vsel %vm4089, 0.0, %v3754
            %v4154 = vsel %vm4090, 0.0, %v3761
            %v4155 = vsel %vm4091, 0.0, %v3768
            %v4156 = vsel %vm4092, 0.0, %v3775
            %v4157 = vsel %vm4093, 0.0, %v3782
            %v4158 = vsel %vm4094, 0.0, %v3789
            %v4159 = vsel %vm4095, 0.0, %v3796
            %v4160 = vsel %vm4096, 0.0, %v3803
            %v4161 = vsel %vm4097, 0.0, %v3810
            %v4162 = vsel %vm4098, 0.0, %v3817
            %v4163 = vsel %vm4099, 0.0, %v3824
            %v4164 = vsel %vm4100, 0.0, %v3831
            %v4165 = vsel %vm4101, 0.0, %v3838
            %v4166 = vsel %vm4102, 0.0, %v3845
            %v4167 = vsel %vm4103, 0.0, %v3852
            %v4168 = vsel %vm4104, 0.0, %v3859
            %v4169 = vsel %vm4105, 0.0, %v3866
            %v4170 = vsel %vm4106, 0.0, %v3873
            %v4171 = vsel %vm4107, 0.0, %v3880
            %v4172 = vsel %vm4108, 0.0, %v3887
            %v4173 = vsel %vm4109, 0.0, %v3894
            %v4174 = vsel %vm4110, 0.0, %v3901
            %v4175 = vsel %vm4111, 0.0, %v3908
            %v4176 = vsel %vm4112, 0.0, %v3915
            %v4177 = vsel %vm4113, 0.0, %v3922
            %v4178 = vsel %vm4114, 0.0, %v3929
            %v4179 = vsel %vm4115, 0.0, %v3936
            %v4180 = vsel %vm4116, 0.0, %v3943
            %v4181 = vsel %vm4117, 0.0, %v3950
            %v4182 = vsel %vm4054, 1, 0
            %v4183 = vsel %vm4055, 1, 0
            %v4184 = vsel %vm4056, 1, 0
            %v4185 = vsel %vm4057, 1, 0
            %v4186 = vsel %vm4058, 1, 0
            %v4187 = vsel %vm4059, 1, 0
            %v4188 = vsel %vm4060, 1, 0
            %v4189 = vsel %vm4061, 1, 0
            %v4190 = vsel %vm4062, 1, 0
            %v4191 = vsel %vm4063, 1, 0
            %v4192 = vsel %vm4064, 1, 0
            %v4193 = vsel %vm4065, 1, 0
            %v4194 = vsel %vm4066, 1, 0
            %v4195 = vsel %vm4067, 1, 0
            %v4196 = vsel %vm4068, 1, 0
            %v4197 = vsel %vm4069, 1, 0
            %v4198 = vsel %vm4070, 1, 0
            %v4199 = vsel %vm4071, 1, 0
            %v4200 = vsel %vm4072, 1, 0
            %v4201 = vsel %vm4073, 1, 0
            %v4202 = vsel %vm4074, 1, 0
            %v4203 = vsel %vm4075, 1, 0
            %v4204 = vsel %vm4076, 1, 0
            %v4205 = vsel %vm4077, 1, 0
            %v4206 = vsel %vm4078, 1, 0
            %v4207 = vsel %vm4079, 1, 0
            %v4208 = vsel %vm4080, 1, 0
            %v4209 = vsel %vm4081, 1, 0
            %v4210 = vsel %vm4082, 1, 0
            %v4211 = vsel %vm4083, 1, 0
            %v4212 = vsel %vm4084, 1, 0
            %v4213 = vsel %vm4085, 1, 0
            %v4214 = vsel %vm4086, 1, 0
            %v4215 = vsel %vm4087, 1, 0
            %v4216 = vsel %vm4088, 1, 0
            %v4217 = vsel %vm4089, 1, 0
            %v4218 = vsel %vm4090, 1, 0
            %v4219 = vsel %vm4091, 1, 0
            %v4220 = vsel %vm4092, 1, 0
            %v4221 = vsel %vm4093, 1, 0
            %v4222 = vsel %vm4094, 1, 0
            %v4223 = vsel %vm4095, 1, 0
            %v4224 = vsel %vm4096, 1, 0
            %v4225 = vsel %vm4097, 1, 0
            %v4226 = vsel %vm4098, 1, 0
            %v4227 = vsel %vm4099, 1, 0
            %v4228 = vsel %vm4100, 1, 0
            %v4229 = vsel %vm4101, 1, 0
            %v4230 = vsel %vm4102, 1, 0
            %v4231 = vsel %vm4103, 1, 0
            %v4232 = vsel %vm4104, 1, 0
            %v4233 = vsel %vm4105, 1, 0
            %v4234 = vsel %vm4106, 1, 0
            %v4235 = vsel %vm4107, 1, 0
            %v4236 = vsel %vm4108, 1, 0
            %v4237 = vsel %vm4109, 1, 0
            %v4238 = vsel %vm4110, 1, 0
            %v4239 = vsel %vm4111, 1, 0
            %v4240 = vsel %vm4112, 1, 0
            %v4241 = vsel %vm4113, 1, 0
            %v4242 = vsel %vm4114, 1, 0
            %v4243 = vsel %vm4115, 1, 0
            %v4244 = vsel %vm4116, 1, 0
            %v4245 = vsel %vm4117, 1, 0
            %v4246 = vcvt.s32.f32 %v4182
            %v4247 = vcvt.s32.f32 %v4183
            %v4248 = vcvt.s32.f32 %v4184
            %v4249 = vcvt.s32.f32 %v4185
            %v4250 = vcvt.s32.f32 %v4186
            %v4251 = vcvt.s32.f32 %v4187
            %v4252 = vcvt.s32.f32 %v4188
            %v4253 = vcvt.s32.f32 %v4189
            %v4254 = vcvt.s32.f32 %v4190
            %v4255 = vcvt.s32.f32 %v4191
            %v4256 = vcvt.s32.f32 %v4192
            %v4257 = vcvt.s32.f32 %v4193
            %v4258 = vcvt.s32.f32 %v4194
            %v4259 = vcvt.s32.f32 %v4195
            %v4260 = vcvt.s32.f32 %v4196
            %v4261 = vcvt.s32.f32 %v4197
            %v4262 = vcvt.s32.f32 %v4198
            %v4263 = vcvt.s32.f32 %v4199
            %v4264 = vcvt.s32.f32 %v4200
            %v4265 = vcvt.s32.f32 %v4201
            %v4266 = vcvt.s32.f32 %v4202
            %v4267 = vcvt.s32.f32 %v4203
            %v4268 = vcvt.s32.f32 %v4204
            %v4269 = vcvt.s32.f32 %v4205
            %v4270 = vcvt.s32.f32 %v4206
            %v4271 = vcvt.s32.f32 %v4207
            %v4272 = vcvt.s32.f32 %v4208
            %v4273 = vcvt.s32.f32 %v4209
            %v4274 = vcvt.s32.f32 %v4210
            %v4275 = vcvt.s32.f32 %v4211
            %v4276 = vcvt.s32.f32 %v4212
            %v4277 = vcvt.s32.f32 %v4213
            %v4278 = vcvt.s32.f32 %v4214
            %v4279 = vcvt.s32.f32 %v4215
            %v4280 = vcvt.s32.f32 %v4216
            %v4281 = vcvt.s32.f32 %v4217
            %v4282 = vcvt.s32.f32 %v4218
            %v4283 = vcvt.s32.f32 %v4219
            %v4284 = vcvt.s32.f32 %v4220
            %v4285 = vcvt.s32.f32 %v4221
            %v4286 = vcvt.s32.f32 %v4222
            %v4287 = vcvt.s32.f32 %v4223
            %v4288 = vcvt.s32.f32 %v4224
            %v4289 = vcvt.s32.f32 %v4225
            %v4290 = vcvt.s32.f32 %v4226
            %v4291 = vcvt.s32.f32 %v4227
            %v4292 = vcvt.s32.f32 %v4228
            %v4293 = vcvt.s32.f32 %v4229
            %v4294 = vcvt.s32.f32 %v4230
            %v4295 = vcvt.s32.f32 %v4231
            %v4296 = vcvt.s32.f32 %v4232
            %v4297 = vcvt.s32.f32 %v4233
            %v4298 = vcvt.s32.f32 %v4234
            %v4299 = vcvt.s32.f32 %v4235
            %v4300 = vcvt.s32.f32 %v4236
            %v4301 = vcvt.s32.f32 %v4237
            %v4302 = vcvt.s32.f32 %v4238
            %v4303 = vcvt.s32.f32 %v4239
            %v4304 = vcvt.s32.f32 %v4240
            %v4305 = vcvt.s32.f32 %v4241
            %v4306 = vcvt.s32.f32 %v4242
            %v4307 = vcvt.s32.f32 %v4243
            %v4308 = vcvt.s32.f32 %v4244
            %v4309 = vcvt.s32.f32 %v4245
            %v4310 = vadd.f32 %v3951, %v4246
            %v4311 = vadd.f32 %v3952, %v4247
            %v4312 = vadd.f32 %v3953, %v4248
            %v4313 = vadd.f32 %v3954, %v4249
            %v4314 = vadd.f32 %v3955, %v4250
            %v4315 = vadd.f32 %v3956, %v4251
            %v4316 = vadd.f32 %v3957, %v4252
            %v4317 = vadd.f32 %v3958, %v4253
            %v4318 = vadd.f32 %v3959, %v4254
            %v4319 = vadd.f32 %v3960, %v4255
            %v4320 = vadd.f32 %v3961, %v4256
            %v4321 = vadd.f32 %v3962, %v4257
            %v4322 = vadd.f32 %v3963, %v4258
            %v4323 = vadd.f32 %v3964, %v4259
            %v4324 = vadd.f32 %v3965, %v4260
            %v4325 = vadd.f32 %v3966, %v4261
            %v4326 = vadd.f32 %v3967, %v4262
            %v4327 = vadd.f32 %v3968, %v4263
            %v4328 = vadd.f32 %v3969, %v4264
            %v4329 = vadd.f32 %v3970, %v4265
            %v4330 = vadd.f32 %v3971, %v4266
            %v4331 = vadd.f32 %v3972, %v4267
            %v4332 = vadd.f32 %v3973, %v4268
            %v4333 = vadd.f32 %v3974, %v4269
            %v4334 = vadd.f32 %v3975, %v4270
            %v4335 = vadd.f32 %v3976, %v4271
            %v4336 = vadd.f32 %v3977, %v4272
            %v4337 = vadd.f32 %v3978, %v4273
            %v4338 = vadd.f32 %v3979, %v4274
            %v4339 = vadd.f32 %v3980, %v4275
            %v4340 = vadd.f32 %v3981, %v4276
            %v4341 = vadd.f32 %v3982, %v4277
            %v4342 = vadd.f32 %v3983, %v4278
            %v4343 = vadd.f32 %v3984, %v4279
            %v4344 = vadd.f32 %v3985, %v4280
            %v4345 = vadd.f32 %v3986, %v4281
            %v4346 = vadd.f32 %v3987, %v4282
            %v4347 = vadd.f32 %v3988, %v4283
            %v4348 = vadd.f32 %v3989, %v4284
            %v4349 = vadd.f32 %v3990, %v4285
            %v4350 = vadd.f32 %v3991, %v4286
            %v4351 = vadd.f32 %v3992, %v4287
            %v4352 = vadd.f32 %v3993, %v4288
            %v4353 = vadd.f32 %v3994, %v4289
            %v4354 = vadd.f32 %v3995, %v4290
            %v4355 = vadd.f32 %v3996, %v4291
            %v4356 = vadd.f32 %v3997, %v4292
            %v4357 = vadd.f32 %v3998, %v4293
            %v4358 = vadd.f32 %v3999, %v4294
            %v4359 = vadd.f32 %v4000, %v4295
            %v4360 = vadd.f32 %v4001, %v4296
            %v4361 = vadd.f32 %v4002, %v4297
            %v4362 = vadd.f32 %v4003, %v4298
            %v4363 = vadd.f32 %v4004, %v4299
            %v4364 = vadd.f32 %v4005, %v4300
            %v4365 = vadd.f32 %v4006, %v4301
            %v4366 = vadd.f32 %v4007, %v4302
            %v4367 = vadd.f32 %v4008, %v4303
            %v4368 = vadd.f32 %v4009, %v4304
            %v4369 = vadd.f32 %v4010, %v4305
            %v4370 = vadd.f32 %v4011, %v4306
            %v4371 = vadd.f32 %v4012, %v4307
            %v4372 = vadd.f32 %v4013, %v4308
            %v4373 = vadd.f32 %v4014, %v4309
            %v4374 = vsub.f32 %v4118, %v3951
            %v4375 = vsub.f32 %v4119, %v3952
            %v4376 = vsub.f32 %v4120, %v3953
            %v4377 = vsub.f32 %v4121, %v3954
            %v4378 = vsub.f32 %v4122, %v3955
            %v4379 = vsub.f32 %v4123, %v3956
            %v4380 = vsub.f32 %v4124, %v3957
            %v4381 = vsub.f32 %v4125, %v3958
            %v4382 = vsub.f32 %v4126, %v3959
            %v4383 = vsub.f32 %v4127, %v3960
            %v4384 = vsub.f32 %v4128, %v3961
            %v4385 = vsub.f32 %v4129, %v3962
            %v4386 = vsub.f32 %v4130, %v3963
            %v4387 = vsub.f32 %v4131, %v3964
            %v4388 = vsub.f32 %v4132, %v3965
            %v4389 = vsub.f32 %v4133, %v3966
            %v4390 = vsub.f32 %v4134, %v3967
            %v4391 = vsub.f32 %v4135, %v3968
            %v4392 = vsub.f32 %v4136, %v3969
            %v4393 = vsub.f32 %v4137, %v3970
            %v4394 = vsub.f32 %v4138, %v3971
            %v4395 = vsub.f32 %v4139, %v3972
            %v4396 = vsub.f32 %v4140, %v3973
            %v4397 = vsub.f32 %v4141, %v3974
            %v4398 = vsub.f32 %v4142, %v3975
            %v4399 = vsub.f32 %v4143, %v3976
            %v4400 = vsub.f32 %v4144, %v3977
            %v4401 = vsub.f32 %v4145, %v3978
            %v4402 = vsub.f32 %v4146, %v3979
            %v4403 = vsub.f32 %v4147, %v3980
            %v4404 = vsub.f32 %v4148, %v3981
            %v4405 = vsub.f32 %v4149, %v3982
            %v4406 = vsub.f32 %v4150, %v3983
            %v4407 = vsub.f32 %v4151, %v3984
            %v4408 = vsub.f32 %v4152, %v3985
            %v4409 = vsub.f32 %v4153, %v3986
            %v4410 = vsub.f32 %v4154, %v3987
            %v4411 = vsub.f32 %v4155, %v3988
            %v4412 = vsub.f32 %v4156, %v3989
            %v4413 = vsub.f32 %v4157, %v3990
            %v4414 = vsub.f32 %v4158, %v3991
            %v4415 = vsub.f32 %v4159, %v3992
            %v4416 = vsub.f32 %v4160, %v3993
            %v4417 = vsub.f32 %v4161, %v3994
            %v4418 = vsub.f32 %v4162, %v3995
            %v4419 = vsub.f32 %v4163, %v3996
            %v4420 = vsub.f32 %v4164, %v3997
            %v4421 = vsub.f32 %v4165, %v3998
            %v4422 = vsub.f32 %v4166, %v3999
            %v4423 = vsub.f32 %v4167, %v4000
            %v4424 = vsub.f32 %v4168, %v4001
            %v4425 = vsub.f32 %v4169, %v4002
            %v4426 = vsub.f32 %v4170, %v4003
            %v4427 = vsub.f32 %v4171, %v4004
            %v4428 = vsub.f32 %v4172, %v4005
            %v4429 = vsub.f32 %v4173, %v4006
            %v4430 = vsub.f32 %v4174, %v4007
            %v4431 = vsub.f32 %v4175, %v4008
            %v4432 = vsub.f32 %v4176, %v4009
            %v4433 = vsub.f32 %v4177, %v4010
            %v4434 = vsub.f32 %v4178, %v4011
            %v4435 = vsub.f32 %v4179, %v4012
            %v4436 = vsub.f32 %v4180, %v4013
            %v4437 = vsub.f32 %v4181, %v4014
            %v4438 = vand.u32 2147483647, %v4374
            %v4439 = vand.u32 2147483647, %v4375
            %v4440 = vand.u32 2147483647, %v4376
            %v4441 = vand.u32 2147483647, %v4377
            %v4442 = vand.u32 2147483647, %v4378
            %v4443 = vand.u32 2147483647, %v4379
            %v4444 = vand.u32 2147483647, %v4380
            %v4445 = vand.u32 2147483647, %v4381
            %v4446 = vand.u32 2147483647, %v4382
            %v4447 = vand.u32 2147483647, %v4383
            %v4448 = vand.u32 2147483647, %v4384
            %v4449 = vand.u32 2147483647, %v4385
            %v4450 = vand.u32 2147483647, %v4386
            %v4451 = vand.u32 2147483647, %v4387
            %v4452 = vand.u32 2147483647, %v4388
            %v4453 = vand.u32 2147483647, %v4389
            %v4454 = vand.u32 2147483647, %v4390
            %v4455 = vand.u32 2147483647, %v4391
            %v4456 = vand.u32 2147483647, %v4392
            %v4457 = vand.u32 2147483647, %v4393
            %v4458 = vand.u32 2147483647, %v4394
            %v4459 = vand.u32 2147483647, %v4395
            %v4460 = vand.u32 2147483647, %v4396
            %v4461 = vand.u32 2147483647, %v4397
            %v4462 = vand.u32 2147483647, %v4398
            %v4463 = vand.u32 2147483647, %v4399
            %v4464 = vand.u32 2147483647, %v4400
            %v4465 = vand.u32 2147483647, %v4401
            %v4466 = vand.u32 2147483647, %v4402
            %v4467 = vand.u32 2147483647, %v4403
            %v4468 = vand.u32 2147483647, %v4404
            %v4469 = vand.u32 2147483647, %v4405
            %v4470 = vand.u32 2147483647, %v4406
            %v4471 = vand.u32 2147483647, %v4407
            %v4472 = vand.u32 2147483647, %v4408
            %v4473 = vand.u32 2147483647, %v4409
            %v4474 = vand.u32 2147483647, %v4410
            %v4475 = vand.u32 2147483647, %v4411
            %v4476 = vand.u32 2147483647, %v4412
            %v4477 = vand.u32 2147483647, %v4413
            %v4478 = vand.u32 2147483647, %v4414
            %v4479 = vand.u32 2147483647, %v4415
            %v4480 = vand.u32 2147483647, %v4416
            %v4481 = vand.u32 2147483647, %v4417
            %v4482 = vand.u32 2147483647, %v4418
            %v4483 = vand.u32 2147483647, %v4419
            %v4484 = vand.u32 2147483647, %v4420
            %v4485 = vand.u32 2147483647, %v4421
            %v4486 = vand.u32 2147483647, %v4422
            %v4487 = vand.u32 2147483647, %v4423
            %v4488 = vand.u32 2147483647, %v4424
            %v4489 = vand.u32 2147483647, %v4425
            %v4490 = vand.u32 2147483647, %v4426
            %v4491 = vand.u32 2147483647, %v4427
            %v4492 = vand.u32 2147483647, %v4428
            %v4493 = vand.u32 2147483647, %v4429
            %v4494 = vand.u32 2147483647, %v4430
            %v4495 = vand.u32 2147483647, %v4431
            %v4496 = vand.u32 2147483647, %v4432
            %v4497 = vand.u32 2147483647, %v4433
            %v4498 = vand.u32 2147483647, %v4434
            %v4499 = vand.u32 2147483647, %v4435
            %v4500 = vand.u32 2147483647, %v4436
            %v4501 = vand.u32 2147483647, %v4437
            %v4502 = vrcp.pop %v4310
            %v4503 = vrcp.pop %v4311
            %v4504 = vrcp.pop %v4312
            %v4505 = vrcp.pop %v4313
            %v4506 = vrcp.pop %v4314
            %v4507 = vrcp.pop %v4315
            %v4508 = vrcp.pop %v4316
            %v4509 = vrcp.pop %v4317
            %v4510 = vrcp.pop %v4318
            %v4511 = vrcp.pop %v4319
            %v4512 = vrcp.pop %v4320
            %v4513 = vrcp.pop %v4321
            %v4514 = vrcp.pop %v4322
            %v4515 = vrcp.pop %v4323
            %v4516 = vrcp.pop %v4324
            %v4517 = vrcp.pop %v4325
            %v4518 = vrcp.pop %v4326
            %v4519 = vrcp.pop %v4327
            %v4520 = vrcp.pop %v4328
            %v4521 = vrcp.pop %v4329
            %v4522 = vrcp.pop %v4330
            %v4523 = vrcp.pop %v4331
            %v4524 = vrcp.pop %v4332
            %v4525 = vrcp.pop %v4333
            %v4526 = vrcp.pop %v4334
            %v4527 = vrcp.pop %v4335
            %v4528 = vrcp.pop %v4336
            %v4529 = vrcp.pop %v4337
            %v4530 = vrcp.pop %v4338
            %v4531 = vrcp.pop %v4339
            %v4532 = vrcp.pop %v4340
            %v4533 = vrcp.pop %v4341
            %v4534 = vrcp.pop %v4342
            %v4535 = vrcp.pop %v4343
            %v4536 = vrcp.pop %v4344
            %v4537 = vrcp.pop %v4345
            %v4538 = vrcp.pop %v4346
            %v4539 = vrcp.pop %v4347
            %v4540 = vrcp.pop %v4348
            %v4541 = vrcp.pop %v4349
            %v4542 = vrcp.pop %v4350
            %v4543 = vrcp.pop %v4351
            %v4544 = vrcp.pop %v4352
            %v4545 = vrcp.pop %v4353
            %v4546 = vrcp.pop %v4354
            %v4547 = vrcp.pop %v4355
            %v4548 = vrcp.pop %v4356
            %v4549 = vrcp.pop %v4357
            %v4550 = vrcp.pop %v4358
            %v4551 = vrcp.pop %v4359
            %v4552 = vrcp.pop %v4360
            %v4553 = vrcp.pop %v4361
            %v4554 = vrcp.pop %v4362
            %v4555 = vrcp.pop %v4363
            %v4556 = vrcp.pop %v4364
            %v4557 = vrcp.pop %v4365
            %v4558 = vrcp.pop %v4366
            %v4559 = vrcp.pop %v4367
            %v4560 = vrcp.pop %v4368
            %v4561 = vrcp.pop %v4369
            %v4562 = vrcp.pop %v4370
            %v4563 = vrcp.pop %v4371
            %v4564 = vrcp.pop %v4372
            %v4565 = vrcp.pop %v4373
            %v4566 = vmul.f32 %v4438, %v4502
            %v4567 = vmul.f32 %v4439, %v4503
            %v4568 = vmul.f32 %v4440, %v4504
            %v4569 = vmul.f32 %v4441, %v4505
            %v4570 = vmul.f32 %v4442, %v4506
            %v4571 = vmul.f32 %v4443, %v4507
            %v4572 = vmul.f32 %v4444, %v4508
            %v4573 = vmul.f32 %v4445, %v4509
            %v4574 = vmul.f32 %v4446, %v4510
            %v4575 = vmul.f32 %v4447, %v4511
            %v4576 = vmul.f32 %v4448, %v4512
            %v4577 = vmul.f32 %v4449, %v4513
            %v4578 = vmul.f32 %v4450, %v4514
            %v4579 = vmul.f32 %v4451, %v4515
            %v4580 = vmul.f32 %v4452, %v4516
            %v4581 = vmul.f32 %v4453, %v4517
            %v4582 = vmul.f32 %v4454, %v4518
            %v4583 = vmul.f32 %v4455, %v4519
            %v4584 = vmul.f32 %v4456, %v4520
            %v4585 = vmul.f32 %v4457, %v4521
            %v4586 = vmul.f32 %v4458, %v4522
            %v4587 = vmul.f32 %v4459, %v4523
            %v4588 = vmul.f32 %v4460, %v4524
            %v4589 = vmul.f32 %v4461, %v4525
            %v4590 = vmul.f32 %v4462, %v4526
            %v4591 = vmul.f32 %v4463, %v4527
            %v4592 = vmul.f32 %v4464, %v4528
            %v4593 = vmul.f32 %v4465, %v4529
            %v4594 = vmul.f32 %v4466, %v4530
            %v4595 = vmul.f32 %v4467, %v4531
            %v4596 = vmul.f32 %v4468, %v4532
            %v4597 = vmul.f32 %v4469, %v4533
            %v4598 = vmul.f32 %v4470, %v4534
            %v4599 = vmul.f32 %v4471, %v4535
            %v4600 = vmul.f32 %v4472, %v4536
            %v4601 = vmul.f32 %v4473, %v4537
            %v4602 = vmul.f32 %v4474, %v4538
            %v4603 = vmul.f32 %v4475, %v4539
            %v4604 = vmul.f32 %v4476, %v4540
            %v4605 = vmul.f32 %v4477, %v4541
            %v4606 = vmul.f32 %v4478, %v4542
            %v4607 = vmul.f32 %v4479, %v4543
            %v4608 = vmul.f32 %v4480, %v4544
            %v4609 = vmul.f32 %v4481, %v4545
            %v4610 = vmul.f32 %v4482, %v4546
            %v4611 = vmul.f32 %v4483, %v4547
            %v4612 = vmul.f32 %v4484, %v4548
            %v4613 = vmul.f32 %v4485, %v4549
            %v4614 = vmul.f32 %v4486, %v4550
            %v4615 = vmul.f32 %v4487, %v4551
            %v4616 = vmul.f32 %v4488, %v4552
            %v4617 = vmul.f32 %v4489, %v4553
            %v4618 = vmul.f32 %v4490, %v4554
            %v4619 = vmul.f32 %v4491, %v4555
            %v4620 = vmul.f32 %v4492, %v4556
            %v4621 = vmul.f32 %v4493, %v4557
            %v4622 = vmul.f32 %v4494, %v4558
            %v4623 = vmul.f32 %v4495, %v4559
            %v4624 = vmul.f32 %v4496, %v4560
            %v4625 = vmul.f32 %v4497, %v4561
            %v4626 = vmul.f32 %v4498, %v4562
            %v4627 = vmul.f32 %v4499, %v4563
            %v4628 = vmul.f32 %v4500, %v4564
            %v4629 = vmul.f32 %v4501, %v4565
            %v4630 = vld [vmem:[%s360] sm:$0xff]
            %v4631 = vld [vmem:[%s360 + $0x8] sm:$0xff]
            %v4632 = vadd.f32 %v4566, %v4568
            %v4633 = vadd.f32 %v4567, %v4569
            %v4634 = vadd.f32 %v4570, %v4572
            %v4635 = vadd.f32 %v4571, %v4573
            %v4636 = vadd.f32 %v4574, %v4576
            %v4637 = vadd.f32 %v4575, %v4577
            %v4638 = vadd.f32 %v4578, %v4580
            %v4639 = vadd.f32 %v4579, %v4581
            %v4640 = vadd.f32 %v4582, %v4584
            %v4641 = vadd.f32 %v4583, %v4585
            %v4642 = vadd.f32 %v4586, %v4588
            %v4643 = vadd.f32 %v4587, %v4589
            %v4644 = vadd.f32 %v4590, %v4592
            %v4645 = vadd.f32 %v4591, %v4593
            %v4646 = vadd.f32 %v4594, %v4596
            %v4647 = vadd.f32 %v4595, %v4597
            %v4648 = vadd.f32 %v4598, %v4600
            %v4649 = vadd.f32 %v4599, %v4601
            %v4650 = vadd.f32 %v4602, %v4604
            %v4651 = vadd.f32 %v4603, %v4605
            %v4652 = vadd.f32 %v4606, %v4608
            %v4653 = vadd.f32 %v4607, %v4609
            %v4654 = vadd.f32 %v4610, %v4612
            %v4655 = vadd.f32 %v4611, %v4613
            %v4656 = vadd.f32 %v4614, %v4616
            %v4657 = vadd.f32 %v4615, %v4617
            %v4658 = vadd.f32 %v4618, %v4620
            %v4659 = vadd.f32 %v4619, %v4621
            %v4660 = vadd.f32 %v4622, %v4624
            %v4661 = vadd.f32 %v4623, %v4625
            %v4662 = vadd.f32 %v4626, %v4628
            %v4663 = vadd.f32 %v4627, %v4629
            %v4664 = vadd.f32 %v4632, %v4634
            %v4665 = vadd.f32 %v4633, %v4635
            %v4666 = vadd.f32 %v4636, %v4638
            %v4667 = vadd.f32 %v4637, %v4639
            %v4668 = vadd.f32 %v4640, %v4642
            %v4669 = vadd.f32 %v4641, %v4643
            %v4670 = vadd.f32 %v4644, %v4646
            %v4671 = vadd.f32 %v4645, %v4647
            %v4672 = vadd.f32 %v4648, %v4650
            %v4673 = vadd.f32 %v4649, %v4651
            %v4674 = vadd.f32 %v4652, %v4654
            %v4675 = vadd.f32 %v4653, %v4655
            %v4676 = vadd.f32 %v4656, %v4658
            %v4677 = vadd.f32 %v4657, %v4659
            %v4678 = vadd.f32 %v4660, %v4662
            %v4679 = vadd.f32 %v4661, %v4663
            %v4680 = vadd.f32 %v4664, %v4666
            %v4681 = vadd.f32 %v4665, %v4667
            %v4682 = vadd.f32 %v4668, %v4670
            %v4683 = vadd.f32 %v4669, %v4671
            %v4684 = vadd.f32 %v4672, %v4674
            %v4685 = vadd.f32 %v4673, %v4675
            %v4686 = vadd.f32 %v4676, %v4678
            %v4687 = vadd.f32 %v4677, %v4679
            %v4688 = vadd.f32 %v4680, %v4682
            %v4689 = vadd.f32 %v4681, %v4683
            %v4690 = vadd.f32 %v4684, %v4686
            %v4691 = vadd.f32 %v4685, %v4687
            %v4692 = vadd.f32 %v4688, %v4690
            %v4693 = vadd.f32 %v4689, %v4691
            %v4694 = vadd.f32 %v4630, %v4692
            %v4695 = vadd.f32 %v4631, %v4693
            %4696 = vst [vmem:[%s360] sm:$0xff] %v4694
            %4697 = vst [vmem:[%s360 + $0x8] sm:$0xff] %v4695
          $region56: #{tpu_custom_call.1} parent=51 // pred_fallthru
            _
          %p4698 = scmp.ne.s32.totalorder %s27, 0
          // Predicated region
          $region57: #{tpu_custom_call.1} parent=51 // pred_check
            %p4699 = pneg %p4698
          $region58: #{tpu_custom_call.1} parent=51 // pred_check_branch
            %4701 = sbr.rel (%p4699) target = $region60
          $region59: #{tpu_custom_call.1} parent=51 // pred_region
            %v4702 = vsub.f32 %v3509, %v3951
            %v4703 = vsub.f32 %v3516, %v3952
            %v4704 = vsub.f32 %v3523, %v3953
            %v4705 = vsub.f32 %v3530, %v3954
            %v4706 = vsub.f32 %v3537, %v3955
            %v4707 = vsub.f32 %v3544, %v3956
            %v4708 = vsub.f32 %v3551, %v3957
            %v4709 = vsub.f32 %v3558, %v3958
            %v4710 = vsub.f32 %v3565, %v3959
            %v4711 = vsub.f32 %v3572, %v3960
            %v4712 = vsub.f32 %v3579, %v3961
            %v4713 = vsub.f32 %v3586, %v3962
            %v4714 = vsub.f32 %v3593, %v3963
            %v4715 = vsub.f32 %v3600, %v3964
            %v4716 = vsub.f32 %v3607, %v3965
            %v4717 = vsub.f32 %v3614, %v3966
            %v4718 = vsub.f32 %v3621, %v3967
            %v4719 = vsub.f32 %v3628, %v3968
            %v4720 = vsub.f32 %v3635, %v3969
            %v4721 = vsub.f32 %v3642, %v3970
            %v4722 = vsub.f32 %v3649, %v3971
            %v4723 = vsub.f32 %v3656, %v3972
            %v4724 = vsub.f32 %v3663, %v3973
            %v4725 = vsub.f32 %v3670, %v3974
            %v4726 = vsub.f32 %v3677, %v3975
            %v4727 = vsub.f32 %v3684, %v3976
            %v4728 = vsub.f32 %v3691, %v3977
            %v4729 = vsub.f32 %v3698, %v3978
            %v4730 = vsub.f32 %v3705, %v3979
            %v4731 = vsub.f32 %v3712, %v3980
            %v4732 = vsub.f32 %v3719, %v3981
            %v4733 = vsub.f32 %v3726, %v3982
            %v4734 = vsub.f32 %v3733, %v3983
            %v4735 = vsub.f32 %v3740, %v3984
            %v4736 = vsub.f32 %v3747, %v3985
            %v4737 = vsub.f32 %v3754, %v3986
            %v4738 = vsub.f32 %v3761, %v3987
            %v4739 = vsub.f32 %v3768, %v3988
            %v4740 = vsub.f32 %v3775, %v3989
            %v4741 = vsub.f32 %v3782, %v3990
            %v4742 = vsub.f32 %v3789, %v3991
            %v4743 = vsub.f32 %v3796, %v3992
            %v4744 = vsub.f32 %v3803, %v3993
            %v4745 = vsub.f32 %v3810, %v3994
            %v4746 = vsub.f32 %v3817, %v3995
            %v4747 = vsub.f32 %v3824, %v3996
            %v4748 = vsub.f32 %v3831, %v3997
            %v4749 = vsub.f32 %v3838, %v3998
            %v4750 = vsub.f32 %v3845, %v3999
            %v4751 = vsub.f32 %v3852, %v4000
            %v4752 = vsub.f32 %v3859, %v4001
            %v4753 = vsub.f32 %v3866, %v4002
            %v4754 = vsub.f32 %v3873, %v4003
            %v4755 = vsub.f32 %v3880, %v4004
            %v4756 = vsub.f32 %v3887, %v4005
            %v4757 = vsub.f32 %v3894, %v4006
            %v4758 = vsub.f32 %v3901, %v4007
            %v4759 = vsub.f32 %v3908, %v4008
            %v4760 = vsub.f32 %v3915, %v4009
            %v4761 = vsub.f32 %v3922, %v4010
            %v4762 = vsub.f32 %v3929, %v4011
            %v4763 = vsub.f32 %v3936, %v4012
            %v4764 = vsub.f32 %v3943, %v4013
            %v4765 = vsub.f32 %v3950, %v4014
            %v4766 = vand.u32 2147483647, %v4702
            %v4767 = vand.u32 2147483647, %v4703
            %v4768 = vand.u32 2147483647, %v4704
            %v4769 = vand.u32 2147483647, %v4705
            %v4770 = vand.u32 2147483647, %v4706
            %v4771 = vand.u32 2147483647, %v4707
            %v4772 = vand.u32 2147483647, %v4708
            %v4773 = vand.u32 2147483647, %v4709
            %v4774 = vand.u32 2147483647, %v4710
            %v4775 = vand.u32 2147483647, %v4711
            %v4776 = vand.u32 2147483647, %v4712
            %v4777 = vand.u32 2147483647, %v4713
            %v4778 = vand.u32 2147483647, %v4714
            %v4779 = vand.u32 2147483647, %v4715
            %v4780 = vand.u32 2147483647, %v4716
            %v4781 = vand.u32 2147483647, %v4717
            %v4782 = vand.u32 2147483647, %v4718
            %v4783 = vand.u32 2147483647, %v4719
            %v4784 = vand.u32 2147483647, %v4720
            %v4785 = vand.u32 2147483647, %v4721
            %v4786 = vand.u32 2147483647, %v4722
            %v4787 = vand.u32 2147483647, %v4723
            %v4788 = vand.u32 2147483647, %v4724
            %v4789 = vand.u32 2147483647, %v4725
            %v4790 = vand.u32 2147483647, %v4726
            %v4791 = vand.u32 2147483647, %v4727
            %v4792 = vand.u32 2147483647, %v4728
            %v4793 = vand.u32 2147483647, %v4729
            %v4794 = vand.u32 2147483647, %v4730
            %v4795 = vand.u32 2147483647, %v4731
            %v4796 = vand.u32 2147483647, %v4732
            %v4797 = vand.u32 2147483647, %v4733
            %v4798 = vand.u32 2147483647, %v4734
            %v4799 = vand.u32 2147483647, %v4735
            %v4800 = vand.u32 2147483647, %v4736
            %v4801 = vand.u32 2147483647, %v4737
            %v4802 = vand.u32 2147483647, %v4738
            %v4803 = vand.u32 2147483647, %v4739
            %v4804 = vand.u32 2147483647, %v4740
            %v4805 = vand.u32 2147483647, %v4741
            %v4806 = vand.u32 2147483647, %v4742
            %v4807 = vand.u32 2147483647, %v4743
            %v4808 = vand.u32 2147483647, %v4744
            %v4809 = vand.u32 2147483647, %v4745
            %v4810 = vand.u32 2147483647, %v4746
            %v4811 = vand.u32 2147483647, %v4747
            %v4812 = vand.u32 2147483647, %v4748
            %v4813 = vand.u32 2147483647, %v4749
            %v4814 = vand.u32 2147483647, %v4750
            %v4815 = vand.u32 2147483647, %v4751
            %v4816 = vand.u32 2147483647, %v4752
            %v4817 = vand.u32 2147483647, %v4753
            %v4818 = vand.u32 2147483647, %v4754
            %v4819 = vand.u32 2147483647, %v4755
            %v4820 = vand.u32 2147483647, %v4756
            %v4821 = vand.u32 2147483647, %v4757
            %v4822 = vand.u32 2147483647, %v4758
            %v4823 = vand.u32 2147483647, %v4759
            %v4824 = vand.u32 2147483647, %v4760
            %v4825 = vand.u32 2147483647, %v4761
            %v4826 = vand.u32 2147483647, %v4762
            %v4827 = vand.u32 2147483647, %v4763
            %v4828 = vand.u32 2147483647, %v4764
            %v4829 = vand.u32 2147483647, %v4765
            %v4830 = vrcp.pop %v3951
            %v4831 = vrcp.pop %v3952
            %v4832 = vrcp.pop %v3953
            %v4833 = vrcp.pop %v3954
            %v4834 = vrcp.pop %v3955
            %v4835 = vrcp.pop %v3956
            %v4836 = vrcp.pop %v3957
            %v4837 = vrcp.pop %v3958
            %v4838 = vrcp.pop %v3959
            %v4839 = vrcp.pop %v3960
            %v4840 = vrcp.pop %v3961
            %v4841 = vrcp.pop %v3962
            %v4842 = vrcp.pop %v3963
            %v4843 = vrcp.pop %v3964
            %v4844 = vrcp.pop %v3965
            %v4845 = vrcp.pop %v3966
            %v4846 = vrcp.pop %v3967
            %v4847 = vrcp.pop %v3968
            %v4848 = vrcp.pop %v3969
            %v4849 = vrcp.pop %v3970
            %v4850 = vrcp.pop %v3971
            %v4851 = vrcp.pop %v3972
            %v4852 = vrcp.pop %v3973
            %v4853 = vrcp.pop %v3974
            %v4854 = vrcp.pop %v3975
            %v4855 = vrcp.pop %v3976
            %v4856 = vrcp.pop %v3977
            %v4857 = vrcp.pop %v3978
            %v4858 = vrcp.pop %v3979
            %v4859 = vrcp.pop %v3980
            %v4860 = vrcp.pop %v3981
            %v4861 = vrcp.pop %v3982
            %v4862 = vrcp.pop %v3983
            %v4863 = vrcp.pop %v3984
            %v4864 = vrcp.pop %v3985
            %v4865 = vrcp.pop %v3986
            %v4866 = vrcp.pop %v3987
            %v4867 = vrcp.pop %v3988
            %v4868 = vrcp.pop %v3989
            %v4869 = vrcp.pop %v3990
            %v4870 = vrcp.pop %v3991
            %v4871 = vrcp.pop %v3992
            %v4872 = vrcp.pop %v3993
            %v4873 = vrcp.pop %v3994
            %v4874 = vrcp.pop %v3995
            %v4875 = vrcp.pop %v3996
            %v4876 = vrcp.pop %v3997
            %v4877 = vrcp.pop %v3998
            %v4878 = vrcp.pop %v3999
            %v4879 = vrcp.pop %v4000
            %v4880 = vrcp.pop %v4001
            %v4881 = vrcp.pop %v4002
            %v4882 = vrcp.pop %v4003
            %v4883 = vrcp.pop %v4004
            %v4884 = vrcp.pop %v4005
            %v4885 = vrcp.pop %v4006
            %v4886 = vrcp.pop %v4007
            %v4887 = vrcp.pop %v4008
            %v4888 = vrcp.pop %v4009
            %v4889 = vrcp.pop %v4010
            %v4890 = vrcp.pop %v4011
            %v4891 = vrcp.pop %v4012
            %v4892 = vrcp.pop %v4013
            %v4893 = vrcp.pop %v4014
            %v4894 = vmul.f32 %v4766, %v4830
            %v4895 = vmul.f32 %v4767, %v4831
            %v4896 = vmul.f32 %v4768, %v4832
            %v4897 = vmul.f32 %v4769, %v4833
            %v4898 = vmul.f32 %v4770, %v4834
            %v4899 = vmul.f32 %v4771, %v4835
            %v4900 = vmul.f32 %v4772, %v4836
            %v4901 = vmul.f32 %v4773, %v4837
            %v4902 = vmul.f32 %v4774, %v4838
            %v4903 = vmul.f32 %v4775, %v4839
            %v4904 = vmul.f32 %v4776, %v4840
            %v4905 = vmul.f32 %v4777, %v4841
            %v4906 = vmul.f32 %v4778, %v4842
            %v4907 = vmul.f32 %v4779, %v4843
            %v4908 = vmul.f32 %v4780, %v4844
            %v4909 = vmul.f32 %v4781, %v4845
            %v4910 = vmul.f32 %v4782, %v4846
            %v4911 = vmul.f32 %v4783, %v4847
            %v4912 = vmul.f32 %v4784, %v4848
            %v4913 = vmul.f32 %v4785, %v4849
            %v4914 = vmul.f32 %v4786, %v4850
            %v4915 = vmul.f32 %v4787, %v4851
            %v4916 = vmul.f32 %v4788, %v4852
            %v4917 = vmul.f32 %v4789, %v4853
            %v4918 = vmul.f32 %v4790, %v4854
            %v4919 = vmul.f32 %v4791, %v4855
            %v4920 = vmul.f32 %v4792, %v4856
            %v4921 = vmul.f32 %v4793, %v4857
            %v4922 = vmul.f32 %v4794, %v4858
            %v4923 = vmul.f32 %v4795, %v4859
            %v4924 = vmul.f32 %v4796, %v4860
            %v4925 = vmul.f32 %v4797, %v4861
            %v4926 = vmul.f32 %v4798, %v4862
            %v4927 = vmul.f32 %v4799, %v4863
            %v4928 = vmul.f32 %v4800, %v4864
            %v4929 = vmul.f32 %v4801, %v4865
            %v4930 = vmul.f32 %v4802, %v4866
            %v4931 = vmul.f32 %v4803, %v4867
            %v4932 = vmul.f32 %v4804, %v4868
            %v4933 = vmul.f32 %v4805, %v4869
            %v4934 = vmul.f32 %v4806, %v4870
            %v4935 = vmul.f32 %v4807, %v4871
            %v4936 = vmul.f32 %v4808, %v4872
            %v4937 = vmul.f32 %v4809, %v4873
            %v4938 = vmul.f32 %v4810, %v4874
            %v4939 = vmul.f32 %v4811, %v4875
            %v4940 = vmul.f32 %v4812, %v4876
            %v4941 = vmul.f32 %v4813, %v4877
            %v4942 = vmul.f32 %v4814, %v4878
            %v4943 = vmul.f32 %v4815, %v4879
            %v4944 = vmul.f32 %v4816, %v4880
            %v4945 = vmul.f32 %v4817, %v4881
            %v4946 = vmul.f32 %v4818, %v4882
            %v4947 = vmul.f32 %v4819, %v4883
            %v4948 = vmul.f32 %v4820, %v4884
            %v4949 = vmul.f32 %v4821, %v4885
            %v4950 = vmul.f32 %v4822, %v4886
            %v4951 = vmul.f32 %v4823, %v4887
            %v4952 = vmul.f32 %v4824, %v4888
            %v4953 = vmul.f32 %v4825, %v4889
            %v4954 = vmul.f32 %v4826, %v4890
            %v4955 = vmul.f32 %v4827, %v4891
            %v4956 = vmul.f32 %v4828, %v4892
            %v4957 = vmul.f32 %v4829, %v4893
            %v4958 = vadd.f32 %v4894, %v4896
            %v4959 = vadd.f32 %v4895, %v4897
            %v4960 = vadd.f32 %v4898, %v4900
            %v4961 = vadd.f32 %v4899, %v4901
            %v4962 = vadd.f32 %v4902, %v4904
            %v4963 = vadd.f32 %v4903, %v4905
            %v4964 = vadd.f32 %v4906, %v4908
            %v4965 = vadd.f32 %v4907, %v4909
            %v4966 = vadd.f32 %v4910, %v4912
            %v4967 = vadd.f32 %v4911, %v4913
            %v4968 = vadd.f32 %v4914, %v4916
            %v4969 = vadd.f32 %v4915, %v4917
            %v4970 = vadd.f32 %v4918, %v4920
            %v4971 = vadd.f32 %v4919, %v4921
            %v4972 = vadd.f32 %v4922, %v4924
            %v4973 = vadd.f32 %v4923, %v4925
            %v4974 = vadd.f32 %v4926, %v4928
            %v4975 = vadd.f32 %v4927, %v4929
            %v4976 = vadd.f32 %v4930, %v4932
            %v4977 = vadd.f32 %v4931, %v4933
            %v4978 = vadd.f32 %v4934, %v4936
            %v4979 = vadd.f32 %v4935, %v4937
            %v4980 = vadd.f32 %v4938, %v4940
            %v4981 = vadd.f32 %v4939, %v4941
            %v4982 = vadd.f32 %v4942, %v4944
            %v4983 = vadd.f32 %v4943, %v4945
            %v4984 = vadd.f32 %v4946, %v4948
            %v4985 = vadd.f32 %v4947, %v4949
            %v4986 = vadd.f32 %v4950, %v4952
            %v4987 = vadd.f32 %v4951, %v4953
            %v4988 = vadd.f32 %v4954, %v4956
            %v4989 = vadd.f32 %v4955, %v4957
            %v4990 = vadd.f32 %v4958, %v4960
            %v4991 = vadd.f32 %v4959, %v4961
            %v4992 = vadd.f32 %v4962, %v4964
            %v4993 = vadd.f32 %v4963, %v4965
            %v4994 = vadd.f32 %v4966, %v4968
            %v4995 = vadd.f32 %v4967, %v4969
            %v4996 = vadd.f32 %v4970, %v4972
            %v4997 = vadd.f32 %v4971, %v4973
            %v4998 = vadd.f32 %v4974, %v4976
            %v4999 = vadd.f32 %v4975, %v4977
            %v5000 = vadd.f32 %v4978, %v4980
            %v5001 = vadd.f32 %v4979, %v4981
            %v5002 = vadd.f32 %v4982, %v4984
            %v5003 = vadd.f32 %v4983, %v4985
            %v5004 = vadd.f32 %v4986, %v4988
            %v5005 = vadd.f32 %v4987, %v4989
            %v5006 = vadd.f32 %v4990, %v4992
            %v5007 = vadd.f32 %v4991, %v4993
            %v5008 = vadd.f32 %v4994, %v4996
            %v5009 = vadd.f32 %v4995, %v4997
            %v5010 = vadd.f32 %v4998, %v5000
            %v5011 = vadd.f32 %v4999, %v5001
            %v5012 = vadd.f32 %v5002, %v5004
            %v5013 = vadd.f32 %v5003, %v5005
            %v5014 = vadd.f32 %v5006, %v5008
            %v5015 = vadd.f32 %v5007, %v5009
            %v5016 = vadd.f32 %v5010, %v5012
            %v5017 = vadd.f32 %v5011, %v5013
            %v5018 = vadd.f32 %v5014, %v5016
            %v5019 = vadd.f32 %v5015, %v5017
            %v5020 = vmul.f32 %v5018, 2.0
            %v5021 = vmul.f32 %v5019, 2.0
            %v5022 = vld [vmem:[%s360] sm:$0xff]
            %v5023 = vld [vmem:[%s360 + $0x8] sm:$0xff]
            %v5024 = vadd.f32 %v5022, %v5020
            %v5025 = vadd.f32 %v5023, %v5021
            %5026 = vst [vmem:[%s360] sm:$0xff] %v5024
            %5027 = vst [vmem:[%s360 + $0x8] sm:$0xff] %v5025
          $region60: #{tpu_custom_call.1} parent=51 // pred_fallthru
            _
        $region52: #{tpu_custom_call.1} parent=39 // pred_fallthru
          _
        %s5028 = sand.u32 %s192, 1
        %s5029 = scalar_lea.sflag [#allocation4], %s5028
        %s5030 = sand.u32 %s192, 1
        %s5031 = smul.addr %s5030, 16
        %s5032 = scalar_lea.vmem [#allocation5], %s5031
        // Predicated region
        $region61: #{tpu_custom_call.1} parent=39 // pred_check
          %p5033 = pneg %p202
        $region62: #{tpu_custom_call.1} parent=39 // pred_check_branch
          %5035 = sbr.rel (%p5033) target = $region64
        $region63: #{tpu_custom_call.1} parent=39 // pred_region
          %s5037 = ssub.s32 256, 256
          %5038 = vsyncadd %s5029, %s5037
          %s5039 = smul.addr %s26, 2
          %s5040 = smul.addr %s5039, 128
          %s5041 = scalar_lea.hbm %s5, %s5040
          %s5043 = sshll.u32 %s5032, 4
          %s5044 = int_to_ptr.vmem [resolvable:$true] %s5043
          %5046 = dma.vmem_to_hbm [thread:$0]  %s5044, 256, %s5041, %s5029
        $region64: #{tpu_custom_call.1} parent=39 // pred_fallthru
          _
      $region40: #{tpu_custom_call.1} parent=5 // pred_fallthru
        _
      %p5047 = scmp.le.s32.totalorder 2, %s17
      // Predicated region
      $region65: #{tpu_custom_call.1} parent=5 // pred_check
        %p5048 = pneg %p5047
      $region66: #{tpu_custom_call.1} parent=5 // pred_check_branch
        %5050 = sbr.rel (%p5048) target = $region68
      $region67: #{tpu_custom_call.1} parent=5 // pred_region
        %s5051 = ssub.s32 %s17, 2
        // Predicated region
        $region69: #{tpu_custom_call.1} parent=67 // pred_check
          %p5052 = pneg %p208
        $region70: #{tpu_custom_call.1} parent=67 // pred_check_branch
          %5054 = sbr.rel (%p5052) target = $region72
        $region71: #{tpu_custom_call.1} parent=67 // pred_region
          %s5055 = sand.u32 %s193, 1
          %s5056 = scalar_lea.sflag [#allocation4], %s5055
          %s5057 = sand.u32 %s193, 1
          %s5058 = smul.addr %s5057, 16
          %s5059 = scalar_lea.vmem [#allocation5], %s5058
          %5060 = dma.done %s5056, 256
        $region72: #{tpu_custom_call.1} parent=67 // pred_fallthru
          _
      $region68: #{tpu_custom_call.1} parent=5 // pred_fallthru
        _
    $region6: #{tpu_custom_call.1} parent=1 // loop_footer
      %s21 = sadd.s32 1, %s17
    $region7: #{tpu_custom_call.1} parent=1 // loop_footer_branch
      %16 = sbr.rel target = $region3
    $region8: #{tpu_custom_call.1} parent=1 // loop_exit
      _
    %5061 = vsyncpa [#allocation3], 1
    %s5062 = scalar_lea.sflag [#allocation3], 1
    %5063 = vsyncpa %s5062, 1
    %5064 = vsyncpa [#allocation4], 1
    %s5065 = scalar_lea.sflag [#allocation4], 1
    %5066 = vsyncpa %s5065, 1

</llo_original>
